<compile_context>
chip_gen: v5e
topology: v5e:2x2
jax: 0.10.0
libtpu: 0.0.40
codegen_flags: <defaults>
</compile_context>

<pallas_src>
import math
import functools

import numpy as np
import jax
import jax.numpy as jnp
from jax.experimental import pallas as pl
from jax.experimental.pallas import tpu as pltpu


def _round_up(x, m):
    return ((x + m - 1) // m) * m


def _cdiv(a, b):
    return (a + b - 1) // b


def _get_num_frequencies_nyquist(samples):
    nyquist_rate = 1 / (2 * (2 * 1 / samples))
    return int(math.floor(math.log(nyquist_rate, 2)))


def num_frequencies_for(in_features, sidelength=None, fn_samples=None, use_nyquist=True):
    if in_features == 3:
        return 10
    elif in_features == 2:
        assert sidelength is not None
        if isinstance(sidelength, int):
            sidelength = (sidelength, sidelength)
        nf = 4
        if use_nyquist:
            nf = _get_num_frequencies_nyquist(min(sidelength[0], sidelength[1]))
        return nf
    elif in_features == 1:
        assert fn_samples is not None
        nf = 4
        if use_nyquist:
            nf = _get_num_frequencies_nyquist(fn_samples)
        return nf
    else:
        raise ValueError("unsupported in_features")


def _pos_enc_kernel(x_ref, o_ref, *, in_features, num_frequencies):
    """x_ref: (C, TN) f32.  o_ref: (C + 2*C*F, TN), rows grouped [coords|sin|cos]."""
    c = in_features
    f = num_frequencies
    coords = x_ref[...]                                   # (C, TN) float32

    # Dense angle block: row i*C + j  =  (2^i * pi) * c_j  ->  (F*C, TN).
    # F cheap VPU multiplies on (C, TN) + one sublane concat; the expensive
    # transcendental path below then runs at full sublane occupancy.
    ang = jnp.concatenate(
        [coords * jnp.float32((2.0 ** i) * math.pi) for i in range(f)], axis=0)

    s = jnp.sin(ang)                                      # ONE sin over (F*C, TN)
    co = jnp.cos(ang)                                     # ONE cos over (F*C, TN)

    # Compose the whole tile and emit a single aligned full-block store.
    o_ref[...] = jnp.concatenate([coords, s, co], axis=0).astype(o_ref.dtype)


@functools.partial(
    jax.jit,
    static_argnames=("in_features", "sidelength", "fn_samples", "use_nyquist",
                     "tile_n", "min_grid_steps", "out_dtype"))
def pos_encoding_nerf(coords, in_features, sidelength=None, fn_samples=None,
                      use_nyquist=True, tile_n=16384, min_grid_steps=2,
                      out_dtype=jnp.float32):
    """Pallas implementation of PosEncodingNeRF.forward.

    coords: (B, ...) whose flattened trailing dims are a multiple of in_features.
    Returns (B, N, out_dim) in `out_dtype` (default float32, matching PyTorch order).
    """
    num_freq = num_frequencies_for(in_features, sidelength, fn_samples, use_nyquist)
    c = in_features
    out_dim = c + 2 * c * num_freq

    b = coords.shape[0]
    coords = coords.reshape(b, -1, c).astype(jnp.float32)
    n = coords.shape[1]
    p = b * n

    # Points on the lane axis: (C, P).
    coords_t = coords.reshape(p, c).T

    # Tiling: pad P only up to a multiple of 128; derive TN from P so padding
    # waste stays < n_steps*128 points; keep >= min_grid_steps grid steps when
    # the input is large enough (v7x has 2 TensorCores).
    tile_n = max(128, min(int(tile_n), 32768))
    p128 = _round_up(p, 128)
    n_steps = _cdiv(p128, _round_up(tile_n, 128))
    if p128 >= min_grid_steps * 128:
        n_steps = max(n_steps, min_grid_steps)
    n_steps = max(n_steps, 1)
    tn = _round_up(_cdiv(p128, n_steps), 128)
    p_pad = n_steps * tn
    if p_pad != p:
        coords_t = jnp.pad(coords_t, ((0, 0), (0, p_pad - p)))

    # Double-buffered in + out tile footprint, with headroom (relevant when
    # tile_n is raised on v5e, whose default scoped VMEM is 16 MiB).
    out_itemsize = np.dtype(out_dtype).itemsize
    vmem_need = 2 * tn * (c * 4 + out_dim * out_itemsize)
    vmem_limit = int(min(48 * 2 ** 20, max(2 * vmem_need, 16 * 2 ** 20)))

    kernel = functools.partial(_pos_enc_kernel,
                               in_features=c, num_frequencies=num_freq)

    out_grouped = pl.pallas_call(
        kernel,
        out_shape=jax.ShapeDtypeStruct((out_dim, p_pad), out_dtype),
        grid_spec=pltpu.PrefetchScalarGridSpec(
            num_scalar_prefetch=0,
            grid=(n_steps,),
            in_specs=[pl.BlockSpec((c, tn), lambda i: (0, i))],
            out_specs=pl.BlockSpec((out_dim, tn), lambda i: (0, i)),
        ),
        compiler_params=pltpu.CompilerParams(
            dimension_semantics=("parallel",),
            vmem_limit_bytes=vmem_limit),
    )(coords_t)

    if p_pad != p:
        out_grouped = out_grouped[:, :p]

    # Static row permutation: grouped [coords | sin-block | cos-block] ->
    # PyTorch interleaved [c_0..c_{C-1}, sin(f0 c0), cos(f0 c0), sin(f0 c1), ...].
    # The wrapper is jitted, so XLA fuses this gather with the transpose/reshape
    # back to (B, N, out_dim) — a single pass over the result, not two.
    perm = list(range(c))
    for i in range(num_freq):
        for j in range(c):
            perm.append(c + i * c + j)                     # sin row
            perm.append(c + num_freq * c + i * c + j)      # cos row
    perm = np.asarray(perm, dtype=np.int32)

    out = jnp.take(out_grouped, perm, axis=0).T
    return out.reshape(b, n, out_dim)
    # Note: downstream MLPs can consume the kernel-native (out_dim, P) grouped
    # layout directly (skip take/.T) to avoid the extra HBM pass entirely.


def pos_encoding_nerf_ref(coords, in_features, sidelength=None, fn_samples=None,
                          use_nyquist=True):
    """Pure-JAX reference mirroring the PyTorch loop exactly."""
    num_freq = num_frequencies_for(in_features, sidelength, fn_samples, use_nyquist)
    b = coords.shape[0]
    coords = coords.reshape(b, -1, in_features).astype(jnp.float32)
    enc = coords
    for i in range(num_freq):
        for j in range(in_features):
            c = coords[..., j]
            s = jnp.sin((2.0 ** i) * math.pi * c)[..., None]
            co = jnp.cos((2.0 ** i) * math.pi * c)[..., None]
            enc = jnp.concatenate((enc, s, co), axis=-1)
    out_dim = in_features + 2 * in_features * num_freq
    return enc.reshape(b, -1, out_dim)


if __name__ == "__main__":
    key = jax.random.PRNGKey(0)

    # Case 1: in_features = 3 -> F = 10, out_dim = 63.
    # P = 2000 exercises lane padding; tile_n=512 forces a multi-tile grid.
    B, N, C = 2, 1000, 3
    coords = jax.random.uniform(key, (B, N, C), dtype=jnp.float32,
                                minval=-1.0, maxval=1.0)
    out = pos_encoding_nerf(coords, in_features=C, tile_n=512)
    out = jax.block_until_ready(out)
    ref = pos_encoding_nerf_ref(coords, in_features=C)
    assert out.shape == (B, N, 3 + 2 * 3 * 10)
    assert jnp.allclose(out, ref, atol=1e-5, rtol=1e-5), "mismatch vs reference (C=3)"

    # Case 2: in_features = 2 with sidelength (Nyquist) -> F = 4, out_dim = 18.
    # Default tile sizing path (>= 2 grid steps).
    B2, N2, C2 = 2, 512, 2
    coords2 = jax.random.uniform(jax.random.PRNGKey(1), (B2, N2, C2),
                                 dtype=jnp.float32, minval=-1.0, maxval=1.0)
    out2 = pos_encoding_nerf(coords2, in_features=C2, sidelength=64)
    out2 = jax.block_until_ready(out2)
    ref2 = pos_encoding_nerf_ref(coords2, in_features=C2, sidelength=64)
    assert out2.shape == (B2, N2, 2 + 2 * 2 * 4)
    assert jnp.allclose(out2, ref2, atol=1e-5, rtol=1e-5), "mismatch vs reference (C=2)"

    print("KERNEL_OK")
</pallas_src>

<mosaic_0001>
module attributes {stable_mosaic.version = 11 : i64} {
  func.func @_pos_enc_kernel(%arg0: i32, %arg1: memref<3x512xf32, #tpu.memory_space<vmem>>, %arg2: memref<63x512xf32, #tpu.memory_space<vmem>>) attributes {dimension_semantics = [#tpu.dimension_semantics<parallel>], iteration_bounds = array<i64: 4>, scalar_prefetch = 0 : i64, scratch_operands = 0 : i64, tpu.core_type = #tpu.core_type<tc>, window_params = [{transform_indices = @transform_0, window_bounds = array<i64: 3, 512>}, {transform_indices = @transform_1, window_bounds = array<i64: 63, 512>}]} {
    %c0 = arith.constant 0 : index
    %c0_0 = arith.constant 0 : index
    %0 = vector.load %arg1[%c0, %c0_0] : memref<3x512xf32, #tpu.memory_space<vmem>>, vector<3x512xf32>
    %cst = arith.constant 3.14159274 : f32
    %1 = vector.broadcast %cst : f32 to vector<3x512xf32>
    %2 = arith.mulf %0, %1 : vector<3x512xf32>
    %cst_1 = arith.constant 6.28318548 : f32
    %3 = vector.broadcast %cst_1 : f32 to vector<3x512xf32>
    %4 = arith.mulf %0, %3 : vector<3x512xf32>
    %cst_2 = arith.constant 12.566371 : f32
    %5 = vector.broadcast %cst_2 : f32 to vector<3x512xf32>
    %6 = arith.mulf %0, %5 : vector<3x512xf32>
    %cst_3 = arith.constant 25.1327419 : f32
    %7 = vector.broadcast %cst_3 : f32 to vector<3x512xf32>
    %8 = arith.mulf %0, %7 : vector<3x512xf32>
    %cst_4 = arith.constant 50.2654839 : f32
    %9 = vector.broadcast %cst_4 : f32 to vector<3x512xf32>
    %10 = arith.mulf %0, %9 : vector<3x512xf32>
    %cst_5 = arith.constant 100.530968 : f32
    %11 = vector.broadcast %cst_5 : f32 to vector<3x512xf32>
    %12 = arith.mulf %0, %11 : vector<3x512xf32>
    %cst_6 = arith.constant 201.061935 : f32
    %13 = vector.broadcast %cst_6 : f32 to vector<3x512xf32>
    %14 = arith.mulf %0, %13 : vector<3x512xf32>
    %cst_7 = arith.constant 402.123871 : f32
    %15 = vector.broadcast %cst_7 : f32 to vector<3x512xf32>
    %16 = arith.mulf %0, %15 : vector<3x512xf32>
    %cst_8 = arith.constant 804.247741 : f32
    %17 = vector.broadcast %cst_8 : f32 to vector<3x512xf32>
    %18 = arith.mulf %0, %17 : vector<3x512xf32>
    %cst_9 = arith.constant 1608.49548 : f32
    %19 = vector.broadcast %cst_9 : f32 to vector<3x512xf32>
    %20 = arith.mulf %0, %19 : vector<3x512xf32>
    %21 = tpu.concatenate %2, %4, %6, %8, %10, %12, %14, %16, %18, %20 in 0 : vector<3x512xf32>, vector<3x512xf32>, vector<3x512xf32>, vector<3x512xf32>, vector<3x512xf32>, vector<3x512xf32>, vector<3x512xf32>, vector<3x512xf32>, vector<3x512xf32>, vector<3x512xf32> -> vector<30x512xf32>
    %22 = math.sin %21 : vector<30x512xf32>
    %23 = math.cos %21 : vector<30x512xf32>
    %24 = tpu.concatenate %0, %22, %23 in 0 : vector<3x512xf32>, vector<30x512xf32>, vector<30x512xf32> -> vector<63x512xf32>
    %c0_10 = arith.constant 0 : index
    %c0_11 = arith.constant 0 : index
    %25 = vector.load %arg2[%c0_10, %c0_11] : memref<63x512xf32, #tpu.memory_space<vmem>>, vector<63x512xf32>
    tpu.vector_store %arg2[%c0_10, %c0_11], %24 {strides = array<i32>} : memref<63x512xf32, #tpu.memory_space<vmem>>, vector<63x512xf32>,
    return
  }
  func.func @transform_0(%arg0: i32) -> (i32, i32) {
    %c0_i32 = arith.constant 0 : i32
    %c0_i32_0 = arith.constant 0 : i32
    return %c0_i32, %arg0 : i32, i32
  }
  func.func @transform_1(%arg0: i32) -> (i32, i32) {
    %c0_i32 = arith.constant 0 : i32
    %c0_i32_0 = arith.constant 0 : i32
    return %c0_i32, %arg0 : i32, i32
  }
}

</mosaic_0001>

<llo_original>
// kernel: pos_encoding_nerf.1
$region0: #{pos_encoding_nerf.1}
  #allocation0 [shape = 'u32[]', space=smem, size = 0x4, offset = 0x4, fixed_abs, tag = 'smem constant byte address 0x4 - core index']
  #allocation1 [shape = 'u32[72,128]{1,0:T(1,128)}', space=vmem, size = 0x9000, scoped, tag = 'internal scratch']
  %s0 = inlined_call_operand.vmem [shape: f32[3,2048], index: 0, kind: input, shape index: {}]
  %s1 = inlined_call_operand.vmem [shape: f32[63,2048], index: 1, kind: output, shape index: {}]
  %s2 = sld [smem:[#allocation0]]
  $region56: #{pos_encoding_nerf.1} parent=0
    _
  %s4 = ssub.s32 1, %s2
  %s5 = scalar_select 0, %s4, %s2
  $region1: #{pos_encoding_nerf.1} parent=0
    #allocation2 [shape = 'u8[262144]{0}', space=vmem, size = 0x40000, scoped, tag = 'output window, operand 0']
    loop: start=0, step=1, limit=6
    $region2: #{pos_encoding_nerf.1} parent=1 // loop_pre_header
      _
    $region3: #{pos_encoding_nerf.1} parent=1 // loop_header
      %s7 = sphi 0, %s11
      %p8 = scmp.ge.s32.totalorder %s7, 6
      %s17 = sphi 0, %s19
      %s20 = sphi 0, %s17
      %s21 = sphi 0, %s20
      %s37 = sphi 0, %s21
      %s43 = sphi 0, %s45
      %s46 = sphi 0, %s43
      %s47 = sphi 0, %s46
      %s63 = sphi 0, %s47
    $region4: #{pos_encoding_nerf.1} parent=1 // loop_header_branch
      %10 = sbr.rel (%p8) target = $region8
    $region5: #{pos_encoding_nerf.1} parent=1 // loop_body
      %s12 = ssub.s32 %s7, 1
      %s13 = ssub.s32 %s7, 2
      %s14 = sadd.s32 %s7, 1
      %s15 = ssub.s32 %s7, %s14
      %p16 = scmp.eq.s32.totalorder %s15, 0
      %s18 = sadd.s32 %s17, 1
      %s19 = scalar_select %p16, %s17, %s18
      %p22 = pneg %p16
      %p23 = scmp.eq.s32.totalorder %s7, 3
      %p24 = por %p22, %p23
      %p25 = scmp.ne.s32.totalorder %s17, %s20
      %p26 = scmp.eq.s32.totalorder %s7, 0
      %p27 = por %p25, %p26
      %p28 = scmp.ne.s32.totalorder %s17, %s20
      %p29 = scmp.eq.s32.totalorder %s12, 3
      %p30 = por %p28, %p29
      %p31 = scmp.ne.s32.totalorder %s20, %s21
      %p32 = scmp.eq.s32.totalorder %s12, 0
      %p33 = por %p31, %p32
      %p34 = scmp.ne.s32.totalorder %s20, %s21
      %p35 = scmp.eq.s32.totalorder %s13, 3
      %p36 = por %p34, %p35
      %p38 = scmp.ne.s32.totalorder %s21, %s37
      %p39 = scmp.eq.s32.totalorder %s13, 0
      %p40 = por %p38, %p39
      %s41 = ssub.s32 %s7, %s14
      %p42 = scmp.eq.s32.totalorder %s41, 0
      %s44 = sadd.s32 %s43, 1
      %s45 = scalar_select %p42, %s43, %s44
      %p48 = pneg %p42
      %p49 = scmp.eq.s32.totalorder %s7, 3
      %p50 = por %p48, %p49
      %p51 = scmp.ne.s32.totalorder %s43, %s46
      %p52 = scmp.eq.s32.totalorder %s7, 0
      %p53 = por %p51, %p52
      %p54 = scmp.ne.s32.totalorder %s43, %s46
      %p55 = scmp.eq.s32.totalorder %s12, 3
      %p56 = por %p54, %p55
      %p57 = scmp.ne.s32.totalorder %s46, %s47
      %p58 = scmp.eq.s32.totalorder %s12, 0
      %p59 = por %p57, %p58
      %p60 = scmp.ne.s32.totalorder %s46, %s47
      %p61 = scmp.eq.s32.totalorder %s13, 3
      %p62 = por %p60, %p61
      %p64 = scmp.ne.s32.totalorder %s47, %s63
      %p65 = scmp.eq.s32.totalorder %s13, 0
      %p66 = por %p64, %p65
      %p67 = scmp.le.s32.totalorder 1, %s7
      %p68 = scmp.lt.s32.totalorder %s7, 5
      %p69 = pnand %p67, %p68
      %p70 = pneg %p69
      // Predicated region
      $region9: #{pos_encoding_nerf.1} parent=5 // pred_check
        _
      $region10: #{pos_encoding_nerf.1} parent=5 // pred_check_branch
        %72 = sbr.rel (%p69) target = $region12
      $region11: #{pos_encoding_nerf.1} parent=5 // pred_region
        %s73 = ssub.s32 %s7, 1
      $region12: #{pos_encoding_nerf.1} parent=5 // pred_fallthru
        _
      %p74 = scmp.lt.s32.totalorder %s7, 4
      // Predicated region
      $region13: #{pos_encoding_nerf.1} parent=5 // pred_check
        %p75 = pneg %p74
      $region14: #{pos_encoding_nerf.1} parent=5 // pred_check_branch
        %77 = sbr.rel (%p75) target = $region16
      $region15: #{pos_encoding_nerf.1} parent=5 // pred_region
        // Predicated region
        $region17: #{pos_encoding_nerf.1} parent=15 // pred_check
          %p78 = pneg %p27
        $region18: #{pos_encoding_nerf.1} parent=15 // pred_check_branch
          %80 = sbr.rel (%p78) target = $region20
        $region19: #{pos_encoding_nerf.1} parent=15 // pred_region
          %s81 = smul.u32 4, %s7
          %p82 = scmp.lt.s32.totalorder %s81, 15
          %s83 = scalar_select %p82, %s81, 15
          %s84 = smul.addr %s83, 4
          %s85 = scalar_lea.vmem %s0, %s84
          %s86 = smul.u32 4, %s7
        $region20: #{pos_encoding_nerf.1} parent=15 // pred_fallthru
          _
      $region16: #{pos_encoding_nerf.1} parent=5 // pred_fallthru
        _
      %p87 = scmp.le.s32.totalorder 1, %s7
      %p88 = scmp.lt.s32.totalorder %s7, 5
      %p89 = pnand %p87, %p88
      %p90 = pneg %p89
      // Predicated region
      $region21: #{pos_encoding_nerf.1} parent=5 // pred_check
        _
      $region22: #{pos_encoding_nerf.1} parent=5 // pred_check_branch
        %92 = sbr.rel (%p89) target = $region24
      $region23: #{pos_encoding_nerf.1} parent=5 // pred_region
        %s93 = ssub.s32 %s7, 1
        %s94 = smul.u32 4, %s12
        %p95 = scmp.lt.s32.totalorder %s94, 15
        %s96 = scalar_select %p95, %s94, 15
        %s97 = smul.addr %s96, 4
        %s98 = scalar_lea.vmem %s0, %s97
        %p99 = pneg %p33
        %p100 = pneg %p30
        %p101 = pneg %p59
        %p102 = pneg %p56
        %s103 = sand.u32 %s46, 1
        %s104 = sand.u32 %s46, 1
        %s105 = smul.addr %s104, 256
        %s106 = scalar_lea.vmem [#allocation2], %s105
        %s107 = smul.u32 4, %s12
        %p108 = scmp.lt.s32.totalorder %s107, 15
        %s109 = scalar_select %p108, %s107, 15
        %s110 = smul.addr %s109, 4
        %s111 = scalar_lea.vmem %s0, %s110
        %s112 = smul.u32 4, %s12
        %s113 = smul.u32 4, %s12
        %v114 = vld [vmem:[%s111] sm:$0x77]
        %v115 = vld [vmem:[%s111 + $0x8] sm:$0x77]
        %v116 = vmul.f32 %v114, 3.1415927
        %v117 = vmul.f32 %v115, 3.1415927
        %v118 = vmul.f32 %v114, 6.2831855
        %v119 = vmul.f32 %v115, 6.2831855
        %v120 = vmul.f32 %v114, 12.566371
        %v121 = vmul.f32 %v115, 12.566371
        %v122 = vmul.f32 %v114, 25.132742
        %v123 = vmul.f32 %v115, 25.132742
        %v124 = vmul.f32 %v114, 50.265484
        %v125 = vmul.f32 %v115, 50.265484
        %v126 = vmul.f32 %v114, 100.53097
        %v127 = vmul.f32 %v115, 100.53097
        %v128 = vmul.f32 %v114, 201.06194
        %v129 = vmul.f32 %v115, 201.06194
        %v130 = vmul.f32 %v114, 402.12387
        %v131 = vmul.f32 %v115, 402.12387
        %v132 = vmul.f32 %v114, 804.24774
        %v133 = vmul.f32 %v115, 804.24774
        %v134 = vmul.f32 %v114, 1608.4955
        %v135 = vmul.f32 %v115, 1608.4955
        %138 = vst [vmem:[#allocation1] ss:$2 sm:$0xff] %v116
        %s139 = scalar_lea.vmem [#allocation1], 16
        %140 = vst [vmem:[%s139] ss:$2 sm:$0xff] %v117
        %v141 = vld.sshfl [vmem:[#allocation1] sm:$0xff pattern:$0x75316420]
        %v142 = vld.sshfl [vmem:[#allocation1 + $0x8] sm:$0xff pattern:$0x75316420]
        %v143 = vld.sshfl [vmem:[#allocation1 + $0x10] sm:$0xff pattern:$0x75316420]
        %v144 = vld.sshfl [vmem:[#allocation1 + $0x18] sm:$0xff pattern:$0x75316420]
        %151 = vst [vmem:[#allocation1] ss:$2 sm:$0xff] %v118
        %s152 = scalar_lea.vmem [#allocation1], 16
        %153 = vst [vmem:[%s152] ss:$2 sm:$0xff] %v119
        %v154 = vld.sshfl [vmem:[#allocation1] sm:$0xff pattern:$0x75316420]
        %v155 = vld.sshfl [vmem:[#allocation1 + $0x8] sm:$0xff pattern:$0x75316420]
        %v156 = vld.sshfl [vmem:[#allocation1 + $0x10] sm:$0xff pattern:$0x75316420]
        %v157 = vld.sshfl [vmem:[#allocation1 + $0x18] sm:$0xff pattern:$0x75316420]
        %v158 = vrot.slane %v154, 5
        %v159 = vrot.slane %v155, 5
        %v160 = vrot.slane %v156, 5
        %v161 = vrot.slane %v157, 5
        %168 = vst [vmem:[#allocation1] ss:$2 sm:$0xff] %v120
        %s169 = scalar_lea.vmem [#allocation1], 16
        %170 = vst [vmem:[%s169] ss:$2 sm:$0xff] %v121
        %v171 = vld.sshfl [vmem:[#allocation1] sm:$0xff pattern:$0x75316420]
        %v172 = vld.sshfl [vmem:[#allocation1 + $0x8] sm:$0xff pattern:$0x75316420]
        %v173 = vld.sshfl [vmem:[#allocation1 + $0x10] sm:$0xff pattern:$0x75316420]
        %v174 = vld.sshfl [vmem:[#allocation1 + $0x18] sm:$0xff pattern:$0x75316420]
        %v175 = vrot.slane %v171, 2
        %v176 = vrot.slane %v172, 2
        %v177 = vrot.slane %v173, 2
        %v178 = vrot.slane %v174, 2
        %185 = vst [vmem:[#allocation1] ss:$2 sm:$0xff] %v122
        %s186 = scalar_lea.vmem [#allocation1], 16
        %187 = vst [vmem:[%s186] ss:$2 sm:$0xff] %v123
        %v188 = vld.sshfl [vmem:[#allocation1] sm:$0xff pattern:$0x75316420]
        %v189 = vld.sshfl [vmem:[#allocation1 + $0x8] sm:$0xff pattern:$0x75316420]
        %v190 = vld.sshfl [vmem:[#allocation1 + $0x10] sm:$0xff pattern:$0x75316420]
        %v191 = vld.sshfl [vmem:[#allocation1 + $0x18] sm:$0xff pattern:$0x75316420]
        %v192 = vrot.slane %v188, 7
        %v193 = vrot.slane %v189, 7
        %v194 = vrot.slane %v190, 7
        %v195 = vrot.slane %v191, 7
        %s202 = scalar_lea.vmem [#allocation1], 1
        %203 = vst [vmem:[%s202] ss:$2 sm:$0xff] %v124
        %s204 = scalar_lea.vmem [#allocation1], 17
        %205 = vst [vmem:[%s204] ss:$2 sm:$0xff] %v125
        %v206 = vld.sshfl [vmem:[#allocation1] sm:$0xff pattern:$0x75316420]
        %v207 = vld.sshfl [vmem:[#allocation1 + $0x8] sm:$0xff pattern:$0x75316420]
        %v208 = vld.sshfl [vmem:[#allocation1 + $0x10] sm:$0xff pattern:$0x75316420]
        %v209 = vld.sshfl [vmem:[#allocation1 + $0x18] sm:$0xff pattern:$0x75316420]
        %216 = vst [vmem:[#allocation1] ss:$2 sm:$0xff] %v126
        %s217 = scalar_lea.vmem [#allocation1], 16
        %218 = vst [vmem:[%s217] ss:$2 sm:$0xff] %v127
        %v219 = vld.sshfl [vmem:[#allocation1] sm:$0xff pattern:$0x75316420]
        %v220 = vld.sshfl [vmem:[#allocation1 + $0x8] sm:$0xff pattern:$0x75316420]
        %v221 = vld.sshfl [vmem:[#allocation1 + $0x10] sm:$0xff pattern:$0x75316420]
        %v222 = vld.sshfl [vmem:[#allocation1 + $0x18] sm:$0xff pattern:$0x75316420]
        %v223 = vrot.slane %v219, 1
        %v224 = vrot.slane %v220, 1
        %v225 = vrot.slane %v221, 1
        %v226 = vrot.slane %v222, 1
        %233 = vst [vmem:[#allocation1] ss:$2 sm:$0xff] %v128
        %s234 = scalar_lea.vmem [#allocation1], 16
        %235 = vst [vmem:[%s234] ss:$2 sm:$0xff] %v129
        %v236 = vld.sshfl [vmem:[#allocation1] sm:$0xff pattern:$0x75316420]
        %v237 = vld.sshfl [vmem:[#allocation1 + $0x8] sm:$0xff pattern:$0x75316420]
        %v238 = vld.sshfl [vmem:[#allocation1 + $0x10] sm:$0xff pattern:$0x75316420]
        %v239 = vld.sshfl [vmem:[#allocation1 + $0x18] sm:$0xff pattern:$0x75316420]
        %v240 = vrot.slane %v236, 6
        %v241 = vrot.slane %v237, 6
        %v242 = vrot.slane %v238, 6
        %v243 = vrot.slane %v239, 6
        %250 = vst [vmem:[#allocation1] ss:$2 sm:$0xff] %v130
        %s251 = scalar_lea.vmem [#allocation1], 16
        %252 = vst [vmem:[%s251] ss:$2 sm:$0xff] %v131
        %v253 = vld.sshfl [vmem:[#allocation1] sm:$0xff pattern:$0x75316420]
        %v254 = vld.sshfl [vmem:[#allocation1 + $0x8] sm:$0xff pattern:$0x75316420]
        %v255 = vld.sshfl [vmem:[#allocation1 + $0x10] sm:$0xff pattern:$0x75316420]
        %v256 = vld.sshfl [vmem:[#allocation1 + $0x18] sm:$0xff pattern:$0x75316420]
        %v257 = vrot.slane %v253, 3
        %v258 = vrot.slane %v254, 3
        %v259 = vrot.slane %v255, 3
        %v260 = vrot.slane %v256, 3
        %267 = vst [vmem:[#allocation1] ss:$2 sm:$0xff] %v132
        %s268 = scalar_lea.vmem [#allocation1], 16
        %269 = vst [vmem:[%s268] ss:$2 sm:$0xff] %v133
        %v270 = vld.sshfl [vmem:[#allocation1] sm:$0xff pattern:$0x75316420]
        %v271 = vld.sshfl [vmem:[#allocation1 + $0x8] sm:$0xff pattern:$0x75316420]
        %v272 = vld.sshfl [vmem:[#allocation1 + $0x10] sm:$0xff pattern:$0x75316420]
        %v273 = vld.sshfl [vmem:[#allocation1 + $0x18] sm:$0xff pattern:$0x75316420]
        %280 = vst [vmem:[#allocation1] ss:$2 sm:$0xff] %v134
        %s281 = scalar_lea.vmem [#allocation1], 16
        %282 = vst [vmem:[%s281] ss:$2 sm:$0xff] %v135
        %v283 = vld.sshfl [vmem:[#allocation1] sm:$0xff pattern:$0x75316420]
        %v284 = vld.sshfl [vmem:[#allocation1 + $0x8] sm:$0xff pattern:$0x75316420]
        %v285 = vld.sshfl [vmem:[#allocation1 + $0x10] sm:$0xff pattern:$0x75316420]
        %v286 = vld.sshfl [vmem:[#allocation1 + $0x18] sm:$0xff pattern:$0x75316420]
        %v287 = vrot.slane %v283, 5
        %v288 = vrot.slane %v284, 5
        %v289 = vrot.slane %v285, 5
        %v290 = vrot.slane %v286, 5
        %vm295 = vcmask 1042432
        %v296 = vsel %vm295, %v141, %v158
        %v297 = vsel %vm295, %v142, %v159
        %v298 = vsel %vm295, %v143, %v160
        %v299 = vsel %vm295, %v144, %v161
        %vm300 = vcmask 1045504
        %v301 = vsel %vm300, %v296, %v175
        %v302 = vsel %vm300, %v297, %v176
        %v303 = vsel %vm300, %v298, %v177
        %v304 = vsel %vm300, %v299, %v178
        %vm305 = vcmask 1040384
        %v306 = vsel %vm305, %v175, %v192
        %v307 = vsel %vm305, %v176, %v193
        %v308 = vsel %vm305, %v177, %v194
        %v309 = vsel %vm305, %v178, %v195
        %vm310 = vcmask 1043456
        %v311 = vsel %vm310, %v306, %v206
        %v312 = vsel %vm310, %v307, %v207
        %v313 = vsel %vm310, %v308, %v208
        %v314 = vsel %vm310, %v309, %v209
        %vm315 = vcmask 1046528
        %v316 = vsel %vm315, %v311, %v223
        %v317 = vsel %vm315, %v312, %v224
        %v318 = vsel %vm315, %v313, %v225
        %v319 = vsel %vm315, %v314, %v226
        %vm320 = vcmask 1041408
        %v321 = vsel %vm320, %v223, %v240
        %v322 = vsel %vm320, %v224, %v241
        %v323 = vsel %vm320, %v225, %v242
        %v324 = vsel %vm320, %v226, %v243
        %vm325 = vcmask 1044480
        %v326 = vsel %vm325, %v321, %v257
        %v327 = vsel %vm325, %v322, %v258
        %v328 = vsel %vm325, %v323, %v259
        %v329 = vsel %vm325, %v324, %v260
        %v330 = vsel %vm295, %v270, %v287
        %v331 = vsel %vm295, %v271, %v288
        %v332 = vsel %vm295, %v272, %v289
        %v333 = vsel %vm295, %v273, %v290
        %v334 = vand.u32 2147483647, %v301
        %vm335 = vcmp.le.f32.partialorder %v334, 0.7853982
        %vm336 = vcmp.lt.s32.totalorder %v301, 0
        %v337 = vand.u32 %v301, 2139095040
        %v338 = vshrl.u32 %v337, 23
        %v339 = vsub.s32 %v338, 127
        %v340 = vand.u32 2147483647, %v301
        %v341 = vand.u32 %v340, 8388607
        %v342 = vor.u32 %v341, 8388608
        %v343 = vsub.s32 0, %v342
        %v344 = vadd.s32 %v339, 1
        %vm345 = vcmp.gt.s32.totalorder %v344, 0
        %v346 = vsel %vm345, %v344, 0
        %v347 = vshrl.u32 %v346, 5
        %v348 = vand.u32 %v346, 31
        %v349 = vsub.s32 32, %v348
        %v350 = vshrl.u32 683565275, %v349
        %v351 = vshll.u32 683565275, %v348
        %v352 = vshrl.u32 2475754826, %v349
        %v353 = vor.u32 %v351, %v352
        %v354 = vshll.u32 2475754826, %v348
        %v355 = vshrl.u32 2131351028, %v349
        %v356 = vor.u32 %v354, %v355
        %v357 = vshll.u32 2131351028, %v348
        %v358 = vshrl.u32 2102212464, %v349
        %v359 = vor.u32 %v357, %v358
        %v360 = vshll.u32 2102212464, %v348
        %v361 = vshrl.u32 920167782, %v349
        %v362 = vor.u32 %v360, %v361
        %v363 = vshll.u32 920167782, %v348
        %v364 = vshrl.u32 1326507024, %v349
        %v365 = vor.u32 %v363, %v364
        %vm366 = vcmp.lt.s32.totalorder %v347, 1
        %vm367 = vcmp.lt.s32.totalorder %v347, 2
        %vm368 = vcmp.lt.s32.totalorder %v347, 3
        %vm369 = vcmp.lt.s32.totalorder %v347, 4
        %v370 = vsel %vm366, %v350, %v353
        %v371 = vsel %vm369, %v359, 2102212464
        %v372 = vsel %vm368, %v356, %v371
        %v373 = vsel %vm367, %v370, %v372
        %v374 = vsel %vm366, %v353, %v356
        %v375 = vsel %vm369, %v362, 920167782
        %v376 = vsel %vm368, %v359, %v375
        %v377 = vsel %vm367, %v374, %v376
        %v378 = vsel %vm366, %v356, %v359
        %v379 = vsel %vm369, %v365, 1326507024
        %v380 = vsel %vm368, %v362, %v379
        %v381 = vsel %vm367, %v378, %v380
        %v382 = vshll.u32 %v342, 8
        %v383 = vand.u32 %v382, 65535
        %v384 = vshrl.u32 %v382, 16
        %v385 = vand.u32 %v381, 65535
        %v386 = vshrl.u32 %v381, 16
        %v387 = vmul.u32 %v383, %v385
        %v388 = vmul.u32 %v383, %v386
        %v389 = vmul.u32 %v384, %v385
        %v390 = vmul.u32 %v384, %v386
        %v391 = vshll.u32 %v388, 16
        %v392 = vshrl.u32 %v388, 16
        %v393 = vshll.u32 %v389, 16
        %v394 = vshrl.u32 %v389, 16
        %vm395 = vc.u32 %v387, %v391
        %v396 = vsel %vm395, 1, 0
        %v397 = vadd.s32 %v387, %v391
        %v398 = vadd.s32 %v390, %v396
        %vm399 = vc.u32 %v397, %v393
        %v400 = vsel %vm399, 1, 0
        %v401 = vadd.s32 %v397, %v393
        %v402 = vadd.s32 %v398, %v400
        %v403 = vadd.s32 %v402, %v392
        %v404 = vadd.s32 %v403, %v394
        %v405 = vand.u32 %v382, 65535
        %v406 = vshrl.u32 %v382, 16
        %v407 = vand.u32 %v377, 65535
        %v408 = vshrl.u32 %v377, 16
        %v409 = vmul.u32 %v405, %v407
        %v410 = vmul.u32 %v405, %v408
        %v411 = vmul.u32 %v406, %v407
        %v412 = vmul.u32 %v406, %v408
        %v413 = vshll.u32 %v410, 16
        %v414 = vshrl.u32 %v410, 16
        %v415 = vshll.u32 %v411, 16
        %v416 = vshrl.u32 %v411, 16
        %vm417 = vc.u32 %v409, %v413
        %v418 = vsel %vm417, 1, 0
        %v419 = vadd.s32 %v409, %v413
        %v420 = vadd.s32 %v412, %v418
        %vm421 = vc.u32 %v419, %v415
        %v422 = vsel %vm421, 1, 0
        %v423 = vadd.s32 %v419, %v415
        %v424 = vadd.s32 %v420, %v422
        %v425 = vadd.s32 %v424, %v414
        %v426 = vadd.s32 %v425, %v416
        %v427 = vmul.u32 %v382, %v373
        %v428 = vadd.s32 %v404, %v423
        %vm429 = vc.u32 %v404, %v423
        %v430 = vadd.s32 %v426, 1
        %v431 = vsel %vm429, %v430, %v426
        %v432 = vadd.s32 %v427, %v431
        %v433 = vadd.s32 %v432, 536870912
        %v434 = vshrl.u32 %v433, 30
        %v435 = vshll.u32 %v434, 30
        %v436 = vsub.s32 %v432, %v435
        %vm437 = vcmp.lt.s32.totalorder %v436, 0
        %v438 = vsub.s32 0, %v436
        %v439 = vsel %vm437, %v438, %v436
        %v440 = vclz %v439
        %v441 = vsub.s32 %v440, 2
        %vm442 = vcmp.gt.s32.totalorder 0, %v441
        %v443 = vsel %vm442, 0, %v441
        %v444 = vsub.s32 32, %v443
        %v445 = vshll.u32 %v436, %v443
        %v446 = vshrl.u32 %v428, %v444
        %v447 = vor.u32 %v445, %v446
        %v448 = vsub.s32 4294967266, %v443
        %v449 = vadd.s32 %v448, 127
        %v450 = vshll.u32 %v449, 23
        %v451 = vor.u32 4788187, %v450
        %v452 = vand.u32 2147483647, %v451
        %v454 = vcvt.s32.f32 %v447
        %v455 = vmul.f32 %v454, %v452
        %v456 = vxor.u32 %v455, 2147483648
        %v457 = vsel %vm336, %v456, %v455
        %v458 = vsub.s32 4, %v434
        %v459 = vsel %vm336, %v458, %v434
        %v460 = vsel %vm335, %v301, %v457
        %v461 = vsel %vm335, 0, %v459
        %v462 = vmul.f32 %v460, %v460
        %v463 = vmul.f32 %v462, -0.001358992
        %v464 = vadd.f32 %v463, 0.041655596
        %v465 = vmul.f32 %v462, %v464
        %v466 = vadd.f32 %v465, -0.4999988
        %v467 = vmul.f32 %v462, %v466
        %v468 = vadd.f32 1.0, %v467
        %v469 = vmul.f32 %v460, %v460
        %v470 = vmul.f32 %v469, -0.00019511016
        %v471 = vadd.f32 %v470, 0.008332121
        %v472 = vmul.f32 %v469, %v471
        %v473 = vadd.f32 %v472, -0.16666654
        %v474 = vmul.f32 %v469, %v473
        %v475 = vadd.f32 %v474, 1.0
        %v476 = vmul.f32 %v475, %v460
        %vm477 = vweird.f32 %v301
        %v478 = vadd.s32 %v461, 3
        %v479 = vand.u32 %v478, 3
        %vm480 = vcmp.lt.s32.totalorder %v479, 2
        %vm481 = vcmp.eq.s32.totalorder %v479, 0
        %v482 = vxor.u32 %v476, 2147483648
        %v483 = vsel %vm481, %v468, %v482
        %vm484 = vcmp.eq.s32.totalorder %v479, 2
        %v485 = vxor.u32 %v468, 2147483648
        %v486 = vsel %vm484, %v485, %v476
        %v487 = vsel %vm480, %v483, %v486
        %v488 = vsel %vm477, nan, %v487
        %v489 = vand.u32 2147483647, %v302
        %vm490 = vcmp.le.f32.partialorder %v489, 0.7853982
        %vm491 = vcmp.lt.s32.totalorder %v302, 0
        %v492 = vand.u32 %v302, 2139095040
        %v493 = vshrl.u32 %v492, 23
        %v494 = vsub.s32 %v493, 127
        %v495 = vand.u32 2147483647, %v302
        %v496 = vand.u32 %v495, 8388607
        %v497 = vor.u32 %v496, 8388608
        %v498 = vsub.s32 0, %v497
        %v499 = vadd.s32 %v494, 1
        %vm500 = vcmp.gt.s32.totalorder %v499, 0
        %v501 = vsel %vm500, %v499, 0
        %v502 = vshrl.u32 %v501, 5
        %v503 = vand.u32 %v501, 31
        %v504 = vsub.s32 32, %v503
        %v505 = vshrl.u32 683565275, %v504
        %v506 = vshll.u32 683565275, %v503
        %v507 = vshrl.u32 2475754826, %v504
        %v508 = vor.u32 %v506, %v507
        %v509 = vshll.u32 2475754826, %v503
        %v510 = vshrl.u32 2131351028, %v504
        %v511 = vor.u32 %v509, %v510
        %v512 = vshll.u32 2131351028, %v503
        %v513 = vshrl.u32 2102212464, %v504
        %v514 = vor.u32 %v512, %v513
        %v515 = vshll.u32 2102212464, %v503
        %v516 = vshrl.u32 920167782, %v504
        %v517 = vor.u32 %v515, %v516
        %v518 = vshll.u32 920167782, %v503
        %v519 = vshrl.u32 1326507024, %v504
        %v520 = vor.u32 %v518, %v519
        %vm521 = vcmp.lt.s32.totalorder %v502, 1
        %vm522 = vcmp.lt.s32.totalorder %v502, 2
        %vm523 = vcmp.lt.s32.totalorder %v502, 3
        %vm524 = vcmp.lt.s32.totalorder %v502, 4
        %v525 = vsel %vm521, %v505, %v508
        %v526 = vsel %vm524, %v514, 2102212464
        %v527 = vsel %vm523, %v511, %v526
        %v528 = vsel %vm522, %v525, %v527
        %v529 = vsel %vm521, %v508, %v511
        %v530 = vsel %vm524, %v517, 920167782
        %v531 = vsel %vm523, %v514, %v530
        %v532 = vsel %vm522, %v529, %v531
        %v533 = vsel %vm521, %v511, %v514
        %v534 = vsel %vm524, %v520, 1326507024
        %v535 = vsel %vm523, %v517, %v534
        %v536 = vsel %vm522, %v533, %v535
        %v537 = vshll.u32 %v497, 8
        %v538 = vand.u32 %v537, 65535
        %v539 = vshrl.u32 %v537, 16
        %v540 = vand.u32 %v536, 65535
        %v541 = vshrl.u32 %v536, 16
        %v542 = vmul.u32 %v538, %v540
        %v543 = vmul.u32 %v538, %v541
        %v544 = vmul.u32 %v539, %v540
        %v545 = vmul.u32 %v539, %v541
        %v546 = vshll.u32 %v543, 16
        %v547 = vshrl.u32 %v543, 16
        %v548 = vshll.u32 %v544, 16
        %v549 = vshrl.u32 %v544, 16
        %vm550 = vc.u32 %v542, %v546
        %v551 = vsel %vm550, 1, 0
        %v552 = vadd.s32 %v542, %v546
        %v553 = vadd.s32 %v545, %v551
        %vm554 = vc.u32 %v552, %v548
        %v555 = vsel %vm554, 1, 0
        %v556 = vadd.s32 %v552, %v548
        %v557 = vadd.s32 %v553, %v555
        %v558 = vadd.s32 %v557, %v547
        %v559 = vadd.s32 %v558, %v549
        %v560 = vand.u32 %v537, 65535
        %v561 = vshrl.u32 %v537, 16
        %v562 = vand.u32 %v532, 65535
        %v563 = vshrl.u32 %v532, 16
        %v564 = vmul.u32 %v560, %v562
        %v565 = vmul.u32 %v560, %v563
        %v566 = vmul.u32 %v561, %v562
        %v567 = vmul.u32 %v561, %v563
        %v568 = vshll.u32 %v565, 16
        %v569 = vshrl.u32 %v565, 16
        %v570 = vshll.u32 %v566, 16
        %v571 = vshrl.u32 %v566, 16
        %vm572 = vc.u32 %v564, %v568
        %v573 = vsel %vm572, 1, 0
        %v574 = vadd.s32 %v564, %v568
        %v575 = vadd.s32 %v567, %v573
        %vm576 = vc.u32 %v574, %v570
        %v577 = vsel %vm576, 1, 0
        %v578 = vadd.s32 %v574, %v570
        %v579 = vadd.s32 %v575, %v577
        %v580 = vadd.s32 %v579, %v569
        %v581 = vadd.s32 %v580, %v571
        %v582 = vmul.u32 %v537, %v528
        %v583 = vadd.s32 %v559, %v578
        %vm584 = vc.u32 %v559, %v578
        %v585 = vadd.s32 %v581, 1
        %v586 = vsel %vm584, %v585, %v581
        %v587 = vadd.s32 %v582, %v586
        %v588 = vadd.s32 %v587, 536870912
        %v589 = vshrl.u32 %v588, 30
        %v590 = vshll.u32 %v589, 30
        %v591 = vsub.s32 %v587, %v590
        %vm592 = vcmp.lt.s32.totalorder %v591, 0
        %v593 = vsub.s32 0, %v591
        %v594 = vsel %vm592, %v593, %v591
        %v595 = vclz %v594
        %v596 = vsub.s32 %v595, 2
        %vm597 = vcmp.gt.s32.totalorder 0, %v596
        %v598 = vsel %vm597, 0, %v596
        %v599 = vsub.s32 32, %v598
        %v600 = vshll.u32 %v591, %v598
        %v601 = vshrl.u32 %v583, %v599
        %v602 = vor.u32 %v600, %v601
        %v603 = vsub.s32 4294967266, %v598
        %v604 = vadd.s32 %v603, 127
        %v605 = vshll.u32 %v604, 23
        %v606 = vor.u32 4788187, %v605
        %v607 = vand.u32 2147483647, %v606
        %v609 = vcvt.s32.f32 %v602
        %v610 = vmul.f32 %v609, %v607
        %v611 = vxor.u32 %v610, 2147483648
        %v612 = vsel %vm491, %v611, %v610
        %v613 = vsub.s32 4, %v589
        %v614 = vsel %vm491, %v613, %v589
        %v615 = vsel %vm490, %v302, %v612
        %v616 = vsel %vm490, 0, %v614
        %v617 = vmul.f32 %v615, %v615
        %v618 = vmul.f32 %v617, -0.001358992
        %v619 = vadd.f32 %v618, 0.041655596
        %v620 = vmul.f32 %v617, %v619
        %v621 = vadd.f32 %v620, -0.4999988
        %v622 = vmul.f32 %v617, %v621
        %v623 = vadd.f32 1.0, %v622
        %v624 = vmul.f32 %v615, %v615
        %v625 = vmul.f32 %v624, -0.00019511016
        %v626 = vadd.f32 %v625, 0.008332121
        %v627 = vmul.f32 %v624, %v626
        %v628 = vadd.f32 %v627, -0.16666654
        %v629 = vmul.f32 %v624, %v628
        %v630 = vadd.f32 %v629, 1.0
        %v631 = vmul.f32 %v630, %v615
        %vm632 = vweird.f32 %v302
        %v633 = vadd.s32 %v616, 3
        %v634 = vand.u32 %v633, 3
        %vm635 = vcmp.lt.s32.totalorder %v634, 2
        %vm636 = vcmp.eq.s32.totalorder %v634, 0
        %v637 = vxor.u32 %v631, 2147483648
        %v638 = vsel %vm636, %v623, %v637
        %vm639 = vcmp.eq.s32.totalorder %v634, 2
        %v640 = vxor.u32 %v623, 2147483648
        %v641 = vsel %vm639, %v640, %v631
        %v642 = vsel %vm635, %v638, %v641
        %v643 = vsel %vm632, nan, %v642
        %v644 = vand.u32 2147483647, %v303
        %vm645 = vcmp.le.f32.partialorder %v644, 0.7853982
        %vm646 = vcmp.lt.s32.totalorder %v303, 0
        %v647 = vand.u32 %v303, 2139095040
        %v648 = vshrl.u32 %v647, 23
        %v649 = vsub.s32 %v648, 127
        %v650 = vand.u32 2147483647, %v303
        %v651 = vand.u32 %v650, 8388607
        %v652 = vor.u32 %v651, 8388608
        %v653 = vsub.s32 0, %v652
        %v654 = vadd.s32 %v649, 1
        %vm655 = vcmp.gt.s32.totalorder %v654, 0
        %v656 = vsel %vm655, %v654, 0
        %v657 = vshrl.u32 %v656, 5
        %v658 = vand.u32 %v656, 31
        %v659 = vsub.s32 32, %v658
        %v660 = vshrl.u32 683565275, %v659
        %v661 = vshll.u32 683565275, %v658
        %v662 = vshrl.u32 2475754826, %v659
        %v663 = vor.u32 %v661, %v662
        %v664 = vshll.u32 2475754826, %v658
        %v665 = vshrl.u32 2131351028, %v659
        %v666 = vor.u32 %v664, %v665
        %v667 = vshll.u32 2131351028, %v658
        %v668 = vshrl.u32 2102212464, %v659
        %v669 = vor.u32 %v667, %v668
        %v670 = vshll.u32 2102212464, %v658
        %v671 = vshrl.u32 920167782, %v659
        %v672 = vor.u32 %v670, %v671
        %v673 = vshll.u32 920167782, %v658
        %v674 = vshrl.u32 1326507024, %v659
        %v675 = vor.u32 %v673, %v674
        %vm676 = vcmp.lt.s32.totalorder %v657, 1
        %vm677 = vcmp.lt.s32.totalorder %v657, 2
        %vm678 = vcmp.lt.s32.totalorder %v657, 3
        %vm679 = vcmp.lt.s32.totalorder %v657, 4
        %v680 = vsel %vm676, %v660, %v663
        %v681 = vsel %vm679, %v669, 2102212464
        %v682 = vsel %vm678, %v666, %v681
        %v683 = vsel %vm677, %v680, %v682
        %v684 = vsel %vm676, %v663, %v666
        %v685 = vsel %vm679, %v672, 920167782
        %v686 = vsel %vm678, %v669, %v685
        %v687 = vsel %vm677, %v684, %v686
        %v688 = vsel %vm676, %v666, %v669
        %v689 = vsel %vm679, %v675, 1326507024
        %v690 = vsel %vm678, %v672, %v689
        %v691 = vsel %vm677, %v688, %v690
        %v692 = vshll.u32 %v652, 8
        %v693 = vand.u32 %v692, 65535
        %v694 = vshrl.u32 %v692, 16
        %v695 = vand.u32 %v691, 65535
        %v696 = vshrl.u32 %v691, 16
        %v697 = vmul.u32 %v693, %v695
        %v698 = vmul.u32 %v693, %v696
        %v699 = vmul.u32 %v694, %v695
        %v700 = vmul.u32 %v694, %v696
        %v701 = vshll.u32 %v698, 16
        %v702 = vshrl.u32 %v698, 16
        %v703 = vshll.u32 %v699, 16
        %v704 = vshrl.u32 %v699, 16
        %vm705 = vc.u32 %v697, %v701
        %v706 = vsel %vm705, 1, 0
        %v707 = vadd.s32 %v697, %v701
        %v708 = vadd.s32 %v700, %v706
        %vm709 = vc.u32 %v707, %v703
        %v710 = vsel %vm709, 1, 0
        %v711 = vadd.s32 %v707, %v703
        %v712 = vadd.s32 %v708, %v710
        %v713 = vadd.s32 %v712, %v702
        %v714 = vadd.s32 %v713, %v704
        %v715 = vand.u32 %v692, 65535
        %v716 = vshrl.u32 %v692, 16
        %v717 = vand.u32 %v687, 65535
        %v718 = vshrl.u32 %v687, 16
        %v719 = vmul.u32 %v715, %v717
        %v720 = vmul.u32 %v715, %v718
        %v721 = vmul.u32 %v716, %v717
        %v722 = vmul.u32 %v716, %v718
        %v723 = vshll.u32 %v720, 16
        %v724 = vshrl.u32 %v720, 16
        %v725 = vshll.u32 %v721, 16
        %v726 = vshrl.u32 %v721, 16
        %vm727 = vc.u32 %v719, %v723
        %v728 = vsel %vm727, 1, 0
        %v729 = vadd.s32 %v719, %v723
        %v730 = vadd.s32 %v722, %v728
        %vm731 = vc.u32 %v729, %v725
        %v732 = vsel %vm731, 1, 0
        %v733 = vadd.s32 %v729, %v725
        %v734 = vadd.s32 %v730, %v732
        %v735 = vadd.s32 %v734, %v724
        %v736 = vadd.s32 %v735, %v726
        %v737 = vmul.u32 %v692, %v683
        %v738 = vadd.s32 %v714, %v733
        %vm739 = vc.u32 %v714, %v733
        %v740 = vadd.s32 %v736, 1
        %v741 = vsel %vm739, %v740, %v736
        %v742 = vadd.s32 %v737, %v741
        %v743 = vadd.s32 %v742, 536870912
        %v744 = vshrl.u32 %v743, 30
        %v745 = vshll.u32 %v744, 30
        %v746 = vsub.s32 %v742, %v745
        %vm747 = vcmp.lt.s32.totalorder %v746, 0
        %v748 = vsub.s32 0, %v746
        %v749 = vsel %vm747, %v748, %v746
        %v750 = vclz %v749
        %v751 = vsub.s32 %v750, 2
        %vm752 = vcmp.gt.s32.totalorder 0, %v751
        %v753 = vsel %vm752, 0, %v751
        %v754 = vsub.s32 32, %v753
        %v755 = vshll.u32 %v746, %v753
        %v756 = vshrl.u32 %v738, %v754
        %v757 = vor.u32 %v755, %v756
        %v758 = vsub.s32 4294967266, %v753
        %v759 = vadd.s32 %v758, 127
        %v760 = vshll.u32 %v759, 23
        %v761 = vor.u32 4788187, %v760
        %v762 = vand.u32 2147483647, %v761
        %v764 = vcvt.s32.f32 %v757
        %v765 = vmul.f32 %v764, %v762
        %v766 = vxor.u32 %v765, 2147483648
        %v767 = vsel %vm646, %v766, %v765
        %v768 = vsub.s32 4, %v744
        %v769 = vsel %vm646, %v768, %v744
        %v770 = vsel %vm645, %v303, %v767
        %v771 = vsel %vm645, 0, %v769
        %v772 = vmul.f32 %v770, %v770
        %v773 = vmul.f32 %v772, -0.001358992
        %v774 = vadd.f32 %v773, 0.041655596
        %v775 = vmul.f32 %v772, %v774
        %v776 = vadd.f32 %v775, -0.4999988
        %v777 = vmul.f32 %v772, %v776
        %v778 = vadd.f32 1.0, %v777
        %v779 = vmul.f32 %v770, %v770
        %v780 = vmul.f32 %v779, -0.00019511016
        %v781 = vadd.f32 %v780, 0.008332121
        %v782 = vmul.f32 %v779, %v781
        %v783 = vadd.f32 %v782, -0.16666654
        %v784 = vmul.f32 %v779, %v783
        %v785 = vadd.f32 %v784, 1.0
        %v786 = vmul.f32 %v785, %v770
        %vm787 = vweird.f32 %v303
        %v788 = vadd.s32 %v771, 3
        %v789 = vand.u32 %v788, 3
        %vm790 = vcmp.lt.s32.totalorder %v789, 2
        %vm791 = vcmp.eq.s32.totalorder %v789, 0
        %v792 = vxor.u32 %v786, 2147483648
        %v793 = vsel %vm791, %v778, %v792
        %vm794 = vcmp.eq.s32.totalorder %v789, 2
        %v795 = vxor.u32 %v778, 2147483648
        %v796 = vsel %vm794, %v795, %v786
        %v797 = vsel %vm790, %v793, %v796
        %v798 = vsel %vm787, nan, %v797
        %v799 = vand.u32 2147483647, %v304
        %vm800 = vcmp.le.f32.partialorder %v799, 0.7853982
        %vm801 = vcmp.lt.s32.totalorder %v304, 0
        %v802 = vand.u32 %v304, 2139095040
        %v803 = vshrl.u32 %v802, 23
        %v804 = vsub.s32 %v803, 127
        %v805 = vand.u32 2147483647, %v304
        %v806 = vand.u32 %v805, 8388607
        %v807 = vor.u32 %v806, 8388608
        %v808 = vsub.s32 0, %v807
        %v809 = vadd.s32 %v804, 1
        %vm810 = vcmp.gt.s32.totalorder %v809, 0
        %v811 = vsel %vm810, %v809, 0
        %v812 = vshrl.u32 %v811, 5
        %v813 = vand.u32 %v811, 31
        %v814 = vsub.s32 32, %v813
        %v815 = vshrl.u32 683565275, %v814
        %v816 = vshll.u32 683565275, %v813
        %v817 = vshrl.u32 2475754826, %v814
        %v818 = vor.u32 %v816, %v817
        %v819 = vshll.u32 2475754826, %v813
        %v820 = vshrl.u32 2131351028, %v814
        %v821 = vor.u32 %v819, %v820
        %v822 = vshll.u32 2131351028, %v813
        %v823 = vshrl.u32 2102212464, %v814
        %v824 = vor.u32 %v822, %v823
        %v825 = vshll.u32 2102212464, %v813
        %v826 = vshrl.u32 920167782, %v814
        %v827 = vor.u32 %v825, %v826
        %v828 = vshll.u32 920167782, %v813
        %v829 = vshrl.u32 1326507024, %v814
        %v830 = vor.u32 %v828, %v829
        %vm831 = vcmp.lt.s32.totalorder %v812, 1
        %vm832 = vcmp.lt.s32.totalorder %v812, 2
        %vm833 = vcmp.lt.s32.totalorder %v812, 3
        %vm834 = vcmp.lt.s32.totalorder %v812, 4
        %v835 = vsel %vm831, %v815, %v818
        %v836 = vsel %vm834, %v824, 2102212464
        %v837 = vsel %vm833, %v821, %v836
        %v838 = vsel %vm832, %v835, %v837
        %v839 = vsel %vm831, %v818, %v821
        %v840 = vsel %vm834, %v827, 920167782
        %v841 = vsel %vm833, %v824, %v840
        %v842 = vsel %vm832, %v839, %v841
        %v843 = vsel %vm831, %v821, %v824
        %v844 = vsel %vm834, %v830, 1326507024
        %v845 = vsel %vm833, %v827, %v844
        %v846 = vsel %vm832, %v843, %v845
        %v847 = vshll.u32 %v807, 8
        %v848 = vand.u32 %v847, 65535
        %v849 = vshrl.u32 %v847, 16
        %v850 = vand.u32 %v846, 65535
        %v851 = vshrl.u32 %v846, 16
        %v852 = vmul.u32 %v848, %v850
        %v853 = vmul.u32 %v848, %v851
        %v854 = vmul.u32 %v849, %v850
        %v855 = vmul.u32 %v849, %v851
        %v856 = vshll.u32 %v853, 16
        %v857 = vshrl.u32 %v853, 16
        %v858 = vshll.u32 %v854, 16
        %v859 = vshrl.u32 %v854, 16
        %vm860 = vc.u32 %v852, %v856
        %v861 = vsel %vm860, 1, 0
        %v862 = vadd.s32 %v852, %v856
        %v863 = vadd.s32 %v855, %v861
        %vm864 = vc.u32 %v862, %v858
        %v865 = vsel %vm864, 1, 0
        %v866 = vadd.s32 %v862, %v858
        %v867 = vadd.s32 %v863, %v865
        %v868 = vadd.s32 %v867, %v857
        %v869 = vadd.s32 %v868, %v859
        %v870 = vand.u32 %v847, 65535
        %v871 = vshrl.u32 %v847, 16
        %v872 = vand.u32 %v842, 65535
        %v873 = vshrl.u32 %v842, 16
        %v874 = vmul.u32 %v870, %v872
        %v875 = vmul.u32 %v870, %v873
        %v876 = vmul.u32 %v871, %v872
        %v877 = vmul.u32 %v871, %v873
        %v878 = vshll.u32 %v875, 16
        %v879 = vshrl.u32 %v875, 16
        %v880 = vshll.u32 %v876, 16
        %v881 = vshrl.u32 %v876, 16
        %vm882 = vc.u32 %v874, %v878
        %v883 = vsel %vm882, 1, 0
        %v884 = vadd.s32 %v874, %v878
        %v885 = vadd.s32 %v877, %v883
        %vm886 = vc.u32 %v884, %v880
        %v887 = vsel %vm886, 1, 0
        %v888 = vadd.s32 %v884, %v880
        %v889 = vadd.s32 %v885, %v887
        %v890 = vadd.s32 %v889, %v879
        %v891 = vadd.s32 %v890, %v881
        %v892 = vmul.u32 %v847, %v838
        %v893 = vadd.s32 %v869, %v888
        %vm894 = vc.u32 %v869, %v888
        %v895 = vadd.s32 %v891, 1
        %v896 = vsel %vm894, %v895, %v891
        %v897 = vadd.s32 %v892, %v896
        %v898 = vadd.s32 %v897, 536870912
        %v899 = vshrl.u32 %v898, 30
        %v900 = vshll.u32 %v899, 30
        %v901 = vsub.s32 %v897, %v900
        %vm902 = vcmp.lt.s32.totalorder %v901, 0
        %v903 = vsub.s32 0, %v901
        %v904 = vsel %vm902, %v903, %v901
        %v905 = vclz %v904
        %v906 = vsub.s32 %v905, 2
        %vm907 = vcmp.gt.s32.totalorder 0, %v906
        %v908 = vsel %vm907, 0, %v906
        %v909 = vsub.s32 32, %v908
        %v910 = vshll.u32 %v901, %v908
        %v911 = vshrl.u32 %v893, %v909
        %v912 = vor.u32 %v910, %v911
        %v913 = vsub.s32 4294967266, %v908
        %v914 = vadd.s32 %v913, 127
        %v915 = vshll.u32 %v914, 23
        %v916 = vor.u32 4788187, %v915
        %v917 = vand.u32 2147483647, %v916
        %v919 = vcvt.s32.f32 %v912
        %v920 = vmul.f32 %v919, %v917
        %v921 = vxor.u32 %v920, 2147483648
        %v922 = vsel %vm801, %v921, %v920
        %v923 = vsub.s32 4, %v899
        %v924 = vsel %vm801, %v923, %v899
        %v925 = vsel %vm800, %v304, %v922
        %v926 = vsel %vm800, 0, %v924
        %v927 = vmul.f32 %v925, %v925
        %v928 = vmul.f32 %v927, -0.001358992
        %v929 = vadd.f32 %v928, 0.041655596
        %v930 = vmul.f32 %v927, %v929
        %v931 = vadd.f32 %v930, -0.4999988
        %v932 = vmul.f32 %v927, %v931
        %v933 = vadd.f32 1.0, %v932
        %v934 = vmul.f32 %v925, %v925
        %v935 = vmul.f32 %v934, -0.00019511016
        %v936 = vadd.f32 %v935, 0.008332121
        %v937 = vmul.f32 %v934, %v936
        %v938 = vadd.f32 %v937, -0.16666654
        %v939 = vmul.f32 %v934, %v938
        %v940 = vadd.f32 %v939, 1.0
        %v941 = vmul.f32 %v940, %v925
        %vm942 = vweird.f32 %v304
        %v943 = vadd.s32 %v926, 3
        %v944 = vand.u32 %v943, 3
        %vm945 = vcmp.lt.s32.totalorder %v944, 2
        %vm946 = vcmp.eq.s32.totalorder %v944, 0
        %v947 = vxor.u32 %v941, 2147483648
        %v948 = vsel %vm946, %v933, %v947
        %vm949 = vcmp.eq.s32.totalorder %v944, 2
        %v950 = vxor.u32 %v933, 2147483648
        %v951 = vsel %vm949, %v950, %v941
        %v952 = vsel %vm945, %v948, %v951
        %v953 = vsel %vm942, nan, %v952
        %v954 = vand.u32 2147483647, %v316
        %vm955 = vcmp.le.f32.partialorder %v954, 0.7853982
        %vm956 = vcmp.lt.s32.totalorder %v316, 0
        %v957 = vand.u32 %v316, 2139095040
        %v958 = vshrl.u32 %v957, 23
        %v959 = vsub.s32 %v958, 127
        %v960 = vand.u32 2147483647, %v316
        %v961 = vand.u32 %v960, 8388607
        %v962 = vor.u32 %v961, 8388608
        %v963 = vsub.s32 0, %v962
        %v964 = vadd.s32 %v959, 1
        %vm965 = vcmp.gt.s32.totalorder %v964, 0
        %v966 = vsel %vm965, %v964, 0
        %v967 = vshrl.u32 %v966, 5
        %v968 = vand.u32 %v966, 31
        %v969 = vsub.s32 32, %v968
        %v970 = vshrl.u32 683565275, %v969
        %v971 = vshll.u32 683565275, %v968
        %v972 = vshrl.u32 2475754826, %v969
        %v973 = vor.u32 %v971, %v972
        %v974 = vshll.u32 2475754826, %v968
        %v975 = vshrl.u32 2131351028, %v969
        %v976 = vor.u32 %v974, %v975
        %v977 = vshll.u32 2131351028, %v968
        %v978 = vshrl.u32 2102212464, %v969
        %v979 = vor.u32 %v977, %v978
        %v980 = vshll.u32 2102212464, %v968
        %v981 = vshrl.u32 920167782, %v969
        %v982 = vor.u32 %v980, %v981
        %v983 = vshll.u32 920167782, %v968
        %v984 = vshrl.u32 1326507024, %v969
        %v985 = vor.u32 %v983, %v984
        %vm986 = vcmp.lt.s32.totalorder %v967, 1
        %vm987 = vcmp.lt.s32.totalorder %v967, 2
        %vm988 = vcmp.lt.s32.totalorder %v967, 3
        %vm989 = vcmp.lt.s32.totalorder %v967, 4
        %v990 = vsel %vm986, %v970, %v973
        %v991 = vsel %vm989, %v979, 2102212464
        %v992 = vsel %vm988, %v976, %v991
        %v993 = vsel %vm987, %v990, %v992
        %v994 = vsel %vm986, %v973, %v976
        %v995 = vsel %vm989, %v982, 920167782
        %v996 = vsel %vm988, %v979, %v995
        %v997 = vsel %vm987, %v994, %v996
        %v998 = vsel %vm986, %v976, %v979
        %v999 = vsel %vm989, %v985, 1326507024
        %v1000 = vsel %vm988, %v982, %v999
        %v1001 = vsel %vm987, %v998, %v1000
        %v1002 = vshll.u32 %v962, 8
        %v1003 = vand.u32 %v1002, 65535
        %v1004 = vshrl.u32 %v1002, 16
        %v1005 = vand.u32 %v1001, 65535
        %v1006 = vshrl.u32 %v1001, 16
        %v1007 = vmul.u32 %v1003, %v1005
        %v1008 = vmul.u32 %v1003, %v1006
        %v1009 = vmul.u32 %v1004, %v1005
        %v1010 = vmul.u32 %v1004, %v1006
        %v1011 = vshll.u32 %v1008, 16
        %v1012 = vshrl.u32 %v1008, 16
        %v1013 = vshll.u32 %v1009, 16
        %v1014 = vshrl.u32 %v1009, 16
        %vm1015 = vc.u32 %v1007, %v1011
        %v1016 = vsel %vm1015, 1, 0
        %v1017 = vadd.s32 %v1007, %v1011
        %v1018 = vadd.s32 %v1010, %v1016
        %vm1019 = vc.u32 %v1017, %v1013
        %v1020 = vsel %vm1019, 1, 0
        %v1021 = vadd.s32 %v1017, %v1013
        %v1022 = vadd.s32 %v1018, %v1020
        %v1023 = vadd.s32 %v1022, %v1012
        %v1024 = vadd.s32 %v1023, %v1014
        %v1025 = vand.u32 %v1002, 65535
        %v1026 = vshrl.u32 %v1002, 16
        %v1027 = vand.u32 %v997, 65535
        %v1028 = vshrl.u32 %v997, 16
        %v1029 = vmul.u32 %v1025, %v1027
        %v1030 = vmul.u32 %v1025, %v1028
        %v1031 = vmul.u32 %v1026, %v1027
        %v1032 = vmul.u32 %v1026, %v1028
        %v1033 = vshll.u32 %v1030, 16
        %v1034 = vshrl.u32 %v1030, 16
        %v1035 = vshll.u32 %v1031, 16
        %v1036 = vshrl.u32 %v1031, 16
        %vm1037 = vc.u32 %v1029, %v1033
        %v1038 = vsel %vm1037, 1, 0
        %v1039 = vadd.s32 %v1029, %v1033
        %v1040 = vadd.s32 %v1032, %v1038
        %vm1041 = vc.u32 %v1039, %v1035
        %v1042 = vsel %vm1041, 1, 0
        %v1043 = vadd.s32 %v1039, %v1035
        %v1044 = vadd.s32 %v1040, %v1042
        %v1045 = vadd.s32 %v1044, %v1034
        %v1046 = vadd.s32 %v1045, %v1036
        %v1047 = vmul.u32 %v1002, %v993
        %v1048 = vadd.s32 %v1024, %v1043
        %vm1049 = vc.u32 %v1024, %v1043
        %v1050 = vadd.s32 %v1046, 1
        %v1051 = vsel %vm1049, %v1050, %v1046
        %v1052 = vadd.s32 %v1047, %v1051
        %v1053 = vadd.s32 %v1052, 536870912
        %v1054 = vshrl.u32 %v1053, 30
        %v1055 = vshll.u32 %v1054, 30
        %v1056 = vsub.s32 %v1052, %v1055
        %vm1057 = vcmp.lt.s32.totalorder %v1056, 0
        %v1058 = vsub.s32 0, %v1056
        %v1059 = vsel %vm1057, %v1058, %v1056
        %v1060 = vclz %v1059
        %v1061 = vsub.s32 %v1060, 2
        %vm1062 = vcmp.gt.s32.totalorder 0, %v1061
        %v1063 = vsel %vm1062, 0, %v1061
        %v1064 = vsub.s32 32, %v1063
        %v1065 = vshll.u32 %v1056, %v1063
        %v1066 = vshrl.u32 %v1048, %v1064
        %v1067 = vor.u32 %v1065, %v1066
        %v1068 = vsub.s32 4294967266, %v1063
        %v1069 = vadd.s32 %v1068, 127
        %v1070 = vshll.u32 %v1069, 23
        %v1071 = vor.u32 4788187, %v1070
        %v1072 = vand.u32 2147483647, %v1071
        %v1074 = vcvt.s32.f32 %v1067
        %v1075 = vmul.f32 %v1074, %v1072
        %v1076 = vxor.u32 %v1075, 2147483648
        %v1077 = vsel %vm956, %v1076, %v1075
        %v1078 = vsub.s32 4, %v1054
        %v1079 = vsel %vm956, %v1078, %v1054
        %v1080 = vsel %vm955, %v316, %v1077
        %v1081 = vsel %vm955, 0, %v1079
        %v1082 = vmul.f32 %v1080, %v1080
        %v1083 = vmul.f32 %v1082, -0.001358992
        %v1084 = vadd.f32 %v1083, 0.041655596
        %v1085 = vmul.f32 %v1082, %v1084
        %v1086 = vadd.f32 %v1085, -0.4999988
        %v1087 = vmul.f32 %v1082, %v1086
        %v1088 = vadd.f32 1.0, %v1087
        %v1089 = vmul.f32 %v1080, %v1080
        %v1090 = vmul.f32 %v1089, -0.00019511016
        %v1091 = vadd.f32 %v1090, 0.008332121
        %v1092 = vmul.f32 %v1089, %v1091
        %v1093 = vadd.f32 %v1092, -0.16666654
        %v1094 = vmul.f32 %v1089, %v1093
        %v1095 = vadd.f32 %v1094, 1.0
        %v1096 = vmul.f32 %v1095, %v1080
        %vm1097 = vweird.f32 %v316
        %v1098 = vadd.s32 %v1081, 3
        %v1099 = vand.u32 %v1098, 3
        %vm1100 = vcmp.lt.s32.totalorder %v1099, 2
        %vm1101 = vcmp.eq.s32.totalorder %v1099, 0
        %v1102 = vxor.u32 %v1096, 2147483648
        %v1103 = vsel %vm1101, %v1088, %v1102
        %vm1104 = vcmp.eq.s32.totalorder %v1099, 2
        %v1105 = vxor.u32 %v1088, 2147483648
        %v1106 = vsel %vm1104, %v1105, %v1096
        %v1107 = vsel %vm1100, %v1103, %v1106
        %v1108 = vsel %vm1097, nan, %v1107
        %v1109 = vand.u32 2147483647, %v317
        %vm1110 = vcmp.le.f32.partialorder %v1109, 0.7853982
        %vm1111 = vcmp.lt.s32.totalorder %v317, 0
        %v1112 = vand.u32 %v317, 2139095040
        %v1113 = vshrl.u32 %v1112, 23
        %v1114 = vsub.s32 %v1113, 127
        %v1115 = vand.u32 2147483647, %v317
        %v1116 = vand.u32 %v1115, 8388607
        %v1117 = vor.u32 %v1116, 8388608
        %v1118 = vsub.s32 0, %v1117
        %v1119 = vadd.s32 %v1114, 1
        %vm1120 = vcmp.gt.s32.totalorder %v1119, 0
        %v1121 = vsel %vm1120, %v1119, 0
        %v1122 = vshrl.u32 %v1121, 5
        %v1123 = vand.u32 %v1121, 31
        %v1124 = vsub.s32 32, %v1123
        %v1125 = vshrl.u32 683565275, %v1124
        %v1126 = vshll.u32 683565275, %v1123
        %v1127 = vshrl.u32 2475754826, %v1124
        %v1128 = vor.u32 %v1126, %v1127
        %v1129 = vshll.u32 2475754826, %v1123
        %v1130 = vshrl.u32 2131351028, %v1124
        %v1131 = vor.u32 %v1129, %v1130
        %v1132 = vshll.u32 2131351028, %v1123
        %v1133 = vshrl.u32 2102212464, %v1124
        %v1134 = vor.u32 %v1132, %v1133
        %v1135 = vshll.u32 2102212464, %v1123
        %v1136 = vshrl.u32 920167782, %v1124
        %v1137 = vor.u32 %v1135, %v1136
        %v1138 = vshll.u32 920167782, %v1123
        %v1139 = vshrl.u32 1326507024, %v1124
        %v1140 = vor.u32 %v1138, %v1139
        %vm1141 = vcmp.lt.s32.totalorder %v1122, 1
        %vm1142 = vcmp.lt.s32.totalorder %v1122, 2
        %vm1143 = vcmp.lt.s32.totalorder %v1122, 3
        %vm1144 = vcmp.lt.s32.totalorder %v1122, 4
        %v1145 = vsel %vm1141, %v1125, %v1128
        %v1146 = vsel %vm1144, %v1134, 2102212464
        %v1147 = vsel %vm1143, %v1131, %v1146
        %v1148 = vsel %vm1142, %v1145, %v1147
        %v1149 = vsel %vm1141, %v1128, %v1131
        %v1150 = vsel %vm1144, %v1137, 920167782
        %v1151 = vsel %vm1143, %v1134, %v1150
        %v1152 = vsel %vm1142, %v1149, %v1151
        %v1153 = vsel %vm1141, %v1131, %v1134
        %v1154 = vsel %vm1144, %v1140, 1326507024
        %v1155 = vsel %vm1143, %v1137, %v1154
        %v1156 = vsel %vm1142, %v1153, %v1155
        %v1157 = vshll.u32 %v1117, 8
        %v1158 = vand.u32 %v1157, 65535
        %v1159 = vshrl.u32 %v1157, 16
        %v1160 = vand.u32 %v1156, 65535
        %v1161 = vshrl.u32 %v1156, 16
        %v1162 = vmul.u32 %v1158, %v1160
        %v1163 = vmul.u32 %v1158, %v1161
        %v1164 = vmul.u32 %v1159, %v1160
        %v1165 = vmul.u32 %v1159, %v1161
        %v1166 = vshll.u32 %v1163, 16
        %v1167 = vshrl.u32 %v1163, 16
        %v1168 = vshll.u32 %v1164, 16
        %v1169 = vshrl.u32 %v1164, 16
        %vm1170 = vc.u32 %v1162, %v1166
        %v1171 = vsel %vm1170, 1, 0
        %v1172 = vadd.s32 %v1162, %v1166
        %v1173 = vadd.s32 %v1165, %v1171
        %vm1174 = vc.u32 %v1172, %v1168
        %v1175 = vsel %vm1174, 1, 0
        %v1176 = vadd.s32 %v1172, %v1168
        %v1177 = vadd.s32 %v1173, %v1175
        %v1178 = vadd.s32 %v1177, %v1167
        %v1179 = vadd.s32 %v1178, %v1169
        %v1180 = vand.u32 %v1157, 65535
        %v1181 = vshrl.u32 %v1157, 16
        %v1182 = vand.u32 %v1152, 65535
        %v1183 = vshrl.u32 %v1152, 16
        %v1184 = vmul.u32 %v1180, %v1182
        %v1185 = vmul.u32 %v1180, %v1183
        %v1186 = vmul.u32 %v1181, %v1182
        %v1187 = vmul.u32 %v1181, %v1183
        %v1188 = vshll.u32 %v1185, 16
        %v1189 = vshrl.u32 %v1185, 16
        %v1190 = vshll.u32 %v1186, 16
        %v1191 = vshrl.u32 %v1186, 16
        %vm1192 = vc.u32 %v1184, %v1188
        %v1193 = vsel %vm1192, 1, 0
        %v1194 = vadd.s32 %v1184, %v1188
        %v1195 = vadd.s32 %v1187, %v1193
        %vm1196 = vc.u32 %v1194, %v1190
        %v1197 = vsel %vm1196, 1, 0
        %v1198 = vadd.s32 %v1194, %v1190
        %v1199 = vadd.s32 %v1195, %v1197
        %v1200 = vadd.s32 %v1199, %v1189
        %v1201 = vadd.s32 %v1200, %v1191
        %v1202 = vmul.u32 %v1157, %v1148
        %v1203 = vadd.s32 %v1179, %v1198
        %vm1204 = vc.u32 %v1179, %v1198
        %v1205 = vadd.s32 %v1201, 1
        %v1206 = vsel %vm1204, %v1205, %v1201
        %v1207 = vadd.s32 %v1202, %v1206
        %v1208 = vadd.s32 %v1207, 536870912
        %v1209 = vshrl.u32 %v1208, 30
        %v1210 = vshll.u32 %v1209, 30
        %v1211 = vsub.s32 %v1207, %v1210
        %vm1212 = vcmp.lt.s32.totalorder %v1211, 0
        %v1213 = vsub.s32 0, %v1211
        %v1214 = vsel %vm1212, %v1213, %v1211
        %v1215 = vclz %v1214
        %v1216 = vsub.s32 %v1215, 2
        %vm1217 = vcmp.gt.s32.totalorder 0, %v1216
        %v1218 = vsel %vm1217, 0, %v1216
        %v1219 = vsub.s32 32, %v1218
        %v1220 = vshll.u32 %v1211, %v1218
        %v1221 = vshrl.u32 %v1203, %v1219
        %v1222 = vor.u32 %v1220, %v1221
        %v1223 = vsub.s32 4294967266, %v1218
        %v1224 = vadd.s32 %v1223, 127
        %v1225 = vshll.u32 %v1224, 23
        %v1226 = vor.u32 4788187, %v1225
        %v1227 = vand.u32 2147483647, %v1226
        %v1229 = vcvt.s32.f32 %v1222
        %v1230 = vmul.f32 %v1229, %v1227
        %v1231 = vxor.u32 %v1230, 2147483648
        %v1232 = vsel %vm1111, %v1231, %v1230
        %v1233 = vsub.s32 4, %v1209
        %v1234 = vsel %vm1111, %v1233, %v1209
        %v1235 = vsel %vm1110, %v317, %v1232
        %v1236 = vsel %vm1110, 0, %v1234
        %v1237 = vmul.f32 %v1235, %v1235
        %v1238 = vmul.f32 %v1237, -0.001358992
        %v1239 = vadd.f32 %v1238, 0.041655596
        %v1240 = vmul.f32 %v1237, %v1239
        %v1241 = vadd.f32 %v1240, -0.4999988
        %v1242 = vmul.f32 %v1237, %v1241
        %v1243 = vadd.f32 1.0, %v1242
        %v1244 = vmul.f32 %v1235, %v1235
        %v1245 = vmul.f32 %v1244, -0.00019511016
        %v1246 = vadd.f32 %v1245, 0.008332121
        %v1247 = vmul.f32 %v1244, %v1246
        %v1248 = vadd.f32 %v1247, -0.16666654
        %v1249 = vmul.f32 %v1244, %v1248
        %v1250 = vadd.f32 %v1249, 1.0
        %v1251 = vmul.f32 %v1250, %v1235
        %vm1252 = vweird.f32 %v317
        %v1253 = vadd.s32 %v1236, 3
        %v1254 = vand.u32 %v1253, 3
        %vm1255 = vcmp.lt.s32.totalorder %v1254, 2
        %vm1256 = vcmp.eq.s32.totalorder %v1254, 0
        %v1257 = vxor.u32 %v1251, 2147483648
        %v1258 = vsel %vm1256, %v1243, %v1257
        %vm1259 = vcmp.eq.s32.totalorder %v1254, 2
        %v1260 = vxor.u32 %v1243, 2147483648
        %v1261 = vsel %vm1259, %v1260, %v1251
        %v1262 = vsel %vm1255, %v1258, %v1261
        %v1263 = vsel %vm1252, nan, %v1262
        %v1264 = vand.u32 2147483647, %v318
        %vm1265 = vcmp.le.f32.partialorder %v1264, 0.7853982
        %vm1266 = vcmp.lt.s32.totalorder %v318, 0
        %v1267 = vand.u32 %v318, 2139095040
        %v1268 = vshrl.u32 %v1267, 23
        %v1269 = vsub.s32 %v1268, 127
        %v1270 = vand.u32 2147483647, %v318
        %v1271 = vand.u32 %v1270, 8388607
        %v1272 = vor.u32 %v1271, 8388608
        %v1273 = vsub.s32 0, %v1272
        %v1274 = vadd.s32 %v1269, 1
        %vm1275 = vcmp.gt.s32.totalorder %v1274, 0
        %v1276 = vsel %vm1275, %v1274, 0
        %v1277 = vshrl.u32 %v1276, 5
        %v1278 = vand.u32 %v1276, 31
        %v1279 = vsub.s32 32, %v1278
        %v1280 = vshrl.u32 683565275, %v1279
        %v1281 = vshll.u32 683565275, %v1278
        %v1282 = vshrl.u32 2475754826, %v1279
        %v1283 = vor.u32 %v1281, %v1282
        %v1284 = vshll.u32 2475754826, %v1278
        %v1285 = vshrl.u32 2131351028, %v1279
        %v1286 = vor.u32 %v1284, %v1285
        %v1287 = vshll.u32 2131351028, %v1278
        %v1288 = vshrl.u32 2102212464, %v1279
        %v1289 = vor.u32 %v1287, %v1288
        %v1290 = vshll.u32 2102212464, %v1278
        %v1291 = vshrl.u32 920167782, %v1279
        %v1292 = vor.u32 %v1290, %v1291
        %v1293 = vshll.u32 920167782, %v1278
        %v1294 = vshrl.u32 1326507024, %v1279
        %v1295 = vor.u32 %v1293, %v1294
        %vm1296 = vcmp.lt.s32.totalorder %v1277, 1
        %vm1297 = vcmp.lt.s32.totalorder %v1277, 2
        %vm1298 = vcmp.lt.s32.totalorder %v1277, 3
        %vm1299 = vcmp.lt.s32.totalorder %v1277, 4
        %v1300 = vsel %vm1296, %v1280, %v1283
        %v1301 = vsel %vm1299, %v1289, 2102212464
        %v1302 = vsel %vm1298, %v1286, %v1301
        %v1303 = vsel %vm1297, %v1300, %v1302
        %v1304 = vsel %vm1296, %v1283, %v1286
        %v1305 = vsel %vm1299, %v1292, 920167782
        %v1306 = vsel %vm1298, %v1289, %v1305
        %v1307 = vsel %vm1297, %v1304, %v1306
        %v1308 = vsel %vm1296, %v1286, %v1289
        %v1309 = vsel %vm1299, %v1295, 1326507024
        %v1310 = vsel %vm1298, %v1292, %v1309
        %v1311 = vsel %vm1297, %v1308, %v1310
        %v1312 = vshll.u32 %v1272, 8
        %v1313 = vand.u32 %v1312, 65535
        %v1314 = vshrl.u32 %v1312, 16
        %v1315 = vand.u32 %v1311, 65535
        %v1316 = vshrl.u32 %v1311, 16
        %v1317 = vmul.u32 %v1313, %v1315
        %v1318 = vmul.u32 %v1313, %v1316
        %v1319 = vmul.u32 %v1314, %v1315
        %v1320 = vmul.u32 %v1314, %v1316
        %v1321 = vshll.u32 %v1318, 16
        %v1322 = vshrl.u32 %v1318, 16
        %v1323 = vshll.u32 %v1319, 16
        %v1324 = vshrl.u32 %v1319, 16
        %vm1325 = vc.u32 %v1317, %v1321
        %v1326 = vsel %vm1325, 1, 0
        %v1327 = vadd.s32 %v1317, %v1321
        %v1328 = vadd.s32 %v1320, %v1326
        %vm1329 = vc.u32 %v1327, %v1323
        %v1330 = vsel %vm1329, 1, 0
        %v1331 = vadd.s32 %v1327, %v1323
        %v1332 = vadd.s32 %v1328, %v1330
        %v1333 = vadd.s32 %v1332, %v1322
        %v1334 = vadd.s32 %v1333, %v1324
        %v1335 = vand.u32 %v1312, 65535
        %v1336 = vshrl.u32 %v1312, 16
        %v1337 = vand.u32 %v1307, 65535
        %v1338 = vshrl.u32 %v1307, 16
        %v1339 = vmul.u32 %v1335, %v1337
        %v1340 = vmul.u32 %v1335, %v1338
        %v1341 = vmul.u32 %v1336, %v1337
        %v1342 = vmul.u32 %v1336, %v1338
        %v1343 = vshll.u32 %v1340, 16
        %v1344 = vshrl.u32 %v1340, 16
        %v1345 = vshll.u32 %v1341, 16
        %v1346 = vshrl.u32 %v1341, 16
        %vm1347 = vc.u32 %v1339, %v1343
        %v1348 = vsel %vm1347, 1, 0
        %v1349 = vadd.s32 %v1339, %v1343
        %v1350 = vadd.s32 %v1342, %v1348
        %vm1351 = vc.u32 %v1349, %v1345
        %v1352 = vsel %vm1351, 1, 0
        %v1353 = vadd.s32 %v1349, %v1345
        %v1354 = vadd.s32 %v1350, %v1352
        %v1355 = vadd.s32 %v1354, %v1344
        %v1356 = vadd.s32 %v1355, %v1346
        %v1357 = vmul.u32 %v1312, %v1303
        %v1358 = vadd.s32 %v1334, %v1353
        %vm1359 = vc.u32 %v1334, %v1353
        %v1360 = vadd.s32 %v1356, 1
        %v1361 = vsel %vm1359, %v1360, %v1356
        %v1362 = vadd.s32 %v1357, %v1361
        %v1363 = vadd.s32 %v1362, 536870912
        %v1364 = vshrl.u32 %v1363, 30
        %v1365 = vshll.u32 %v1364, 30
        %v1366 = vsub.s32 %v1362, %v1365
        %vm1367 = vcmp.lt.s32.totalorder %v1366, 0
        %v1368 = vsub.s32 0, %v1366
        %v1369 = vsel %vm1367, %v1368, %v1366
        %v1370 = vclz %v1369
        %v1371 = vsub.s32 %v1370, 2
        %vm1372 = vcmp.gt.s32.totalorder 0, %v1371
        %v1373 = vsel %vm1372, 0, %v1371
        %v1374 = vsub.s32 32, %v1373
        %v1375 = vshll.u32 %v1366, %v1373
        %v1376 = vshrl.u32 %v1358, %v1374
        %v1377 = vor.u32 %v1375, %v1376
        %v1378 = vsub.s32 4294967266, %v1373
        %v1379 = vadd.s32 %v1378, 127
        %v1380 = vshll.u32 %v1379, 23
        %v1381 = vor.u32 4788187, %v1380
        %v1382 = vand.u32 2147483647, %v1381
        %v1384 = vcvt.s32.f32 %v1377
        %v1385 = vmul.f32 %v1384, %v1382
        %v1386 = vxor.u32 %v1385, 2147483648
        %v1387 = vsel %vm1266, %v1386, %v1385
        %v1388 = vsub.s32 4, %v1364
        %v1389 = vsel %vm1266, %v1388, %v1364
        %v1390 = vsel %vm1265, %v318, %v1387
        %v1391 = vsel %vm1265, 0, %v1389
        %v1392 = vmul.f32 %v1390, %v1390
        %v1393 = vmul.f32 %v1392, -0.001358992
        %v1394 = vadd.f32 %v1393, 0.041655596
        %v1395 = vmul.f32 %v1392, %v1394
        %v1396 = vadd.f32 %v1395, -0.4999988
        %v1397 = vmul.f32 %v1392, %v1396
        %v1398 = vadd.f32 1.0, %v1397
        %v1399 = vmul.f32 %v1390, %v1390
        %v1400 = vmul.f32 %v1399, -0.00019511016
        %v1401 = vadd.f32 %v1400, 0.008332121
        %v1402 = vmul.f32 %v1399, %v1401
        %v1403 = vadd.f32 %v1402, -0.16666654
        %v1404 = vmul.f32 %v1399, %v1403
        %v1405 = vadd.f32 %v1404, 1.0
        %v1406 = vmul.f32 %v1405, %v1390
        %vm1407 = vweird.f32 %v318
        %v1408 = vadd.s32 %v1391, 3
        %v1409 = vand.u32 %v1408, 3
        %vm1410 = vcmp.lt.s32.totalorder %v1409, 2
        %vm1411 = vcmp.eq.s32.totalorder %v1409, 0
        %v1412 = vxor.u32 %v1406, 2147483648
        %v1413 = vsel %vm1411, %v1398, %v1412
        %vm1414 = vcmp.eq.s32.totalorder %v1409, 2
        %v1415 = vxor.u32 %v1398, 2147483648
        %v1416 = vsel %vm1414, %v1415, %v1406
        %v1417 = vsel %vm1410, %v1413, %v1416
        %v1418 = vsel %vm1407, nan, %v1417
        %v1419 = vand.u32 2147483647, %v319
        %vm1420 = vcmp.le.f32.partialorder %v1419, 0.7853982
        %vm1421 = vcmp.lt.s32.totalorder %v319, 0
        %v1422 = vand.u32 %v319, 2139095040
        %v1423 = vshrl.u32 %v1422, 23
        %v1424 = vsub.s32 %v1423, 127
        %v1425 = vand.u32 2147483647, %v319
        %v1426 = vand.u32 %v1425, 8388607
        %v1427 = vor.u32 %v1426, 8388608
        %v1428 = vsub.s32 0, %v1427
        %v1429 = vadd.s32 %v1424, 1
        %vm1430 = vcmp.gt.s32.totalorder %v1429, 0
        %v1431 = vsel %vm1430, %v1429, 0
        %v1432 = vshrl.u32 %v1431, 5
        %v1433 = vand.u32 %v1431, 31
        %v1434 = vsub.s32 32, %v1433
        %v1435 = vshrl.u32 683565275, %v1434
        %v1436 = vshll.u32 683565275, %v1433
        %v1437 = vshrl.u32 2475754826, %v1434
        %v1438 = vor.u32 %v1436, %v1437
        %v1439 = vshll.u32 2475754826, %v1433
        %v1440 = vshrl.u32 2131351028, %v1434
        %v1441 = vor.u32 %v1439, %v1440
        %v1442 = vshll.u32 2131351028, %v1433
        %v1443 = vshrl.u32 2102212464, %v1434
        %v1444 = vor.u32 %v1442, %v1443
        %v1445 = vshll.u32 2102212464, %v1433
        %v1446 = vshrl.u32 920167782, %v1434
        %v1447 = vor.u32 %v1445, %v1446
        %v1448 = vshll.u32 920167782, %v1433
        %v1449 = vshrl.u32 1326507024, %v1434
        %v1450 = vor.u32 %v1448, %v1449
        %vm1451 = vcmp.lt.s32.totalorder %v1432, 1
        %vm1452 = vcmp.lt.s32.totalorder %v1432, 2
        %vm1453 = vcmp.lt.s32.totalorder %v1432, 3
        %vm1454 = vcmp.lt.s32.totalorder %v1432, 4
        %v1455 = vsel %vm1451, %v1435, %v1438
        %v1456 = vsel %vm1454, %v1444, 2102212464
        %v1457 = vsel %vm1453, %v1441, %v1456
        %v1458 = vsel %vm1452, %v1455, %v1457
        %v1459 = vsel %vm1451, %v1438, %v1441
        %v1460 = vsel %vm1454, %v1447, 920167782
        %v1461 = vsel %vm1453, %v1444, %v1460
        %v1462 = vsel %vm1452, %v1459, %v1461
        %v1463 = vsel %vm1451, %v1441, %v1444
        %v1464 = vsel %vm1454, %v1450, 1326507024
        %v1465 = vsel %vm1453, %v1447, %v1464
        %v1466 = vsel %vm1452, %v1463, %v1465
        %v1467 = vshll.u32 %v1427, 8
        %v1468 = vand.u32 %v1467, 65535
        %v1469 = vshrl.u32 %v1467, 16
        %v1470 = vand.u32 %v1466, 65535
        %v1471 = vshrl.u32 %v1466, 16
        %v1472 = vmul.u32 %v1468, %v1470
        %v1473 = vmul.u32 %v1468, %v1471
        %v1474 = vmul.u32 %v1469, %v1470
        %v1475 = vmul.u32 %v1469, %v1471
        %v1476 = vshll.u32 %v1473, 16
        %v1477 = vshrl.u32 %v1473, 16
        %v1478 = vshll.u32 %v1474, 16
        %v1479 = vshrl.u32 %v1474, 16
        %vm1480 = vc.u32 %v1472, %v1476
        %v1481 = vsel %vm1480, 1, 0
        %v1482 = vadd.s32 %v1472, %v1476
        %v1483 = vadd.s32 %v1475, %v1481
        %vm1484 = vc.u32 %v1482, %v1478
        %v1485 = vsel %vm1484, 1, 0
        %v1486 = vadd.s32 %v1482, %v1478
        %v1487 = vadd.s32 %v1483, %v1485
        %v1488 = vadd.s32 %v1487, %v1477
        %v1489 = vadd.s32 %v1488, %v1479
        %v1490 = vand.u32 %v1467, 65535
        %v1491 = vshrl.u32 %v1467, 16
        %v1492 = vand.u32 %v1462, 65535
        %v1493 = vshrl.u32 %v1462, 16
        %v1494 = vmul.u32 %v1490, %v1492
        %v1495 = vmul.u32 %v1490, %v1493
        %v1496 = vmul.u32 %v1491, %v1492
        %v1497 = vmul.u32 %v1491, %v1493
        %v1498 = vshll.u32 %v1495, 16
        %v1499 = vshrl.u32 %v1495, 16
        %v1500 = vshll.u32 %v1496, 16
        %v1501 = vshrl.u32 %v1496, 16
        %vm1502 = vc.u32 %v1494, %v1498
        %v1503 = vsel %vm1502, 1, 0
        %v1504 = vadd.s32 %v1494, %v1498
        %v1505 = vadd.s32 %v1497, %v1503
        %vm1506 = vc.u32 %v1504, %v1500
        %v1507 = vsel %vm1506, 1, 0
        %v1508 = vadd.s32 %v1504, %v1500
        %v1509 = vadd.s32 %v1505, %v1507
        %v1510 = vadd.s32 %v1509, %v1499
        %v1511 = vadd.s32 %v1510, %v1501
        %v1512 = vmul.u32 %v1467, %v1458
        %v1513 = vadd.s32 %v1489, %v1508
        %vm1514 = vc.u32 %v1489, %v1508
        %v1515 = vadd.s32 %v1511, 1
        %v1516 = vsel %vm1514, %v1515, %v1511
        %v1517 = vadd.s32 %v1512, %v1516
        %v1518 = vadd.s32 %v1517, 536870912
        %v1519 = vshrl.u32 %v1518, 30
        %v1520 = vshll.u32 %v1519, 30
        %v1521 = vsub.s32 %v1517, %v1520
        %vm1522 = vcmp.lt.s32.totalorder %v1521, 0
        %v1523 = vsub.s32 0, %v1521
        %v1524 = vsel %vm1522, %v1523, %v1521
        %v1525 = vclz %v1524
        %v1526 = vsub.s32 %v1525, 2
        %vm1527 = vcmp.gt.s32.totalorder 0, %v1526
        %v1528 = vsel %vm1527, 0, %v1526
        %v1529 = vsub.s32 32, %v1528
        %v1530 = vshll.u32 %v1521, %v1528
        %v1531 = vshrl.u32 %v1513, %v1529
        %v1532 = vor.u32 %v1530, %v1531
        %v1533 = vsub.s32 4294967266, %v1528
        %v1534 = vadd.s32 %v1533, 127
        %v1535 = vshll.u32 %v1534, 23
        %v1536 = vor.u32 4788187, %v1535
        %v1537 = vand.u32 2147483647, %v1536
        %v1539 = vcvt.s32.f32 %v1532
        %v1540 = vmul.f32 %v1539, %v1537
        %v1541 = vxor.u32 %v1540, 2147483648
        %v1542 = vsel %vm1421, %v1541, %v1540
        %v1543 = vsub.s32 4, %v1519
        %v1544 = vsel %vm1421, %v1543, %v1519
        %v1545 = vsel %vm1420, %v319, %v1542
        %v1546 = vsel %vm1420, 0, %v1544
        %v1547 = vmul.f32 %v1545, %v1545
        %v1548 = vmul.f32 %v1547, -0.001358992
        %v1549 = vadd.f32 %v1548, 0.041655596
        %v1550 = vmul.f32 %v1547, %v1549
        %v1551 = vadd.f32 %v1550, -0.4999988
        %v1552 = vmul.f32 %v1547, %v1551
        %v1553 = vadd.f32 1.0, %v1552
        %v1554 = vmul.f32 %v1545, %v1545
        %v1555 = vmul.f32 %v1554, -0.00019511016
        %v1556 = vadd.f32 %v1555, 0.008332121
        %v1557 = vmul.f32 %v1554, %v1556
        %v1558 = vadd.f32 %v1557, -0.16666654
        %v1559 = vmul.f32 %v1554, %v1558
        %v1560 = vadd.f32 %v1559, 1.0
        %v1561 = vmul.f32 %v1560, %v1545
        %vm1562 = vweird.f32 %v319
        %v1563 = vadd.s32 %v1546, 3
        %v1564 = vand.u32 %v1563, 3
        %vm1565 = vcmp.lt.s32.totalorder %v1564, 2
        %vm1566 = vcmp.eq.s32.totalorder %v1564, 0
        %v1567 = vxor.u32 %v1561, 2147483648
        %v1568 = vsel %vm1566, %v1553, %v1567
        %vm1569 = vcmp.eq.s32.totalorder %v1564, 2
        %v1570 = vxor.u32 %v1553, 2147483648
        %v1571 = vsel %vm1569, %v1570, %v1561
        %v1572 = vsel %vm1565, %v1568, %v1571
        %v1573 = vsel %vm1562, nan, %v1572
        %v1574 = vand.u32 2147483647, %v326
        %vm1575 = vcmp.le.f32.partialorder %v1574, 0.7853982
        %vm1576 = vcmp.lt.s32.totalorder %v326, 0
        %v1577 = vand.u32 %v326, 2139095040
        %v1578 = vshrl.u32 %v1577, 23
        %v1579 = vsub.s32 %v1578, 127
        %v1580 = vand.u32 2147483647, %v326
        %v1581 = vand.u32 %v1580, 8388607
        %v1582 = vor.u32 %v1581, 8388608
        %v1583 = vsub.s32 0, %v1582
        %v1584 = vadd.s32 %v1579, 1
        %vm1585 = vcmp.gt.s32.totalorder %v1584, 0
        %v1586 = vsel %vm1585, %v1584, 0
        %v1587 = vshrl.u32 %v1586, 5
        %v1588 = vand.u32 %v1586, 31
        %v1589 = vsub.s32 32, %v1588
        %v1590 = vshrl.u32 683565275, %v1589
        %v1591 = vshll.u32 683565275, %v1588
        %v1592 = vshrl.u32 2475754826, %v1589
        %v1593 = vor.u32 %v1591, %v1592
        %v1594 = vshll.u32 2475754826, %v1588
        %v1595 = vshrl.u32 2131351028, %v1589
        %v1596 = vor.u32 %v1594, %v1595
        %v1597 = vshll.u32 2131351028, %v1588
        %v1598 = vshrl.u32 2102212464, %v1589
        %v1599 = vor.u32 %v1597, %v1598
        %v1600 = vshll.u32 2102212464, %v1588
        %v1601 = vshrl.u32 920167782, %v1589
        %v1602 = vor.u32 %v1600, %v1601
        %v1603 = vshll.u32 920167782, %v1588
        %v1604 = vshrl.u32 1326507024, %v1589
        %v1605 = vor.u32 %v1603, %v1604
        %vm1606 = vcmp.lt.s32.totalorder %v1587, 1
        %vm1607 = vcmp.lt.s32.totalorder %v1587, 2
        %vm1608 = vcmp.lt.s32.totalorder %v1587, 3
        %vm1609 = vcmp.lt.s32.totalorder %v1587, 4
        %v1610 = vsel %vm1606, %v1590, %v1593
        %v1611 = vsel %vm1609, %v1599, 2102212464
        %v1612 = vsel %vm1608, %v1596, %v1611
        %v1613 = vsel %vm1607, %v1610, %v1612
        %v1614 = vsel %vm1606, %v1593, %v1596
        %v1615 = vsel %vm1609, %v1602, 920167782
        %v1616 = vsel %vm1608, %v1599, %v1615
        %v1617 = vsel %vm1607, %v1614, %v1616
        %v1618 = vsel %vm1606, %v1596, %v1599
        %v1619 = vsel %vm1609, %v1605, 1326507024
        %v1620 = vsel %vm1608, %v1602, %v1619
        %v1621 = vsel %vm1607, %v1618, %v1620
        %v1622 = vshll.u32 %v1582, 8
        %v1623 = vand.u32 %v1622, 65535
        %v1624 = vshrl.u32 %v1622, 16
        %v1625 = vand.u32 %v1621, 65535
        %v1626 = vshrl.u32 %v1621, 16
        %v1627 = vmul.u32 %v1623, %v1625
        %v1628 = vmul.u32 %v1623, %v1626
        %v1629 = vmul.u32 %v1624, %v1625
        %v1630 = vmul.u32 %v1624, %v1626
        %v1631 = vshll.u32 %v1628, 16
        %v1632 = vshrl.u32 %v1628, 16
        %v1633 = vshll.u32 %v1629, 16
        %v1634 = vshrl.u32 %v1629, 16
        %vm1635 = vc.u32 %v1627, %v1631
        %v1636 = vsel %vm1635, 1, 0
        %v1637 = vadd.s32 %v1627, %v1631
        %v1638 = vadd.s32 %v1630, %v1636
        %vm1639 = vc.u32 %v1637, %v1633
        %v1640 = vsel %vm1639, 1, 0
        %v1641 = vadd.s32 %v1637, %v1633
        %v1642 = vadd.s32 %v1638, %v1640
        %v1643 = vadd.s32 %v1642, %v1632
        %v1644 = vadd.s32 %v1643, %v1634
        %v1645 = vand.u32 %v1622, 65535
        %v1646 = vshrl.u32 %v1622, 16
        %v1647 = vand.u32 %v1617, 65535
        %v1648 = vshrl.u32 %v1617, 16
        %v1649 = vmul.u32 %v1645, %v1647
        %v1650 = vmul.u32 %v1645, %v1648
        %v1651 = vmul.u32 %v1646, %v1647
        %v1652 = vmul.u32 %v1646, %v1648
        %v1653 = vshll.u32 %v1650, 16
        %v1654 = vshrl.u32 %v1650, 16
        %v1655 = vshll.u32 %v1651, 16
        %v1656 = vshrl.u32 %v1651, 16
        %vm1657 = vc.u32 %v1649, %v1653
        %v1658 = vsel %vm1657, 1, 0
        %v1659 = vadd.s32 %v1649, %v1653
        %v1660 = vadd.s32 %v1652, %v1658
        %vm1661 = vc.u32 %v1659, %v1655
        %v1662 = vsel %vm1661, 1, 0
        %v1663 = vadd.s32 %v1659, %v1655
        %v1664 = vadd.s32 %v1660, %v1662
        %v1665 = vadd.s32 %v1664, %v1654
        %v1666 = vadd.s32 %v1665, %v1656
        %v1667 = vmul.u32 %v1622, %v1613
        %v1668 = vadd.s32 %v1644, %v1663
        %vm1669 = vc.u32 %v1644, %v1663
        %v1670 = vadd.s32 %v1666, 1
        %v1671 = vsel %vm1669, %v1670, %v1666
        %v1672 = vadd.s32 %v1667, %v1671
        %v1673 = vadd.s32 %v1672, 536870912
        %v1674 = vshrl.u32 %v1673, 30
        %v1675 = vshll.u32 %v1674, 30
        %v1676 = vsub.s32 %v1672, %v1675
        %vm1677 = vcmp.lt.s32.totalorder %v1676, 0
        %v1678 = vsub.s32 0, %v1676
        %v1679 = vsel %vm1677, %v1678, %v1676
        %v1680 = vclz %v1679
        %v1681 = vsub.s32 %v1680, 2
        %vm1682 = vcmp.gt.s32.totalorder 0, %v1681
        %v1683 = vsel %vm1682, 0, %v1681
        %v1684 = vsub.s32 32, %v1683
        %v1685 = vshll.u32 %v1676, %v1683
        %v1686 = vshrl.u32 %v1668, %v1684
        %v1687 = vor.u32 %v1685, %v1686
        %v1688 = vsub.s32 4294967266, %v1683
        %v1689 = vadd.s32 %v1688, 127
        %v1690 = vshll.u32 %v1689, 23
        %v1691 = vor.u32 4788187, %v1690
        %v1692 = vand.u32 2147483647, %v1691
        %v1694 = vcvt.s32.f32 %v1687
        %v1695 = vmul.f32 %v1694, %v1692
        %v1696 = vxor.u32 %v1695, 2147483648
        %v1697 = vsel %vm1576, %v1696, %v1695
        %v1698 = vsub.s32 4, %v1674
        %v1699 = vsel %vm1576, %v1698, %v1674
        %v1700 = vsel %vm1575, %v326, %v1697
        %v1701 = vsel %vm1575, 0, %v1699
        %v1702 = vmul.f32 %v1700, %v1700
        %v1703 = vmul.f32 %v1702, -0.001358992
        %v1704 = vadd.f32 %v1703, 0.041655596
        %v1705 = vmul.f32 %v1702, %v1704
        %v1706 = vadd.f32 %v1705, -0.4999988
        %v1707 = vmul.f32 %v1702, %v1706
        %v1708 = vadd.f32 1.0, %v1707
        %v1709 = vmul.f32 %v1700, %v1700
        %v1710 = vmul.f32 %v1709, -0.00019511016
        %v1711 = vadd.f32 %v1710, 0.008332121
        %v1712 = vmul.f32 %v1709, %v1711
        %v1713 = vadd.f32 %v1712, -0.16666654
        %v1714 = vmul.f32 %v1709, %v1713
        %v1715 = vadd.f32 %v1714, 1.0
        %v1716 = vmul.f32 %v1715, %v1700
        %vm1717 = vweird.f32 %v326
        %v1718 = vadd.s32 %v1701, 3
        %v1719 = vand.u32 %v1718, 3
        %vm1720 = vcmp.lt.s32.totalorder %v1719, 2
        %vm1721 = vcmp.eq.s32.totalorder %v1719, 0
        %v1722 = vxor.u32 %v1716, 2147483648
        %v1723 = vsel %vm1721, %v1708, %v1722
        %vm1724 = vcmp.eq.s32.totalorder %v1719, 2
        %v1725 = vxor.u32 %v1708, 2147483648
        %v1726 = vsel %vm1724, %v1725, %v1716
        %v1727 = vsel %vm1720, %v1723, %v1726
        %v1728 = vsel %vm1717, nan, %v1727
        %v1729 = vand.u32 2147483647, %v327
        %vm1730 = vcmp.le.f32.partialorder %v1729, 0.7853982
        %vm1731 = vcmp.lt.s32.totalorder %v327, 0
        %v1732 = vand.u32 %v327, 2139095040
        %v1733 = vshrl.u32 %v1732, 23
        %v1734 = vsub.s32 %v1733, 127
        %v1735 = vand.u32 2147483647, %v327
        %v1736 = vand.u32 %v1735, 8388607
        %v1737 = vor.u32 %v1736, 8388608
        %v1738 = vsub.s32 0, %v1737
        %v1739 = vadd.s32 %v1734, 1
        %vm1740 = vcmp.gt.s32.totalorder %v1739, 0
        %v1741 = vsel %vm1740, %v1739, 0
        %v1742 = vshrl.u32 %v1741, 5
        %v1743 = vand.u32 %v1741, 31
        %v1744 = vsub.s32 32, %v1743
        %v1745 = vshrl.u32 683565275, %v1744
        %v1746 = vshll.u32 683565275, %v1743
        %v1747 = vshrl.u32 2475754826, %v1744
        %v1748 = vor.u32 %v1746, %v1747
        %v1749 = vshll.u32 2475754826, %v1743
        %v1750 = vshrl.u32 2131351028, %v1744
        %v1751 = vor.u32 %v1749, %v1750
        %v1752 = vshll.u32 2131351028, %v1743
        %v1753 = vshrl.u32 2102212464, %v1744
        %v1754 = vor.u32 %v1752, %v1753
        %v1755 = vshll.u32 2102212464, %v1743
        %v1756 = vshrl.u32 920167782, %v1744
        %v1757 = vor.u32 %v1755, %v1756
        %v1758 = vshll.u32 920167782, %v1743
        %v1759 = vshrl.u32 1326507024, %v1744
        %v1760 = vor.u32 %v1758, %v1759
        %vm1761 = vcmp.lt.s32.totalorder %v1742, 1
        %vm1762 = vcmp.lt.s32.totalorder %v1742, 2
        %vm1763 = vcmp.lt.s32.totalorder %v1742, 3
        %vm1764 = vcmp.lt.s32.totalorder %v1742, 4
        %v1765 = vsel %vm1761, %v1745, %v1748
        %v1766 = vsel %vm1764, %v1754, 2102212464
        %v1767 = vsel %vm1763, %v1751, %v1766
        %v1768 = vsel %vm1762, %v1765, %v1767
        %v1769 = vsel %vm1761, %v1748, %v1751
        %v1770 = vsel %vm1764, %v1757, 920167782
        %v1771 = vsel %vm1763, %v1754, %v1770
        %v1772 = vsel %vm1762, %v1769, %v1771
        %v1773 = vsel %vm1761, %v1751, %v1754
        %v1774 = vsel %vm1764, %v1760, 1326507024
        %v1775 = vsel %vm1763, %v1757, %v1774
        %v1776 = vsel %vm1762, %v1773, %v1775
        %v1777 = vshll.u32 %v1737, 8
        %v1778 = vand.u32 %v1777, 65535
        %v1779 = vshrl.u32 %v1777, 16
        %v1780 = vand.u32 %v1776, 65535
        %v1781 = vshrl.u32 %v1776, 16
        %v1782 = vmul.u32 %v1778, %v1780
        %v1783 = vmul.u32 %v1778, %v1781
        %v1784 = vmul.u32 %v1779, %v1780
        %v1785 = vmul.u32 %v1779, %v1781
        %v1786 = vshll.u32 %v1783, 16
        %v1787 = vshrl.u32 %v1783, 16
        %v1788 = vshll.u32 %v1784, 16
        %v1789 = vshrl.u32 %v1784, 16
        %vm1790 = vc.u32 %v1782, %v1786
        %v1791 = vsel %vm1790, 1, 0
        %v1792 = vadd.s32 %v1782, %v1786
        %v1793 = vadd.s32 %v1785, %v1791
        %vm1794 = vc.u32 %v1792, %v1788
        %v1795 = vsel %vm1794, 1, 0
        %v1796 = vadd.s32 %v1792, %v1788
        %v1797 = vadd.s32 %v1793, %v1795
        %v1798 = vadd.s32 %v1797, %v1787
        %v1799 = vadd.s32 %v1798, %v1789
        %v1800 = vand.u32 %v1777, 65535
        %v1801 = vshrl.u32 %v1777, 16
        %v1802 = vand.u32 %v1772, 65535
        %v1803 = vshrl.u32 %v1772, 16
        %v1804 = vmul.u32 %v1800, %v1802
        %v1805 = vmul.u32 %v1800, %v1803
        %v1806 = vmul.u32 %v1801, %v1802
        %v1807 = vmul.u32 %v1801, %v1803
        %v1808 = vshll.u32 %v1805, 16
        %v1809 = vshrl.u32 %v1805, 16
        %v1810 = vshll.u32 %v1806, 16
        %v1811 = vshrl.u32 %v1806, 16
        %vm1812 = vc.u32 %v1804, %v1808
        %v1813 = vsel %vm1812, 1, 0
        %v1814 = vadd.s32 %v1804, %v1808
        %v1815 = vadd.s32 %v1807, %v1813
        %vm1816 = vc.u32 %v1814, %v1810
        %v1817 = vsel %vm1816, 1, 0
        %v1818 = vadd.s32 %v1814, %v1810
        %v1819 = vadd.s32 %v1815, %v1817
        %v1820 = vadd.s32 %v1819, %v1809
        %v1821 = vadd.s32 %v1820, %v1811
        %v1822 = vmul.u32 %v1777, %v1768
        %v1823 = vadd.s32 %v1799, %v1818
        %vm1824 = vc.u32 %v1799, %v1818
        %v1825 = vadd.s32 %v1821, 1
        %v1826 = vsel %vm1824, %v1825, %v1821
        %v1827 = vadd.s32 %v1822, %v1826
        %v1828 = vadd.s32 %v1827, 536870912
        %v1829 = vshrl.u32 %v1828, 30
        %v1830 = vshll.u32 %v1829, 30
        %v1831 = vsub.s32 %v1827, %v1830
        %vm1832 = vcmp.lt.s32.totalorder %v1831, 0
        %v1833 = vsub.s32 0, %v1831
        %v1834 = vsel %vm1832, %v1833, %v1831
        %v1835 = vclz %v1834
        %v1836 = vsub.s32 %v1835, 2
        %vm1837 = vcmp.gt.s32.totalorder 0, %v1836
        %v1838 = vsel %vm1837, 0, %v1836
        %v1839 = vsub.s32 32, %v1838
        %v1840 = vshll.u32 %v1831, %v1838
        %v1841 = vshrl.u32 %v1823, %v1839
        %v1842 = vor.u32 %v1840, %v1841
        %v1843 = vsub.s32 4294967266, %v1838
        %v1844 = vadd.s32 %v1843, 127
        %v1845 = vshll.u32 %v1844, 23
        %v1846 = vor.u32 4788187, %v1845
        %v1847 = vand.u32 2147483647, %v1846
        %v1849 = vcvt.s32.f32 %v1842
        %v1850 = vmul.f32 %v1849, %v1847
        %v1851 = vxor.u32 %v1850, 2147483648
        %v1852 = vsel %vm1731, %v1851, %v1850
        %v1853 = vsub.s32 4, %v1829
        %v1854 = vsel %vm1731, %v1853, %v1829
        %v1855 = vsel %vm1730, %v327, %v1852
        %v1856 = vsel %vm1730, 0, %v1854
        %v1857 = vmul.f32 %v1855, %v1855
        %v1858 = vmul.f32 %v1857, -0.001358992
        %v1859 = vadd.f32 %v1858, 0.041655596
        %v1860 = vmul.f32 %v1857, %v1859
        %v1861 = vadd.f32 %v1860, -0.4999988
        %v1862 = vmul.f32 %v1857, %v1861
        %v1863 = vadd.f32 1.0, %v1862
        %v1864 = vmul.f32 %v1855, %v1855
        %v1865 = vmul.f32 %v1864, -0.00019511016
        %v1866 = vadd.f32 %v1865, 0.008332121
        %v1867 = vmul.f32 %v1864, %v1866
        %v1868 = vadd.f32 %v1867, -0.16666654
        %v1869 = vmul.f32 %v1864, %v1868
        %v1870 = vadd.f32 %v1869, 1.0
        %v1871 = vmul.f32 %v1870, %v1855
        %vm1872 = vweird.f32 %v327
        %v1873 = vadd.s32 %v1856, 3
        %v1874 = vand.u32 %v1873, 3
        %vm1875 = vcmp.lt.s32.totalorder %v1874, 2
        %vm1876 = vcmp.eq.s32.totalorder %v1874, 0
        %v1877 = vxor.u32 %v1871, 2147483648
        %v1878 = vsel %vm1876, %v1863, %v1877
        %vm1879 = vcmp.eq.s32.totalorder %v1874, 2
        %v1880 = vxor.u32 %v1863, 2147483648
        %v1881 = vsel %vm1879, %v1880, %v1871
        %v1882 = vsel %vm1875, %v1878, %v1881
        %v1883 = vsel %vm1872, nan, %v1882
        %v1884 = vand.u32 2147483647, %v328
        %vm1885 = vcmp.le.f32.partialorder %v1884, 0.7853982
        %vm1886 = vcmp.lt.s32.totalorder %v328, 0
        %v1887 = vand.u32 %v328, 2139095040
        %v1888 = vshrl.u32 %v1887, 23
        %v1889 = vsub.s32 %v1888, 127
        %v1890 = vand.u32 2147483647, %v328
        %v1891 = vand.u32 %v1890, 8388607
        %v1892 = vor.u32 %v1891, 8388608
        %v1893 = vsub.s32 0, %v1892
        %v1894 = vadd.s32 %v1889, 1
        %vm1895 = vcmp.gt.s32.totalorder %v1894, 0
        %v1896 = vsel %vm1895, %v1894, 0
        %v1897 = vshrl.u32 %v1896, 5
        %v1898 = vand.u32 %v1896, 31
        %v1899 = vsub.s32 32, %v1898
        %v1900 = vshrl.u32 683565275, %v1899
        %v1901 = vshll.u32 683565275, %v1898
        %v1902 = vshrl.u32 2475754826, %v1899
        %v1903 = vor.u32 %v1901, %v1902
        %v1904 = vshll.u32 2475754826, %v1898
        %v1905 = vshrl.u32 2131351028, %v1899
        %v1906 = vor.u32 %v1904, %v1905
        %v1907 = vshll.u32 2131351028, %v1898
        %v1908 = vshrl.u32 2102212464, %v1899
        %v1909 = vor.u32 %v1907, %v1908
        %v1910 = vshll.u32 2102212464, %v1898
        %v1911 = vshrl.u32 920167782, %v1899
        %v1912 = vor.u32 %v1910, %v1911
        %v1913 = vshll.u32 920167782, %v1898
        %v1914 = vshrl.u32 1326507024, %v1899
        %v1915 = vor.u32 %v1913, %v1914
        %vm1916 = vcmp.lt.s32.totalorder %v1897, 1
        %vm1917 = vcmp.lt.s32.totalorder %v1897, 2
        %vm1918 = vcmp.lt.s32.totalorder %v1897, 3
        %vm1919 = vcmp.lt.s32.totalorder %v1897, 4
        %v1920 = vsel %vm1916, %v1900, %v1903
        %v1921 = vsel %vm1919, %v1909, 2102212464
        %v1922 = vsel %vm1918, %v1906, %v1921
        %v1923 = vsel %vm1917, %v1920, %v1922
        %v1924 = vsel %vm1916, %v1903, %v1906
        %v1925 = vsel %vm1919, %v1912, 920167782
        %v1926 = vsel %vm1918, %v1909, %v1925
        %v1927 = vsel %vm1917, %v1924, %v1926
        %v1928 = vsel %vm1916, %v1906, %v1909
        %v1929 = vsel %vm1919, %v1915, 1326507024
        %v1930 = vsel %vm1918, %v1912, %v1929
        %v1931 = vsel %vm1917, %v1928, %v1930
        %v1932 = vshll.u32 %v1892, 8
        %v1933 = vand.u32 %v1932, 65535
        %v1934 = vshrl.u32 %v1932, 16
        %v1935 = vand.u32 %v1931, 65535
        %v1936 = vshrl.u32 %v1931, 16
        %v1937 = vmul.u32 %v1933, %v1935
        %v1938 = vmul.u32 %v1933, %v1936
        %v1939 = vmul.u32 %v1934, %v1935
        %v1940 = vmul.u32 %v1934, %v1936
        %v1941 = vshll.u32 %v1938, 16
        %v1942 = vshrl.u32 %v1938, 16
        %v1943 = vshll.u32 %v1939, 16
        %v1944 = vshrl.u32 %v1939, 16
        %vm1945 = vc.u32 %v1937, %v1941
        %v1946 = vsel %vm1945, 1, 0
        %v1947 = vadd.s32 %v1937, %v1941
        %v1948 = vadd.s32 %v1940, %v1946
        %vm1949 = vc.u32 %v1947, %v1943
        %v1950 = vsel %vm1949, 1, 0
        %v1951 = vadd.s32 %v1947, %v1943
        %v1952 = vadd.s32 %v1948, %v1950
        %v1953 = vadd.s32 %v1952, %v1942
        %v1954 = vadd.s32 %v1953, %v1944
        %v1955 = vand.u32 %v1932, 65535
        %v1956 = vshrl.u32 %v1932, 16
        %v1957 = vand.u32 %v1927, 65535
        %v1958 = vshrl.u32 %v1927, 16
        %v1959 = vmul.u32 %v1955, %v1957
        %v1960 = vmul.u32 %v1955, %v1958
        %v1961 = vmul.u32 %v1956, %v1957
        %v1962 = vmul.u32 %v1956, %v1958
        %v1963 = vshll.u32 %v1960, 16
        %v1964 = vshrl.u32 %v1960, 16
        %v1965 = vshll.u32 %v1961, 16
        %v1966 = vshrl.u32 %v1961, 16
        %vm1967 = vc.u32 %v1959, %v1963
        %v1968 = vsel %vm1967, 1, 0
        %v1969 = vadd.s32 %v1959, %v1963
        %v1970 = vadd.s32 %v1962, %v1968
        %vm1971 = vc.u32 %v1969, %v1965
        %v1972 = vsel %vm1971, 1, 0
        %v1973 = vadd.s32 %v1969, %v1965
        %v1974 = vadd.s32 %v1970, %v1972
        %v1975 = vadd.s32 %v1974, %v1964
        %v1976 = vadd.s32 %v1975, %v1966
        %v1977 = vmul.u32 %v1932, %v1923
        %v1978 = vadd.s32 %v1954, %v1973
        %vm1979 = vc.u32 %v1954, %v1973
        %v1980 = vadd.s32 %v1976, 1
        %v1981 = vsel %vm1979, %v1980, %v1976
        %v1982 = vadd.s32 %v1977, %v1981
        %v1983 = vadd.s32 %v1982, 536870912
        %v1984 = vshrl.u32 %v1983, 30
        %v1985 = vshll.u32 %v1984, 30
        %v1986 = vsub.s32 %v1982, %v1985
        %vm1987 = vcmp.lt.s32.totalorder %v1986, 0
        %v1988 = vsub.s32 0, %v1986
        %v1989 = vsel %vm1987, %v1988, %v1986
        %v1990 = vclz %v1989
        %v1991 = vsub.s32 %v1990, 2
        %vm1992 = vcmp.gt.s32.totalorder 0, %v1991
        %v1993 = vsel %vm1992, 0, %v1991
        %v1994 = vsub.s32 32, %v1993
        %v1995 = vshll.u32 %v1986, %v1993
        %v1996 = vshrl.u32 %v1978, %v1994
        %v1997 = vor.u32 %v1995, %v1996
        %v1998 = vsub.s32 4294967266, %v1993
        %v1999 = vadd.s32 %v1998, 127
        %v2000 = vshll.u32 %v1999, 23
        %v2001 = vor.u32 4788187, %v2000
        %v2002 = vand.u32 2147483647, %v2001
        %v2004 = vcvt.s32.f32 %v1997
        %v2005 = vmul.f32 %v2004, %v2002
        %v2006 = vxor.u32 %v2005, 2147483648
        %v2007 = vsel %vm1886, %v2006, %v2005
        %v2008 = vsub.s32 4, %v1984
        %v2009 = vsel %vm1886, %v2008, %v1984
        %v2010 = vsel %vm1885, %v328, %v2007
        %v2011 = vsel %vm1885, 0, %v2009
        %v2012 = vmul.f32 %v2010, %v2010
        %v2013 = vmul.f32 %v2012, -0.001358992
        %v2014 = vadd.f32 %v2013, 0.041655596
        %v2015 = vmul.f32 %v2012, %v2014
        %v2016 = vadd.f32 %v2015, -0.4999988
        %v2017 = vmul.f32 %v2012, %v2016
        %v2018 = vadd.f32 1.0, %v2017
        %v2019 = vmul.f32 %v2010, %v2010
        %v2020 = vmul.f32 %v2019, -0.00019511016
        %v2021 = vadd.f32 %v2020, 0.008332121
        %v2022 = vmul.f32 %v2019, %v2021
        %v2023 = vadd.f32 %v2022, -0.16666654
        %v2024 = vmul.f32 %v2019, %v2023
        %v2025 = vadd.f32 %v2024, 1.0
        %v2026 = vmul.f32 %v2025, %v2010
        %vm2027 = vweird.f32 %v328
        %v2028 = vadd.s32 %v2011, 3
        %v2029 = vand.u32 %v2028, 3
        %vm2030 = vcmp.lt.s32.totalorder %v2029, 2
        %vm2031 = vcmp.eq.s32.totalorder %v2029, 0
        %v2032 = vxor.u32 %v2026, 2147483648
        %v2033 = vsel %vm2031, %v2018, %v2032
        %vm2034 = vcmp.eq.s32.totalorder %v2029, 2
        %v2035 = vxor.u32 %v2018, 2147483648
        %v2036 = vsel %vm2034, %v2035, %v2026
        %v2037 = vsel %vm2030, %v2033, %v2036
        %v2038 = vsel %vm2027, nan, %v2037
        %v2039 = vand.u32 2147483647, %v329
        %vm2040 = vcmp.le.f32.partialorder %v2039, 0.7853982
        %vm2041 = vcmp.lt.s32.totalorder %v329, 0
        %v2042 = vand.u32 %v329, 2139095040
        %v2043 = vshrl.u32 %v2042, 23
        %v2044 = vsub.s32 %v2043, 127
        %v2045 = vand.u32 2147483647, %v329
        %v2046 = vand.u32 %v2045, 8388607
        %v2047 = vor.u32 %v2046, 8388608
        %v2048 = vsub.s32 0, %v2047
        %v2049 = vadd.s32 %v2044, 1
        %vm2050 = vcmp.gt.s32.totalorder %v2049, 0
        %v2051 = vsel %vm2050, %v2049, 0
        %v2052 = vshrl.u32 %v2051, 5
        %v2053 = vand.u32 %v2051, 31
        %v2054 = vsub.s32 32, %v2053
        %v2055 = vshrl.u32 683565275, %v2054
        %v2056 = vshll.u32 683565275, %v2053
        %v2057 = vshrl.u32 2475754826, %v2054
        %v2058 = vor.u32 %v2056, %v2057
        %v2059 = vshll.u32 2475754826, %v2053
        %v2060 = vshrl.u32 2131351028, %v2054
        %v2061 = vor.u32 %v2059, %v2060
        %v2062 = vshll.u32 2131351028, %v2053
        %v2063 = vshrl.u32 2102212464, %v2054
        %v2064 = vor.u32 %v2062, %v2063
        %v2065 = vshll.u32 2102212464, %v2053
        %v2066 = vshrl.u32 920167782, %v2054
        %v2067 = vor.u32 %v2065, %v2066
        %v2068 = vshll.u32 920167782, %v2053
        %v2069 = vshrl.u32 1326507024, %v2054
        %v2070 = vor.u32 %v2068, %v2069
        %vm2071 = vcmp.lt.s32.totalorder %v2052, 1
        %vm2072 = vcmp.lt.s32.totalorder %v2052, 2
        %vm2073 = vcmp.lt.s32.totalorder %v2052, 3
        %vm2074 = vcmp.lt.s32.totalorder %v2052, 4
        %v2075 = vsel %vm2071, %v2055, %v2058
        %v2076 = vsel %vm2074, %v2064, 2102212464
        %v2077 = vsel %vm2073, %v2061, %v2076
        %v2078 = vsel %vm2072, %v2075, %v2077
        %v2079 = vsel %vm2071, %v2058, %v2061
        %v2080 = vsel %vm2074, %v2067, 920167782
        %v2081 = vsel %vm2073, %v2064, %v2080
        %v2082 = vsel %vm2072, %v2079, %v2081
        %v2083 = vsel %vm2071, %v2061, %v2064
        %v2084 = vsel %vm2074, %v2070, 1326507024
        %v2085 = vsel %vm2073, %v2067, %v2084
        %v2086 = vsel %vm2072, %v2083, %v2085
        %v2087 = vshll.u32 %v2047, 8
        %v2088 = vand.u32 %v2087, 65535
        %v2089 = vshrl.u32 %v2087, 16
        %v2090 = vand.u32 %v2086, 65535
        %v2091 = vshrl.u32 %v2086, 16
        %v2092 = vmul.u32 %v2088, %v2090
        %v2093 = vmul.u32 %v2088, %v2091
        %v2094 = vmul.u32 %v2089, %v2090
        %v2095 = vmul.u32 %v2089, %v2091
        %v2096 = vshll.u32 %v2093, 16
        %v2097 = vshrl.u32 %v2093, 16
        %v2098 = vshll.u32 %v2094, 16
        %v2099 = vshrl.u32 %v2094, 16
        %vm2100 = vc.u32 %v2092, %v2096
        %v2101 = vsel %vm2100, 1, 0
        %v2102 = vadd.s32 %v2092, %v2096
        %v2103 = vadd.s32 %v2095, %v2101
        %vm2104 = vc.u32 %v2102, %v2098
        %v2105 = vsel %vm2104, 1, 0
        %v2106 = vadd.s32 %v2102, %v2098
        %v2107 = vadd.s32 %v2103, %v2105
        %v2108 = vadd.s32 %v2107, %v2097
        %v2109 = vadd.s32 %v2108, %v2099
        %v2110 = vand.u32 %v2087, 65535
        %v2111 = vshrl.u32 %v2087, 16
        %v2112 = vand.u32 %v2082, 65535
        %v2113 = vshrl.u32 %v2082, 16
        %v2114 = vmul.u32 %v2110, %v2112
        %v2115 = vmul.u32 %v2110, %v2113
        %v2116 = vmul.u32 %v2111, %v2112
        %v2117 = vmul.u32 %v2111, %v2113
        %v2118 = vshll.u32 %v2115, 16
        %v2119 = vshrl.u32 %v2115, 16
        %v2120 = vshll.u32 %v2116, 16
        %v2121 = vshrl.u32 %v2116, 16
        %vm2122 = vc.u32 %v2114, %v2118
        %v2123 = vsel %vm2122, 1, 0
        %v2124 = vadd.s32 %v2114, %v2118
        %v2125 = vadd.s32 %v2117, %v2123
        %vm2126 = vc.u32 %v2124, %v2120
        %v2127 = vsel %vm2126, 1, 0
        %v2128 = vadd.s32 %v2124, %v2120
        %v2129 = vadd.s32 %v2125, %v2127
        %v2130 = vadd.s32 %v2129, %v2119
        %v2131 = vadd.s32 %v2130, %v2121
        %v2132 = vmul.u32 %v2087, %v2078
        %v2133 = vadd.s32 %v2109, %v2128
        %vm2134 = vc.u32 %v2109, %v2128
        %v2135 = vadd.s32 %v2131, 1
        %v2136 = vsel %vm2134, %v2135, %v2131
        %v2137 = vadd.s32 %v2132, %v2136
        %v2138 = vadd.s32 %v2137, 536870912
        %v2139 = vshrl.u32 %v2138, 30
        %v2140 = vshll.u32 %v2139, 30
        %v2141 = vsub.s32 %v2137, %v2140
        %vm2142 = vcmp.lt.s32.totalorder %v2141, 0
        %v2143 = vsub.s32 0, %v2141
        %v2144 = vsel %vm2142, %v2143, %v2141
        %v2145 = vclz %v2144
        %v2146 = vsub.s32 %v2145, 2
        %vm2147 = vcmp.gt.s32.totalorder 0, %v2146
        %v2148 = vsel %vm2147, 0, %v2146
        %v2149 = vsub.s32 32, %v2148
        %v2150 = vshll.u32 %v2141, %v2148
        %v2151 = vshrl.u32 %v2133, %v2149
        %v2152 = vor.u32 %v2150, %v2151
        %v2153 = vsub.s32 4294967266, %v2148
        %v2154 = vadd.s32 %v2153, 127
        %v2155 = vshll.u32 %v2154, 23
        %v2156 = vor.u32 4788187, %v2155
        %v2157 = vand.u32 2147483647, %v2156
        %v2159 = vcvt.s32.f32 %v2152
        %v2160 = vmul.f32 %v2159, %v2157
        %v2161 = vxor.u32 %v2160, 2147483648
        %v2162 = vsel %vm2041, %v2161, %v2160
        %v2163 = vsub.s32 4, %v2139
        %v2164 = vsel %vm2041, %v2163, %v2139
        %v2165 = vsel %vm2040, %v329, %v2162
        %v2166 = vsel %vm2040, 0, %v2164
        %v2167 = vmul.f32 %v2165, %v2165
        %v2168 = vmul.f32 %v2167, -0.001358992
        %v2169 = vadd.f32 %v2168, 0.041655596
        %v2170 = vmul.f32 %v2167, %v2169
        %v2171 = vadd.f32 %v2170, -0.4999988
        %v2172 = vmul.f32 %v2167, %v2171
        %v2173 = vadd.f32 1.0, %v2172
        %v2174 = vmul.f32 %v2165, %v2165
        %v2175 = vmul.f32 %v2174, -0.00019511016
        %v2176 = vadd.f32 %v2175, 0.008332121
        %v2177 = vmul.f32 %v2174, %v2176
        %v2178 = vadd.f32 %v2177, -0.16666654
        %v2179 = vmul.f32 %v2174, %v2178
        %v2180 = vadd.f32 %v2179, 1.0
        %v2181 = vmul.f32 %v2180, %v2165
        %vm2182 = vweird.f32 %v329
        %v2183 = vadd.s32 %v2166, 3
        %v2184 = vand.u32 %v2183, 3
        %vm2185 = vcmp.lt.s32.totalorder %v2184, 2
        %vm2186 = vcmp.eq.s32.totalorder %v2184, 0
        %v2187 = vxor.u32 %v2181, 2147483648
        %v2188 = vsel %vm2186, %v2173, %v2187
        %vm2189 = vcmp.eq.s32.totalorder %v2184, 2
        %v2190 = vxor.u32 %v2173, 2147483648
        %v2191 = vsel %vm2189, %v2190, %v2181
        %v2192 = vsel %vm2185, %v2188, %v2191
        %v2193 = vsel %vm2182, nan, %v2192
        %v2194 = vand.u32 2147483647, %v330
        %vm2195 = vcmp.le.f32.partialorder %v2194, 0.7853982
        %vm2196 = vcmp.lt.s32.totalorder %v330, 0
        %v2197 = vand.u32 %v330, 2139095040
        %v2198 = vshrl.u32 %v2197, 23
        %v2199 = vsub.s32 %v2198, 127
        %v2200 = vand.u32 2147483647, %v330
        %v2201 = vand.u32 %v2200, 8388607
        %v2202 = vor.u32 %v2201, 8388608
        %v2203 = vsub.s32 0, %v2202
        %v2204 = vadd.s32 %v2199, 1
        %vm2205 = vcmp.gt.s32.totalorder %v2204, 0
        %v2206 = vsel %vm2205, %v2204, 0
        %v2207 = vshrl.u32 %v2206, 5
        %v2208 = vand.u32 %v2206, 31
        %v2209 = vsub.s32 32, %v2208
        %v2210 = vshrl.u32 683565275, %v2209
        %v2211 = vshll.u32 683565275, %v2208
        %v2212 = vshrl.u32 2475754826, %v2209
        %v2213 = vor.u32 %v2211, %v2212
        %v2214 = vshll.u32 2475754826, %v2208
        %v2215 = vshrl.u32 2131351028, %v2209
        %v2216 = vor.u32 %v2214, %v2215
        %v2217 = vshll.u32 2131351028, %v2208
        %v2218 = vshrl.u32 2102212464, %v2209
        %v2219 = vor.u32 %v2217, %v2218
        %v2220 = vshll.u32 2102212464, %v2208
        %v2221 = vshrl.u32 920167782, %v2209
        %v2222 = vor.u32 %v2220, %v2221
        %v2223 = vshll.u32 920167782, %v2208
        %v2224 = vshrl.u32 1326507024, %v2209
        %v2225 = vor.u32 %v2223, %v2224
        %vm2226 = vcmp.lt.s32.totalorder %v2207, 1
        %vm2227 = vcmp.lt.s32.totalorder %v2207, 2
        %vm2228 = vcmp.lt.s32.totalorder %v2207, 3
        %vm2229 = vcmp.lt.s32.totalorder %v2207, 4
        %v2230 = vsel %vm2226, %v2210, %v2213
        %v2231 = vsel %vm2229, %v2219, 2102212464
        %v2232 = vsel %vm2228, %v2216, %v2231
        %v2233 = vsel %vm2227, %v2230, %v2232
        %v2234 = vsel %vm2226, %v2213, %v2216
        %v2235 = vsel %vm2229, %v2222, 920167782
        %v2236 = vsel %vm2228, %v2219, %v2235
        %v2237 = vsel %vm2227, %v2234, %v2236
        %v2238 = vsel %vm2226, %v2216, %v2219
        %v2239 = vsel %vm2229, %v2225, 1326507024
        %v2240 = vsel %vm2228, %v2222, %v2239
        %v2241 = vsel %vm2227, %v2238, %v2240
        %v2242 = vshll.u32 %v2202, 8
        %v2243 = vand.u32 %v2242, 65535
        %v2244 = vshrl.u32 %v2242, 16
        %v2245 = vand.u32 %v2241, 65535
        %v2246 = vshrl.u32 %v2241, 16
        %v2247 = vmul.u32 %v2243, %v2245
        %v2248 = vmul.u32 %v2243, %v2246
        %v2249 = vmul.u32 %v2244, %v2245
        %v2250 = vmul.u32 %v2244, %v2246
        %v2251 = vshll.u32 %v2248, 16
        %v2252 = vshrl.u32 %v2248, 16
        %v2253 = vshll.u32 %v2249, 16
        %v2254 = vshrl.u32 %v2249, 16
        %vm2255 = vc.u32 %v2247, %v2251
        %v2256 = vsel %vm2255, 1, 0
        %v2257 = vadd.s32 %v2247, %v2251
        %v2258 = vadd.s32 %v2250, %v2256
        %vm2259 = vc.u32 %v2257, %v2253
        %v2260 = vsel %vm2259, 1, 0
        %v2261 = vadd.s32 %v2257, %v2253
        %v2262 = vadd.s32 %v2258, %v2260
        %v2263 = vadd.s32 %v2262, %v2252
        %v2264 = vadd.s32 %v2263, %v2254
        %v2265 = vand.u32 %v2242, 65535
        %v2266 = vshrl.u32 %v2242, 16
        %v2267 = vand.u32 %v2237, 65535
        %v2268 = vshrl.u32 %v2237, 16
        %v2269 = vmul.u32 %v2265, %v2267
        %v2270 = vmul.u32 %v2265, %v2268
        %v2271 = vmul.u32 %v2266, %v2267
        %v2272 = vmul.u32 %v2266, %v2268
        %v2273 = vshll.u32 %v2270, 16
        %v2274 = vshrl.u32 %v2270, 16
        %v2275 = vshll.u32 %v2271, 16
        %v2276 = vshrl.u32 %v2271, 16
        %vm2277 = vc.u32 %v2269, %v2273
        %v2278 = vsel %vm2277, 1, 0
        %v2279 = vadd.s32 %v2269, %v2273
        %v2280 = vadd.s32 %v2272, %v2278
        %vm2281 = vc.u32 %v2279, %v2275
        %v2282 = vsel %vm2281, 1, 0
        %v2283 = vadd.s32 %v2279, %v2275
        %v2284 = vadd.s32 %v2280, %v2282
        %v2285 = vadd.s32 %v2284, %v2274
        %v2286 = vadd.s32 %v2285, %v2276
        %v2287 = vmul.u32 %v2242, %v2233
        %v2288 = vadd.s32 %v2264, %v2283
        %vm2289 = vc.u32 %v2264, %v2283
        %v2290 = vadd.s32 %v2286, 1
        %v2291 = vsel %vm2289, %v2290, %v2286
        %v2292 = vadd.s32 %v2287, %v2291
        %v2293 = vadd.s32 %v2292, 536870912
        %v2294 = vshrl.u32 %v2293, 30
        %v2295 = vshll.u32 %v2294, 30
        %v2296 = vsub.s32 %v2292, %v2295
        %vm2297 = vcmp.lt.s32.totalorder %v2296, 0
        %v2298 = vsub.s32 0, %v2296
        %v2299 = vsel %vm2297, %v2298, %v2296
        %v2300 = vclz %v2299
        %v2301 = vsub.s32 %v2300, 2
        %vm2302 = vcmp.gt.s32.totalorder 0, %v2301
        %v2303 = vsel %vm2302, 0, %v2301
        %v2304 = vsub.s32 32, %v2303
        %v2305 = vshll.u32 %v2296, %v2303
        %v2306 = vshrl.u32 %v2288, %v2304
        %v2307 = vor.u32 %v2305, %v2306
        %v2308 = vsub.s32 4294967266, %v2303
        %v2309 = vadd.s32 %v2308, 127
        %v2310 = vshll.u32 %v2309, 23
        %v2311 = vor.u32 4788187, %v2310
        %v2312 = vand.u32 2147483647, %v2311
        %v2314 = vcvt.s32.f32 %v2307
        %v2315 = vmul.f32 %v2314, %v2312
        %v2316 = vxor.u32 %v2315, 2147483648
        %v2317 = vsel %vm2196, %v2316, %v2315
        %v2318 = vsub.s32 4, %v2294
        %v2319 = vsel %vm2196, %v2318, %v2294
        %v2320 = vsel %vm2195, %v330, %v2317
        %v2321 = vsel %vm2195, 0, %v2319
        %v2322 = vmul.f32 %v2320, %v2320
        %v2323 = vmul.f32 %v2322, -0.001358992
        %v2324 = vadd.f32 %v2323, 0.041655596
        %v2325 = vmul.f32 %v2322, %v2324
        %v2326 = vadd.f32 %v2325, -0.4999988
        %v2327 = vmul.f32 %v2322, %v2326
        %v2328 = vadd.f32 1.0, %v2327
        %v2329 = vmul.f32 %v2320, %v2320
        %v2330 = vmul.f32 %v2329, -0.00019511016
        %v2331 = vadd.f32 %v2330, 0.008332121
        %v2332 = vmul.f32 %v2329, %v2331
        %v2333 = vadd.f32 %v2332, -0.16666654
        %v2334 = vmul.f32 %v2329, %v2333
        %v2335 = vadd.f32 %v2334, 1.0
        %v2336 = vmul.f32 %v2335, %v2320
        %vm2337 = vweird.f32 %v330
        %v2338 = vadd.s32 %v2321, 3
        %v2339 = vand.u32 %v2338, 3
        %vm2340 = vcmp.lt.s32.totalorder %v2339, 2
        %vm2341 = vcmp.eq.s32.totalorder %v2339, 0
        %v2342 = vxor.u32 %v2336, 2147483648
        %v2343 = vsel %vm2341, %v2328, %v2342
        %vm2344 = vcmp.eq.s32.totalorder %v2339, 2
        %v2345 = vxor.u32 %v2328, 2147483648
        %v2346 = vsel %vm2344, %v2345, %v2336
        %v2347 = vsel %vm2340, %v2343, %v2346
        %v2348 = vsel %vm2337, nan, %v2347
        %v2349 = vand.u32 2147483647, %v331
        %vm2350 = vcmp.le.f32.partialorder %v2349, 0.7853982
        %vm2351 = vcmp.lt.s32.totalorder %v331, 0
        %v2352 = vand.u32 %v331, 2139095040
        %v2353 = vshrl.u32 %v2352, 23
        %v2354 = vsub.s32 %v2353, 127
        %v2355 = vand.u32 2147483647, %v331
        %v2356 = vand.u32 %v2355, 8388607
        %v2357 = vor.u32 %v2356, 8388608
        %v2358 = vsub.s32 0, %v2357
        %v2359 = vadd.s32 %v2354, 1
        %vm2360 = vcmp.gt.s32.totalorder %v2359, 0
        %v2361 = vsel %vm2360, %v2359, 0
        %v2362 = vshrl.u32 %v2361, 5
        %v2363 = vand.u32 %v2361, 31
        %v2364 = vsub.s32 32, %v2363
        %v2365 = vshrl.u32 683565275, %v2364
        %v2366 = vshll.u32 683565275, %v2363
        %v2367 = vshrl.u32 2475754826, %v2364
        %v2368 = vor.u32 %v2366, %v2367
        %v2369 = vshll.u32 2475754826, %v2363
        %v2370 = vshrl.u32 2131351028, %v2364
        %v2371 = vor.u32 %v2369, %v2370
        %v2372 = vshll.u32 2131351028, %v2363
        %v2373 = vshrl.u32 2102212464, %v2364
        %v2374 = vor.u32 %v2372, %v2373
        %v2375 = vshll.u32 2102212464, %v2363
        %v2376 = vshrl.u32 920167782, %v2364
        %v2377 = vor.u32 %v2375, %v2376
        %v2378 = vshll.u32 920167782, %v2363
        %v2379 = vshrl.u32 1326507024, %v2364
        %v2380 = vor.u32 %v2378, %v2379
        %vm2381 = vcmp.lt.s32.totalorder %v2362, 1
        %vm2382 = vcmp.lt.s32.totalorder %v2362, 2
        %vm2383 = vcmp.lt.s32.totalorder %v2362, 3
        %vm2384 = vcmp.lt.s32.totalorder %v2362, 4
        %v2385 = vsel %vm2381, %v2365, %v2368
        %v2386 = vsel %vm2384, %v2374, 2102212464
        %v2387 = vsel %vm2383, %v2371, %v2386
        %v2388 = vsel %vm2382, %v2385, %v2387
        %v2389 = vsel %vm2381, %v2368, %v2371
        %v2390 = vsel %vm2384, %v2377, 920167782
        %v2391 = vsel %vm2383, %v2374, %v2390
        %v2392 = vsel %vm2382, %v2389, %v2391
        %v2393 = vsel %vm2381, %v2371, %v2374
        %v2394 = vsel %vm2384, %v2380, 1326507024
        %v2395 = vsel %vm2383, %v2377, %v2394
        %v2396 = vsel %vm2382, %v2393, %v2395
        %v2397 = vshll.u32 %v2357, 8
        %v2398 = vand.u32 %v2397, 65535
        %v2399 = vshrl.u32 %v2397, 16
        %v2400 = vand.u32 %v2396, 65535
        %v2401 = vshrl.u32 %v2396, 16
        %v2402 = vmul.u32 %v2398, %v2400
        %v2403 = vmul.u32 %v2398, %v2401
        %v2404 = vmul.u32 %v2399, %v2400
        %v2405 = vmul.u32 %v2399, %v2401
        %v2406 = vshll.u32 %v2403, 16
        %v2407 = vshrl.u32 %v2403, 16
        %v2408 = vshll.u32 %v2404, 16
        %v2409 = vshrl.u32 %v2404, 16
        %vm2410 = vc.u32 %v2402, %v2406
        %v2411 = vsel %vm2410, 1, 0
        %v2412 = vadd.s32 %v2402, %v2406
        %v2413 = vadd.s32 %v2405, %v2411
        %vm2414 = vc.u32 %v2412, %v2408
        %v2415 = vsel %vm2414, 1, 0
        %v2416 = vadd.s32 %v2412, %v2408
        %v2417 = vadd.s32 %v2413, %v2415
        %v2418 = vadd.s32 %v2417, %v2407
        %v2419 = vadd.s32 %v2418, %v2409
        %v2420 = vand.u32 %v2397, 65535
        %v2421 = vshrl.u32 %v2397, 16
        %v2422 = vand.u32 %v2392, 65535
        %v2423 = vshrl.u32 %v2392, 16
        %v2424 = vmul.u32 %v2420, %v2422
        %v2425 = vmul.u32 %v2420, %v2423
        %v2426 = vmul.u32 %v2421, %v2422
        %v2427 = vmul.u32 %v2421, %v2423
        %v2428 = vshll.u32 %v2425, 16
        %v2429 = vshrl.u32 %v2425, 16
        %v2430 = vshll.u32 %v2426, 16
        %v2431 = vshrl.u32 %v2426, 16
        %vm2432 = vc.u32 %v2424, %v2428
        %v2433 = vsel %vm2432, 1, 0
        %v2434 = vadd.s32 %v2424, %v2428
        %v2435 = vadd.s32 %v2427, %v2433
        %vm2436 = vc.u32 %v2434, %v2430
        %v2437 = vsel %vm2436, 1, 0
        %v2438 = vadd.s32 %v2434, %v2430
        %v2439 = vadd.s32 %v2435, %v2437
        %v2440 = vadd.s32 %v2439, %v2429
        %v2441 = vadd.s32 %v2440, %v2431
        %v2442 = vmul.u32 %v2397, %v2388
        %v2443 = vadd.s32 %v2419, %v2438
        %vm2444 = vc.u32 %v2419, %v2438
        %v2445 = vadd.s32 %v2441, 1
        %v2446 = vsel %vm2444, %v2445, %v2441
        %v2447 = vadd.s32 %v2442, %v2446
        %v2448 = vadd.s32 %v2447, 536870912
        %v2449 = vshrl.u32 %v2448, 30
        %v2450 = vshll.u32 %v2449, 30
        %v2451 = vsub.s32 %v2447, %v2450
        %vm2452 = vcmp.lt.s32.totalorder %v2451, 0
        %v2453 = vsub.s32 0, %v2451
        %v2454 = vsel %vm2452, %v2453, %v2451
        %v2455 = vclz %v2454
        %v2456 = vsub.s32 %v2455, 2
        %vm2457 = vcmp.gt.s32.totalorder 0, %v2456
        %v2458 = vsel %vm2457, 0, %v2456
        %v2459 = vsub.s32 32, %v2458
        %v2460 = vshll.u32 %v2451, %v2458
        %v2461 = vshrl.u32 %v2443, %v2459
        %v2462 = vor.u32 %v2460, %v2461
        %v2463 = vsub.s32 4294967266, %v2458
        %v2464 = vadd.s32 %v2463, 127
        %v2465 = vshll.u32 %v2464, 23
        %v2466 = vor.u32 4788187, %v2465
        %v2467 = vand.u32 2147483647, %v2466
        %v2469 = vcvt.s32.f32 %v2462
        %v2470 = vmul.f32 %v2469, %v2467
        %v2471 = vxor.u32 %v2470, 2147483648
        %v2472 = vsel %vm2351, %v2471, %v2470
        %v2473 = vsub.s32 4, %v2449
        %v2474 = vsel %vm2351, %v2473, %v2449
        %v2475 = vsel %vm2350, %v331, %v2472
        %v2476 = vsel %vm2350, 0, %v2474
        %v2477 = vmul.f32 %v2475, %v2475
        %v2478 = vmul.f32 %v2477, -0.001358992
        %v2479 = vadd.f32 %v2478, 0.041655596
        %v2480 = vmul.f32 %v2477, %v2479
        %v2481 = vadd.f32 %v2480, -0.4999988
        %v2482 = vmul.f32 %v2477, %v2481
        %v2483 = vadd.f32 1.0, %v2482
        %v2484 = vmul.f32 %v2475, %v2475
        %v2485 = vmul.f32 %v2484, -0.00019511016
        %v2486 = vadd.f32 %v2485, 0.008332121
        %v2487 = vmul.f32 %v2484, %v2486
        %v2488 = vadd.f32 %v2487, -0.16666654
        %v2489 = vmul.f32 %v2484, %v2488
        %v2490 = vadd.f32 %v2489, 1.0
        %v2491 = vmul.f32 %v2490, %v2475
        %vm2492 = vweird.f32 %v331
        %v2493 = vadd.s32 %v2476, 3
        %v2494 = vand.u32 %v2493, 3
        %vm2495 = vcmp.lt.s32.totalorder %v2494, 2
        %vm2496 = vcmp.eq.s32.totalorder %v2494, 0
        %v2497 = vxor.u32 %v2491, 2147483648
        %v2498 = vsel %vm2496, %v2483, %v2497
        %vm2499 = vcmp.eq.s32.totalorder %v2494, 2
        %v2500 = vxor.u32 %v2483, 2147483648
        %v2501 = vsel %vm2499, %v2500, %v2491
        %v2502 = vsel %vm2495, %v2498, %v2501
        %v2503 = vsel %vm2492, nan, %v2502
        %v2504 = vand.u32 2147483647, %v332
        %vm2505 = vcmp.le.f32.partialorder %v2504, 0.7853982
        %vm2506 = vcmp.lt.s32.totalorder %v332, 0
        %v2507 = vand.u32 %v332, 2139095040
        %v2508 = vshrl.u32 %v2507, 23
        %v2509 = vsub.s32 %v2508, 127
        %v2510 = vand.u32 2147483647, %v332
        %v2511 = vand.u32 %v2510, 8388607
        %v2512 = vor.u32 %v2511, 8388608
        %v2513 = vsub.s32 0, %v2512
        %v2514 = vadd.s32 %v2509, 1
        %vm2515 = vcmp.gt.s32.totalorder %v2514, 0
        %v2516 = vsel %vm2515, %v2514, 0
        %v2517 = vshrl.u32 %v2516, 5
        %v2518 = vand.u32 %v2516, 31
        %v2519 = vsub.s32 32, %v2518
        %v2520 = vshrl.u32 683565275, %v2519
        %v2521 = vshll.u32 683565275, %v2518
        %v2522 = vshrl.u32 2475754826, %v2519
        %v2523 = vor.u32 %v2521, %v2522
        %v2524 = vshll.u32 2475754826, %v2518
        %v2525 = vshrl.u32 2131351028, %v2519
        %v2526 = vor.u32 %v2524, %v2525
        %v2527 = vshll.u32 2131351028, %v2518
        %v2528 = vshrl.u32 2102212464, %v2519
        %v2529 = vor.u32 %v2527, %v2528
        %v2530 = vshll.u32 2102212464, %v2518
        %v2531 = vshrl.u32 920167782, %v2519
        %v2532 = vor.u32 %v2530, %v2531
        %v2533 = vshll.u32 920167782, %v2518
        %v2534 = vshrl.u32 1326507024, %v2519
        %v2535 = vor.u32 %v2533, %v2534
        %vm2536 = vcmp.lt.s32.totalorder %v2517, 1
        %vm2537 = vcmp.lt.s32.totalorder %v2517, 2
        %vm2538 = vcmp.lt.s32.totalorder %v2517, 3
        %vm2539 = vcmp.lt.s32.totalorder %v2517, 4
        %v2540 = vsel %vm2536, %v2520, %v2523
        %v2541 = vsel %vm2539, %v2529, 2102212464
        %v2542 = vsel %vm2538, %v2526, %v2541
        %v2543 = vsel %vm2537, %v2540, %v2542
        %v2544 = vsel %vm2536, %v2523, %v2526
        %v2545 = vsel %vm2539, %v2532, 920167782
        %v2546 = vsel %vm2538, %v2529, %v2545
        %v2547 = vsel %vm2537, %v2544, %v2546
        %v2548 = vsel %vm2536, %v2526, %v2529
        %v2549 = vsel %vm2539, %v2535, 1326507024
        %v2550 = vsel %vm2538, %v2532, %v2549
        %v2551 = vsel %vm2537, %v2548, %v2550
        %v2552 = vshll.u32 %v2512, 8
        %v2553 = vand.u32 %v2552, 65535
        %v2554 = vshrl.u32 %v2552, 16
        %v2555 = vand.u32 %v2551, 65535
        %v2556 = vshrl.u32 %v2551, 16
        %v2557 = vmul.u32 %v2553, %v2555
        %v2558 = vmul.u32 %v2553, %v2556
        %v2559 = vmul.u32 %v2554, %v2555
        %v2560 = vmul.u32 %v2554, %v2556
        %v2561 = vshll.u32 %v2558, 16
        %v2562 = vshrl.u32 %v2558, 16
        %v2563 = vshll.u32 %v2559, 16
        %v2564 = vshrl.u32 %v2559, 16
        %vm2565 = vc.u32 %v2557, %v2561
        %v2566 = vsel %vm2565, 1, 0
        %v2567 = vadd.s32 %v2557, %v2561
        %v2568 = vadd.s32 %v2560, %v2566
        %vm2569 = vc.u32 %v2567, %v2563
        %v2570 = vsel %vm2569, 1, 0
        %v2571 = vadd.s32 %v2567, %v2563
        %v2572 = vadd.s32 %v2568, %v2570
        %v2573 = vadd.s32 %v2572, %v2562
        %v2574 = vadd.s32 %v2573, %v2564
        %v2575 = vand.u32 %v2552, 65535
        %v2576 = vshrl.u32 %v2552, 16
        %v2577 = vand.u32 %v2547, 65535
        %v2578 = vshrl.u32 %v2547, 16
        %v2579 = vmul.u32 %v2575, %v2577
        %v2580 = vmul.u32 %v2575, %v2578
        %v2581 = vmul.u32 %v2576, %v2577
        %v2582 = vmul.u32 %v2576, %v2578
        %v2583 = vshll.u32 %v2580, 16
        %v2584 = vshrl.u32 %v2580, 16
        %v2585 = vshll.u32 %v2581, 16
        %v2586 = vshrl.u32 %v2581, 16
        %vm2587 = vc.u32 %v2579, %v2583
        %v2588 = vsel %vm2587, 1, 0
        %v2589 = vadd.s32 %v2579, %v2583
        %v2590 = vadd.s32 %v2582, %v2588
        %vm2591 = vc.u32 %v2589, %v2585
        %v2592 = vsel %vm2591, 1, 0
        %v2593 = vadd.s32 %v2589, %v2585
        %v2594 = vadd.s32 %v2590, %v2592
        %v2595 = vadd.s32 %v2594, %v2584
        %v2596 = vadd.s32 %v2595, %v2586
        %v2597 = vmul.u32 %v2552, %v2543
        %v2598 = vadd.s32 %v2574, %v2593
        %vm2599 = vc.u32 %v2574, %v2593
        %v2600 = vadd.s32 %v2596, 1
        %v2601 = vsel %vm2599, %v2600, %v2596
        %v2602 = vadd.s32 %v2597, %v2601
        %v2603 = vadd.s32 %v2602, 536870912
        %v2604 = vshrl.u32 %v2603, 30
        %v2605 = vshll.u32 %v2604, 30
        %v2606 = vsub.s32 %v2602, %v2605
        %vm2607 = vcmp.lt.s32.totalorder %v2606, 0
        %v2608 = vsub.s32 0, %v2606
        %v2609 = vsel %vm2607, %v2608, %v2606
        %v2610 = vclz %v2609
        %v2611 = vsub.s32 %v2610, 2
        %vm2612 = vcmp.gt.s32.totalorder 0, %v2611
        %v2613 = vsel %vm2612, 0, %v2611
        %v2614 = vsub.s32 32, %v2613
        %v2615 = vshll.u32 %v2606, %v2613
        %v2616 = vshrl.u32 %v2598, %v2614
        %v2617 = vor.u32 %v2615, %v2616
        %v2618 = vsub.s32 4294967266, %v2613
        %v2619 = vadd.s32 %v2618, 127
        %v2620 = vshll.u32 %v2619, 23
        %v2621 = vor.u32 4788187, %v2620
        %v2622 = vand.u32 2147483647, %v2621
        %v2624 = vcvt.s32.f32 %v2617
        %v2625 = vmul.f32 %v2624, %v2622
        %v2626 = vxor.u32 %v2625, 2147483648
        %v2627 = vsel %vm2506, %v2626, %v2625
        %v2628 = vsub.s32 4, %v2604
        %v2629 = vsel %vm2506, %v2628, %v2604
        %v2630 = vsel %vm2505, %v332, %v2627
        %v2631 = vsel %vm2505, 0, %v2629
        %v2632 = vmul.f32 %v2630, %v2630
        %v2633 = vmul.f32 %v2632, -0.001358992
        %v2634 = vadd.f32 %v2633, 0.041655596
        %v2635 = vmul.f32 %v2632, %v2634
        %v2636 = vadd.f32 %v2635, -0.4999988
        %v2637 = vmul.f32 %v2632, %v2636
        %v2638 = vadd.f32 1.0, %v2637
        %v2639 = vmul.f32 %v2630, %v2630
        %v2640 = vmul.f32 %v2639, -0.00019511016
        %v2641 = vadd.f32 %v2640, 0.008332121
        %v2642 = vmul.f32 %v2639, %v2641
        %v2643 = vadd.f32 %v2642, -0.16666654
        %v2644 = vmul.f32 %v2639, %v2643
        %v2645 = vadd.f32 %v2644, 1.0
        %v2646 = vmul.f32 %v2645, %v2630
        %vm2647 = vweird.f32 %v332
        %v2648 = vadd.s32 %v2631, 3
        %v2649 = vand.u32 %v2648, 3
        %vm2650 = vcmp.lt.s32.totalorder %v2649, 2
        %vm2651 = vcmp.eq.s32.totalorder %v2649, 0
        %v2652 = vxor.u32 %v2646, 2147483648
        %v2653 = vsel %vm2651, %v2638, %v2652
        %vm2654 = vcmp.eq.s32.totalorder %v2649, 2
        %v2655 = vxor.u32 %v2638, 2147483648
        %v2656 = vsel %vm2654, %v2655, %v2646
        %v2657 = vsel %vm2650, %v2653, %v2656
        %v2658 = vsel %vm2647, nan, %v2657
        %v2659 = vand.u32 2147483647, %v333
        %vm2660 = vcmp.le.f32.partialorder %v2659, 0.7853982
        %vm2661 = vcmp.lt.s32.totalorder %v333, 0
        %v2662 = vand.u32 %v333, 2139095040
        %v2663 = vshrl.u32 %v2662, 23
        %v2664 = vsub.s32 %v2663, 127
        %v2665 = vand.u32 2147483647, %v333
        %v2666 = vand.u32 %v2665, 8388607
        %v2667 = vor.u32 %v2666, 8388608
        %v2668 = vsub.s32 0, %v2667
        %v2669 = vadd.s32 %v2664, 1
        %vm2670 = vcmp.gt.s32.totalorder %v2669, 0
        %v2671 = vsel %vm2670, %v2669, 0
        %v2672 = vshrl.u32 %v2671, 5
        %v2673 = vand.u32 %v2671, 31
        %v2674 = vsub.s32 32, %v2673
        %v2675 = vshrl.u32 683565275, %v2674
        %v2676 = vshll.u32 683565275, %v2673
        %v2677 = vshrl.u32 2475754826, %v2674
        %v2678 = vor.u32 %v2676, %v2677
        %v2679 = vshll.u32 2475754826, %v2673
        %v2680 = vshrl.u32 2131351028, %v2674
        %v2681 = vor.u32 %v2679, %v2680
        %v2682 = vshll.u32 2131351028, %v2673
        %v2683 = vshrl.u32 2102212464, %v2674
        %v2684 = vor.u32 %v2682, %v2683
        %v2685 = vshll.u32 2102212464, %v2673
        %v2686 = vshrl.u32 920167782, %v2674
        %v2687 = vor.u32 %v2685, %v2686
        %v2688 = vshll.u32 920167782, %v2673
        %v2689 = vshrl.u32 1326507024, %v2674
        %v2690 = vor.u32 %v2688, %v2689
        %vm2691 = vcmp.lt.s32.totalorder %v2672, 1
        %vm2692 = vcmp.lt.s32.totalorder %v2672, 2
        %vm2693 = vcmp.lt.s32.totalorder %v2672, 3
        %vm2694 = vcmp.lt.s32.totalorder %v2672, 4
        %v2695 = vsel %vm2691, %v2675, %v2678
        %v2696 = vsel %vm2694, %v2684, 2102212464
        %v2697 = vsel %vm2693, %v2681, %v2696
        %v2698 = vsel %vm2692, %v2695, %v2697
        %v2699 = vsel %vm2691, %v2678, %v2681
        %v2700 = vsel %vm2694, %v2687, 920167782
        %v2701 = vsel %vm2693, %v2684, %v2700
        %v2702 = vsel %vm2692, %v2699, %v2701
        %v2703 = vsel %vm2691, %v2681, %v2684
        %v2704 = vsel %vm2694, %v2690, 1326507024
        %v2705 = vsel %vm2693, %v2687, %v2704
        %v2706 = vsel %vm2692, %v2703, %v2705
        %v2707 = vshll.u32 %v2667, 8
        %v2708 = vand.u32 %v2707, 65535
        %v2709 = vshrl.u32 %v2707, 16
        %v2710 = vand.u32 %v2706, 65535
        %v2711 = vshrl.u32 %v2706, 16
        %v2712 = vmul.u32 %v2708, %v2710
        %v2713 = vmul.u32 %v2708, %v2711
        %v2714 = vmul.u32 %v2709, %v2710
        %v2715 = vmul.u32 %v2709, %v2711
        %v2716 = vshll.u32 %v2713, 16
        %v2717 = vshrl.u32 %v2713, 16
        %v2718 = vshll.u32 %v2714, 16
        %v2719 = vshrl.u32 %v2714, 16
        %vm2720 = vc.u32 %v2712, %v2716
        %v2721 = vsel %vm2720, 1, 0
        %v2722 = vadd.s32 %v2712, %v2716
        %v2723 = vadd.s32 %v2715, %v2721
        %vm2724 = vc.u32 %v2722, %v2718
        %v2725 = vsel %vm2724, 1, 0
        %v2726 = vadd.s32 %v2722, %v2718
        %v2727 = vadd.s32 %v2723, %v2725
        %v2728 = vadd.s32 %v2727, %v2717
        %v2729 = vadd.s32 %v2728, %v2719
        %v2730 = vand.u32 %v2707, 65535
        %v2731 = vshrl.u32 %v2707, 16
        %v2732 = vand.u32 %v2702, 65535
        %v2733 = vshrl.u32 %v2702, 16
        %v2734 = vmul.u32 %v2730, %v2732
        %v2735 = vmul.u32 %v2730, %v2733
        %v2736 = vmul.u32 %v2731, %v2732
        %v2737 = vmul.u32 %v2731, %v2733
        %v2738 = vshll.u32 %v2735, 16
        %v2739 = vshrl.u32 %v2735, 16
        %v2740 = vshll.u32 %v2736, 16
        %v2741 = vshrl.u32 %v2736, 16
        %vm2742 = vc.u32 %v2734, %v2738
        %v2743 = vsel %vm2742, 1, 0
        %v2744 = vadd.s32 %v2734, %v2738
        %v2745 = vadd.s32 %v2737, %v2743
        %vm2746 = vc.u32 %v2744, %v2740
        %v2747 = vsel %vm2746, 1, 0
        %v2748 = vadd.s32 %v2744, %v2740
        %v2749 = vadd.s32 %v2745, %v2747
        %v2750 = vadd.s32 %v2749, %v2739
        %v2751 = vadd.s32 %v2750, %v2741
        %v2752 = vmul.u32 %v2707, %v2698
        %v2753 = vadd.s32 %v2729, %v2748
        %vm2754 = vc.u32 %v2729, %v2748
        %v2755 = vadd.s32 %v2751, 1
        %v2756 = vsel %vm2754, %v2755, %v2751
        %v2757 = vadd.s32 %v2752, %v2756
        %v2758 = vadd.s32 %v2757, 536870912
        %v2759 = vshrl.u32 %v2758, 30
        %v2760 = vshll.u32 %v2759, 30
        %v2761 = vsub.s32 %v2757, %v2760
        %vm2762 = vcmp.lt.s32.totalorder %v2761, 0
        %v2763 = vsub.s32 0, %v2761
        %v2764 = vsel %vm2762, %v2763, %v2761
        %v2765 = vclz %v2764
        %v2766 = vsub.s32 %v2765, 2
        %vm2767 = vcmp.gt.s32.totalorder 0, %v2766
        %v2768 = vsel %vm2767, 0, %v2766
        %v2769 = vsub.s32 32, %v2768
        %v2770 = vshll.u32 %v2761, %v2768
        %v2771 = vshrl.u32 %v2753, %v2769
        %v2772 = vor.u32 %v2770, %v2771
        %v2773 = vsub.s32 4294967266, %v2768
        %v2774 = vadd.s32 %v2773, 127
        %v2775 = vshll.u32 %v2774, 23
        %v2776 = vor.u32 4788187, %v2775
        %v2777 = vand.u32 2147483647, %v2776
        %v2779 = vcvt.s32.f32 %v2772
        %v2780 = vmul.f32 %v2779, %v2777
        %v2781 = vxor.u32 %v2780, 2147483648
        %v2782 = vsel %vm2661, %v2781, %v2780
        %v2783 = vsub.s32 4, %v2759
        %v2784 = vsel %vm2661, %v2783, %v2759
        %v2785 = vsel %vm2660, %v333, %v2782
        %v2786 = vsel %vm2660, 0, %v2784
        %v2787 = vmul.f32 %v2785, %v2785
        %v2788 = vmul.f32 %v2787, -0.001358992
        %v2789 = vadd.f32 %v2788, 0.041655596
        %v2790 = vmul.f32 %v2787, %v2789
        %v2791 = vadd.f32 %v2790, -0.4999988
        %v2792 = vmul.f32 %v2787, %v2791
        %v2793 = vadd.f32 1.0, %v2792
        %v2794 = vmul.f32 %v2785, %v2785
        %v2795 = vmul.f32 %v2794, -0.00019511016
        %v2796 = vadd.f32 %v2795, 0.008332121
        %v2797 = vmul.f32 %v2794, %v2796
        %v2798 = vadd.f32 %v2797, -0.16666654
        %v2799 = vmul.f32 %v2794, %v2798
        %v2800 = vadd.f32 %v2799, 1.0
        %v2801 = vmul.f32 %v2800, %v2785
        %vm2802 = vweird.f32 %v333
        %v2803 = vadd.s32 %v2786, 3
        %v2804 = vand.u32 %v2803, 3
        %vm2805 = vcmp.lt.s32.totalorder %v2804, 2
        %vm2806 = vcmp.eq.s32.totalorder %v2804, 0
        %v2807 = vxor.u32 %v2801, 2147483648
        %v2808 = vsel %vm2806, %v2793, %v2807
        %vm2809 = vcmp.eq.s32.totalorder %v2804, 2
        %v2810 = vxor.u32 %v2793, 2147483648
        %v2811 = vsel %vm2809, %v2810, %v2801
        %v2812 = vsel %vm2805, %v2808, %v2811
        %v2813 = vsel %vm2802, nan, %v2812
        %v2814 = vand.u32 2147483647, %v301
        %vm2815 = vcmp.le.f32.partialorder %v2814, 0.7853982
        %vm2816 = vcmp.lt.s32.totalorder %v301, 0
        %v2817 = vand.u32 %v301, 2139095040
        %v2818 = vshrl.u32 %v2817, 23
        %v2819 = vsub.s32 %v2818, 127
        %v2820 = vand.u32 2147483647, %v301
        %v2821 = vand.u32 %v2820, 8388607
        %v2822 = vor.u32 %v2821, 8388608
        %v2823 = vsub.s32 0, %v2822
        %v2824 = vadd.s32 %v2819, 1
        %vm2825 = vcmp.gt.s32.totalorder %v2824, 0
        %v2826 = vsel %vm2825, %v2824, 0
        %v2827 = vshrl.u32 %v2826, 5
        %v2828 = vand.u32 %v2826, 31
        %v2829 = vsub.s32 32, %v2828
        %v2830 = vshrl.u32 683565275, %v2829
        %v2831 = vshll.u32 683565275, %v2828
        %v2832 = vshrl.u32 2475754826, %v2829
        %v2833 = vor.u32 %v2831, %v2832
        %v2834 = vshll.u32 2475754826, %v2828
        %v2835 = vshrl.u32 2131351028, %v2829
        %v2836 = vor.u32 %v2834, %v2835
        %v2837 = vshll.u32 2131351028, %v2828
        %v2838 = vshrl.u32 2102212464, %v2829
        %v2839 = vor.u32 %v2837, %v2838
        %v2840 = vshll.u32 2102212464, %v2828
        %v2841 = vshrl.u32 920167782, %v2829
        %v2842 = vor.u32 %v2840, %v2841
        %v2843 = vshll.u32 920167782, %v2828
        %v2844 = vshrl.u32 1326507024, %v2829
        %v2845 = vor.u32 %v2843, %v2844
        %vm2846 = vcmp.lt.s32.totalorder %v2827, 1
        %vm2847 = vcmp.lt.s32.totalorder %v2827, 2
        %vm2848 = vcmp.lt.s32.totalorder %v2827, 3
        %vm2849 = vcmp.lt.s32.totalorder %v2827, 4
        %v2850 = vsel %vm2846, %v2830, %v2833
        %v2851 = vsel %vm2849, %v2839, 2102212464
        %v2852 = vsel %vm2848, %v2836, %v2851
        %v2853 = vsel %vm2847, %v2850, %v2852
        %v2854 = vsel %vm2846, %v2833, %v2836
        %v2855 = vsel %vm2849, %v2842, 920167782
        %v2856 = vsel %vm2848, %v2839, %v2855
        %v2857 = vsel %vm2847, %v2854, %v2856
        %v2858 = vsel %vm2846, %v2836, %v2839
        %v2859 = vsel %vm2849, %v2845, 1326507024
        %v2860 = vsel %vm2848, %v2842, %v2859
        %v2861 = vsel %vm2847, %v2858, %v2860
        %v2862 = vshll.u32 %v2822, 8
        %v2863 = vand.u32 %v2862, 65535
        %v2864 = vshrl.u32 %v2862, 16
        %v2865 = vand.u32 %v2861, 65535
        %v2866 = vshrl.u32 %v2861, 16
        %v2867 = vmul.u32 %v2863, %v2865
        %v2868 = vmul.u32 %v2863, %v2866
        %v2869 = vmul.u32 %v2864, %v2865
        %v2870 = vmul.u32 %v2864, %v2866
        %v2871 = vshll.u32 %v2868, 16
        %v2872 = vshrl.u32 %v2868, 16
        %v2873 = vshll.u32 %v2869, 16
        %v2874 = vshrl.u32 %v2869, 16
        %vm2875 = vc.u32 %v2867, %v2871
        %v2876 = vsel %vm2875, 1, 0
        %v2877 = vadd.s32 %v2867, %v2871
        %v2878 = vadd.s32 %v2870, %v2876
        %vm2879 = vc.u32 %v2877, %v2873
        %v2880 = vsel %vm2879, 1, 0
        %v2881 = vadd.s32 %v2877, %v2873
        %v2882 = vadd.s32 %v2878, %v2880
        %v2883 = vadd.s32 %v2882, %v2872
        %v2884 = vadd.s32 %v2883, %v2874
        %v2885 = vand.u32 %v2862, 65535
        %v2886 = vshrl.u32 %v2862, 16
        %v2887 = vand.u32 %v2857, 65535
        %v2888 = vshrl.u32 %v2857, 16
        %v2889 = vmul.u32 %v2885, %v2887
        %v2890 = vmul.u32 %v2885, %v2888
        %v2891 = vmul.u32 %v2886, %v2887
        %v2892 = vmul.u32 %v2886, %v2888
        %v2893 = vshll.u32 %v2890, 16
        %v2894 = vshrl.u32 %v2890, 16
        %v2895 = vshll.u32 %v2891, 16
        %v2896 = vshrl.u32 %v2891, 16
        %vm2897 = vc.u32 %v2889, %v2893
        %v2898 = vsel %vm2897, 1, 0
        %v2899 = vadd.s32 %v2889, %v2893
        %v2900 = vadd.s32 %v2892, %v2898
        %vm2901 = vc.u32 %v2899, %v2895
        %v2902 = vsel %vm2901, 1, 0
        %v2903 = vadd.s32 %v2899, %v2895
        %v2904 = vadd.s32 %v2900, %v2902
        %v2905 = vadd.s32 %v2904, %v2894
        %v2906 = vadd.s32 %v2905, %v2896
        %v2907 = vmul.u32 %v2862, %v2853
        %v2908 = vadd.s32 %v2884, %v2903
        %vm2909 = vc.u32 %v2884, %v2903
        %v2910 = vadd.s32 %v2906, 1
        %v2911 = vsel %vm2909, %v2910, %v2906
        %v2912 = vadd.s32 %v2907, %v2911
        %v2913 = vadd.s32 %v2912, 536870912
        %v2914 = vshrl.u32 %v2913, 30
        %v2915 = vshll.u32 %v2914, 30
        %v2916 = vsub.s32 %v2912, %v2915
        %vm2917 = vcmp.lt.s32.totalorder %v2916, 0
        %v2918 = vsub.s32 0, %v2916
        %v2919 = vsel %vm2917, %v2918, %v2916
        %v2920 = vclz %v2919
        %v2921 = vsub.s32 %v2920, 2
        %vm2922 = vcmp.gt.s32.totalorder 0, %v2921
        %v2923 = vsel %vm2922, 0, %v2921
        %v2924 = vsub.s32 32, %v2923
        %v2925 = vshll.u32 %v2916, %v2923
        %v2926 = vshrl.u32 %v2908, %v2924
        %v2927 = vor.u32 %v2925, %v2926
        %v2928 = vsub.s32 4294967266, %v2923
        %v2929 = vadd.s32 %v2928, 127
        %v2930 = vshll.u32 %v2929, 23
        %v2931 = vor.u32 4788187, %v2930
        %v2932 = vand.u32 2147483647, %v2931
        %v2934 = vcvt.s32.f32 %v2927
        %v2935 = vmul.f32 %v2934, %v2932
        %v2936 = vxor.u32 %v2935, 2147483648
        %v2937 = vsel %vm2816, %v2936, %v2935
        %v2938 = vsub.s32 4, %v2914
        %v2939 = vsel %vm2816, %v2938, %v2914
        %v2940 = vsel %vm2815, %v301, %v2937
        %v2941 = vsel %vm2815, 0, %v2939
        %v2942 = vmul.f32 %v2940, %v2940
        %v2943 = vmul.f32 %v2942, -0.001358992
        %v2944 = vadd.f32 %v2943, 0.041655596
        %v2945 = vmul.f32 %v2942, %v2944
        %v2946 = vadd.f32 %v2945, -0.4999988
        %v2947 = vmul.f32 %v2942, %v2946
        %v2948 = vadd.f32 1.0, %v2947
        %v2949 = vmul.f32 %v2940, %v2940
        %v2950 = vmul.f32 %v2949, -0.00019511016
        %v2951 = vadd.f32 %v2950, 0.008332121
        %v2952 = vmul.f32 %v2949, %v2951
        %v2953 = vadd.f32 %v2952, -0.16666654
        %v2954 = vmul.f32 %v2949, %v2953
        %v2955 = vadd.f32 %v2954, 1.0
        %v2956 = vmul.f32 %v2955, %v2940
        %vm2957 = vweird.f32 %v301
        %v2958 = vand.u32 %v2941, 3
        %vm2959 = vcmp.lt.s32.totalorder %v2958, 2
        %vm2960 = vcmp.eq.s32.totalorder %v2958, 0
        %v2961 = vxor.u32 %v2956, 2147483648
        %v2962 = vsel %vm2960, %v2948, %v2961
        %vm2963 = vcmp.eq.s32.totalorder %v2958, 2
        %v2964 = vxor.u32 %v2948, 2147483648
        %v2965 = vsel %vm2963, %v2964, %v2956
        %v2966 = vsel %vm2959, %v2962, %v2965
        %v2967 = vsel %vm2957, nan, %v2966
        %v2968 = vand.u32 2147483647, %v302
        %vm2969 = vcmp.le.f32.partialorder %v2968, 0.7853982
        %vm2970 = vcmp.lt.s32.totalorder %v302, 0
        %v2971 = vand.u32 %v302, 2139095040
        %v2972 = vshrl.u32 %v2971, 23
        %v2973 = vsub.s32 %v2972, 127
        %v2974 = vand.u32 2147483647, %v302
        %v2975 = vand.u32 %v2974, 8388607
        %v2976 = vor.u32 %v2975, 8388608
        %v2977 = vsub.s32 0, %v2976
        %v2978 = vadd.s32 %v2973, 1
        %vm2979 = vcmp.gt.s32.totalorder %v2978, 0
        %v2980 = vsel %vm2979, %v2978, 0
        %v2981 = vshrl.u32 %v2980, 5
        %v2982 = vand.u32 %v2980, 31
        %v2983 = vsub.s32 32, %v2982
        %v2984 = vshrl.u32 683565275, %v2983
        %v2985 = vshll.u32 683565275, %v2982
        %v2986 = vshrl.u32 2475754826, %v2983
        %v2987 = vor.u32 %v2985, %v2986
        %v2988 = vshll.u32 2475754826, %v2982
        %v2989 = vshrl.u32 2131351028, %v2983
        %v2990 = vor.u32 %v2988, %v2989
        %v2991 = vshll.u32 2131351028, %v2982
        %v2992 = vshrl.u32 2102212464, %v2983
        %v2993 = vor.u32 %v2991, %v2992
        %v2994 = vshll.u32 2102212464, %v2982
        %v2995 = vshrl.u32 920167782, %v2983
        %v2996 = vor.u32 %v2994, %v2995
        %v2997 = vshll.u32 920167782, %v2982
        %v2998 = vshrl.u32 1326507024, %v2983
        %v2999 = vor.u32 %v2997, %v2998
        %vm3000 = vcmp.lt.s32.totalorder %v2981, 1
        %vm3001 = vcmp.lt.s32.totalorder %v2981, 2
        %vm3002 = vcmp.lt.s32.totalorder %v2981, 3
        %vm3003 = vcmp.lt.s32.totalorder %v2981, 4
        %v3004 = vsel %vm3000, %v2984, %v2987
        %v3005 = vsel %vm3003, %v2993, 2102212464
        %v3006 = vsel %vm3002, %v2990, %v3005
        %v3007 = vsel %vm3001, %v3004, %v3006
        %v3008 = vsel %vm3000, %v2987, %v2990
        %v3009 = vsel %vm3003, %v2996, 920167782
        %v3010 = vsel %vm3002, %v2993, %v3009
        %v3011 = vsel %vm3001, %v3008, %v3010
        %v3012 = vsel %vm3000, %v2990, %v2993
        %v3013 = vsel %vm3003, %v2999, 1326507024
        %v3014 = vsel %vm3002, %v2996, %v3013
        %v3015 = vsel %vm3001, %v3012, %v3014
        %v3016 = vshll.u32 %v2976, 8
        %v3017 = vand.u32 %v3016, 65535
        %v3018 = vshrl.u32 %v3016, 16
        %v3019 = vand.u32 %v3015, 65535
        %v3020 = vshrl.u32 %v3015, 16
        %v3021 = vmul.u32 %v3017, %v3019
        %v3022 = vmul.u32 %v3017, %v3020
        %v3023 = vmul.u32 %v3018, %v3019
        %v3024 = vmul.u32 %v3018, %v3020
        %v3025 = vshll.u32 %v3022, 16
        %v3026 = vshrl.u32 %v3022, 16
        %v3027 = vshll.u32 %v3023, 16
        %v3028 = vshrl.u32 %v3023, 16
        %vm3029 = vc.u32 %v3021, %v3025
        %v3030 = vsel %vm3029, 1, 0
        %v3031 = vadd.s32 %v3021, %v3025
        %v3032 = vadd.s32 %v3024, %v3030
        %vm3033 = vc.u32 %v3031, %v3027
        %v3034 = vsel %vm3033, 1, 0
        %v3035 = vadd.s32 %v3031, %v3027
        %v3036 = vadd.s32 %v3032, %v3034
        %v3037 = vadd.s32 %v3036, %v3026
        %v3038 = vadd.s32 %v3037, %v3028
        %v3039 = vand.u32 %v3016, 65535
        %v3040 = vshrl.u32 %v3016, 16
        %v3041 = vand.u32 %v3011, 65535
        %v3042 = vshrl.u32 %v3011, 16
        %v3043 = vmul.u32 %v3039, %v3041
        %v3044 = vmul.u32 %v3039, %v3042
        %v3045 = vmul.u32 %v3040, %v3041
        %v3046 = vmul.u32 %v3040, %v3042
        %v3047 = vshll.u32 %v3044, 16
        %v3048 = vshrl.u32 %v3044, 16
        %v3049 = vshll.u32 %v3045, 16
        %v3050 = vshrl.u32 %v3045, 16
        %vm3051 = vc.u32 %v3043, %v3047
        %v3052 = vsel %vm3051, 1, 0
        %v3053 = vadd.s32 %v3043, %v3047
        %v3054 = vadd.s32 %v3046, %v3052
        %vm3055 = vc.u32 %v3053, %v3049
        %v3056 = vsel %vm3055, 1, 0
        %v3057 = vadd.s32 %v3053, %v3049
        %v3058 = vadd.s32 %v3054, %v3056
        %v3059 = vadd.s32 %v3058, %v3048
        %v3060 = vadd.s32 %v3059, %v3050
        %v3061 = vmul.u32 %v3016, %v3007
        %v3062 = vadd.s32 %v3038, %v3057
        %vm3063 = vc.u32 %v3038, %v3057
        %v3064 = vadd.s32 %v3060, 1
        %v3065 = vsel %vm3063, %v3064, %v3060
        %v3066 = vadd.s32 %v3061, %v3065
        %v3067 = vadd.s32 %v3066, 536870912
        %v3068 = vshrl.u32 %v3067, 30
        %v3069 = vshll.u32 %v3068, 30
        %v3070 = vsub.s32 %v3066, %v3069
        %vm3071 = vcmp.lt.s32.totalorder %v3070, 0
        %v3072 = vsub.s32 0, %v3070
        %v3073 = vsel %vm3071, %v3072, %v3070
        %v3074 = vclz %v3073
        %v3075 = vsub.s32 %v3074, 2
        %vm3076 = vcmp.gt.s32.totalorder 0, %v3075
        %v3077 = vsel %vm3076, 0, %v3075
        %v3078 = vsub.s32 32, %v3077
        %v3079 = vshll.u32 %v3070, %v3077
        %v3080 = vshrl.u32 %v3062, %v3078
        %v3081 = vor.u32 %v3079, %v3080
        %v3082 = vsub.s32 4294967266, %v3077
        %v3083 = vadd.s32 %v3082, 127
        %v3084 = vshll.u32 %v3083, 23
        %v3085 = vor.u32 4788187, %v3084
        %v3086 = vand.u32 2147483647, %v3085
        %v3088 = vcvt.s32.f32 %v3081
        %v3089 = vmul.f32 %v3088, %v3086
        %v3090 = vxor.u32 %v3089, 2147483648
        %v3091 = vsel %vm2970, %v3090, %v3089
        %v3092 = vsub.s32 4, %v3068
        %v3093 = vsel %vm2970, %v3092, %v3068
        %v3094 = vsel %vm2969, %v302, %v3091
        %v3095 = vsel %vm2969, 0, %v3093
        %v3096 = vmul.f32 %v3094, %v3094
        %v3097 = vmul.f32 %v3096, -0.001358992
        %v3098 = vadd.f32 %v3097, 0.041655596
        %v3099 = vmul.f32 %v3096, %v3098
        %v3100 = vadd.f32 %v3099, -0.4999988
        %v3101 = vmul.f32 %v3096, %v3100
        %v3102 = vadd.f32 1.0, %v3101
        %v3103 = vmul.f32 %v3094, %v3094
        %v3104 = vmul.f32 %v3103, -0.00019511016
        %v3105 = vadd.f32 %v3104, 0.008332121
        %v3106 = vmul.f32 %v3103, %v3105
        %v3107 = vadd.f32 %v3106, -0.16666654
        %v3108 = vmul.f32 %v3103, %v3107
        %v3109 = vadd.f32 %v3108, 1.0
        %v3110 = vmul.f32 %v3109, %v3094
        %vm3111 = vweird.f32 %v302
        %v3112 = vand.u32 %v3095, 3
        %vm3113 = vcmp.lt.s32.totalorder %v3112, 2
        %vm3114 = vcmp.eq.s32.totalorder %v3112, 0
        %v3115 = vxor.u32 %v3110, 2147483648
        %v3116 = vsel %vm3114, %v3102, %v3115
        %vm3117 = vcmp.eq.s32.totalorder %v3112, 2
        %v3118 = vxor.u32 %v3102, 2147483648
        %v3119 = vsel %vm3117, %v3118, %v3110
        %v3120 = vsel %vm3113, %v3116, %v3119
        %v3121 = vsel %vm3111, nan, %v3120
        %v3122 = vand.u32 2147483647, %v303
        %vm3123 = vcmp.le.f32.partialorder %v3122, 0.7853982
        %vm3124 = vcmp.lt.s32.totalorder %v303, 0
        %v3125 = vand.u32 %v303, 2139095040
        %v3126 = vshrl.u32 %v3125, 23
        %v3127 = vsub.s32 %v3126, 127
        %v3128 = vand.u32 2147483647, %v303
        %v3129 = vand.u32 %v3128, 8388607
        %v3130 = vor.u32 %v3129, 8388608
        %v3131 = vsub.s32 0, %v3130
        %v3132 = vadd.s32 %v3127, 1
        %vm3133 = vcmp.gt.s32.totalorder %v3132, 0
        %v3134 = vsel %vm3133, %v3132, 0
        %v3135 = vshrl.u32 %v3134, 5
        %v3136 = vand.u32 %v3134, 31
        %v3137 = vsub.s32 32, %v3136
        %v3138 = vshrl.u32 683565275, %v3137
        %v3139 = vshll.u32 683565275, %v3136
        %v3140 = vshrl.u32 2475754826, %v3137
        %v3141 = vor.u32 %v3139, %v3140
        %v3142 = vshll.u32 2475754826, %v3136
        %v3143 = vshrl.u32 2131351028, %v3137
        %v3144 = vor.u32 %v3142, %v3143
        %v3145 = vshll.u32 2131351028, %v3136
        %v3146 = vshrl.u32 2102212464, %v3137
        %v3147 = vor.u32 %v3145, %v3146
        %v3148 = vshll.u32 2102212464, %v3136
        %v3149 = vshrl.u32 920167782, %v3137
        %v3150 = vor.u32 %v3148, %v3149
        %v3151 = vshll.u32 920167782, %v3136
        %v3152 = vshrl.u32 1326507024, %v3137
        %v3153 = vor.u32 %v3151, %v3152
        %vm3154 = vcmp.lt.s32.totalorder %v3135, 1
        %vm3155 = vcmp.lt.s32.totalorder %v3135, 2
        %vm3156 = vcmp.lt.s32.totalorder %v3135, 3
        %vm3157 = vcmp.lt.s32.totalorder %v3135, 4
        %v3158 = vsel %vm3154, %v3138, %v3141
        %v3159 = vsel %vm3157, %v3147, 2102212464
        %v3160 = vsel %vm3156, %v3144, %v3159
        %v3161 = vsel %vm3155, %v3158, %v3160
        %v3162 = vsel %vm3154, %v3141, %v3144
        %v3163 = vsel %vm3157, %v3150, 920167782
        %v3164 = vsel %vm3156, %v3147, %v3163
        %v3165 = vsel %vm3155, %v3162, %v3164
        %v3166 = vsel %vm3154, %v3144, %v3147
        %v3167 = vsel %vm3157, %v3153, 1326507024
        %v3168 = vsel %vm3156, %v3150, %v3167
        %v3169 = vsel %vm3155, %v3166, %v3168
        %v3170 = vshll.u32 %v3130, 8
        %v3171 = vand.u32 %v3170, 65535
        %v3172 = vshrl.u32 %v3170, 16
        %v3173 = vand.u32 %v3169, 65535
        %v3174 = vshrl.u32 %v3169, 16
        %v3175 = vmul.u32 %v3171, %v3173
        %v3176 = vmul.u32 %v3171, %v3174
        %v3177 = vmul.u32 %v3172, %v3173
        %v3178 = vmul.u32 %v3172, %v3174
        %v3179 = vshll.u32 %v3176, 16
        %v3180 = vshrl.u32 %v3176, 16
        %v3181 = vshll.u32 %v3177, 16
        %v3182 = vshrl.u32 %v3177, 16
        %vm3183 = vc.u32 %v3175, %v3179
        %v3184 = vsel %vm3183, 1, 0
        %v3185 = vadd.s32 %v3175, %v3179
        %v3186 = vadd.s32 %v3178, %v3184
        %vm3187 = vc.u32 %v3185, %v3181
        %v3188 = vsel %vm3187, 1, 0
        %v3189 = vadd.s32 %v3185, %v3181
        %v3190 = vadd.s32 %v3186, %v3188
        %v3191 = vadd.s32 %v3190, %v3180
        %v3192 = vadd.s32 %v3191, %v3182
        %v3193 = vand.u32 %v3170, 65535
        %v3194 = vshrl.u32 %v3170, 16
        %v3195 = vand.u32 %v3165, 65535
        %v3196 = vshrl.u32 %v3165, 16
        %v3197 = vmul.u32 %v3193, %v3195
        %v3198 = vmul.u32 %v3193, %v3196
        %v3199 = vmul.u32 %v3194, %v3195
        %v3200 = vmul.u32 %v3194, %v3196
        %v3201 = vshll.u32 %v3198, 16
        %v3202 = vshrl.u32 %v3198, 16
        %v3203 = vshll.u32 %v3199, 16
        %v3204 = vshrl.u32 %v3199, 16
        %vm3205 = vc.u32 %v3197, %v3201
        %v3206 = vsel %vm3205, 1, 0
        %v3207 = vadd.s32 %v3197, %v3201
        %v3208 = vadd.s32 %v3200, %v3206
        %vm3209 = vc.u32 %v3207, %v3203
        %v3210 = vsel %vm3209, 1, 0
        %v3211 = vadd.s32 %v3207, %v3203
        %v3212 = vadd.s32 %v3208, %v3210
        %v3213 = vadd.s32 %v3212, %v3202
        %v3214 = vadd.s32 %v3213, %v3204
        %v3215 = vmul.u32 %v3170, %v3161
        %v3216 = vadd.s32 %v3192, %v3211
        %vm3217 = vc.u32 %v3192, %v3211
        %v3218 = vadd.s32 %v3214, 1
        %v3219 = vsel %vm3217, %v3218, %v3214
        %v3220 = vadd.s32 %v3215, %v3219
        %v3221 = vadd.s32 %v3220, 536870912
        %v3222 = vshrl.u32 %v3221, 30
        %v3223 = vshll.u32 %v3222, 30
        %v3224 = vsub.s32 %v3220, %v3223
        %vm3225 = vcmp.lt.s32.totalorder %v3224, 0
        %v3226 = vsub.s32 0, %v3224
        %v3227 = vsel %vm3225, %v3226, %v3224
        %v3228 = vclz %v3227
        %v3229 = vsub.s32 %v3228, 2
        %vm3230 = vcmp.gt.s32.totalorder 0, %v3229
        %v3231 = vsel %vm3230, 0, %v3229
        %v3232 = vsub.s32 32, %v3231
        %v3233 = vshll.u32 %v3224, %v3231
        %v3234 = vshrl.u32 %v3216, %v3232
        %v3235 = vor.u32 %v3233, %v3234
        %v3236 = vsub.s32 4294967266, %v3231
        %v3237 = vadd.s32 %v3236, 127
        %v3238 = vshll.u32 %v3237, 23
        %v3239 = vor.u32 4788187, %v3238
        %v3240 = vand.u32 2147483647, %v3239
        %v3242 = vcvt.s32.f32 %v3235
        %v3243 = vmul.f32 %v3242, %v3240
        %v3244 = vxor.u32 %v3243, 2147483648
        %v3245 = vsel %vm3124, %v3244, %v3243
        %v3246 = vsub.s32 4, %v3222
        %v3247 = vsel %vm3124, %v3246, %v3222
        %v3248 = vsel %vm3123, %v303, %v3245
        %v3249 = vsel %vm3123, 0, %v3247
        %v3250 = vmul.f32 %v3248, %v3248
        %v3251 = vmul.f32 %v3250, -0.001358992
        %v3252 = vadd.f32 %v3251, 0.041655596
        %v3253 = vmul.f32 %v3250, %v3252
        %v3254 = vadd.f32 %v3253, -0.4999988
        %v3255 = vmul.f32 %v3250, %v3254
        %v3256 = vadd.f32 1.0, %v3255
        %v3257 = vmul.f32 %v3248, %v3248
        %v3258 = vmul.f32 %v3257, -0.00019511016
        %v3259 = vadd.f32 %v3258, 0.008332121
        %v3260 = vmul.f32 %v3257, %v3259
        %v3261 = vadd.f32 %v3260, -0.16666654
        %v3262 = vmul.f32 %v3257, %v3261
        %v3263 = vadd.f32 %v3262, 1.0
        %v3264 = vmul.f32 %v3263, %v3248
        %vm3265 = vweird.f32 %v303
        %v3266 = vand.u32 %v3249, 3
        %vm3267 = vcmp.lt.s32.totalorder %v3266, 2
        %vm3268 = vcmp.eq.s32.totalorder %v3266, 0
        %v3269 = vxor.u32 %v3264, 2147483648
        %v3270 = vsel %vm3268, %v3256, %v3269
        %vm3271 = vcmp.eq.s32.totalorder %v3266, 2
        %v3272 = vxor.u32 %v3256, 2147483648
        %v3273 = vsel %vm3271, %v3272, %v3264
        %v3274 = vsel %vm3267, %v3270, %v3273
        %v3275 = vsel %vm3265, nan, %v3274
        %v3276 = vand.u32 2147483647, %v304
        %vm3277 = vcmp.le.f32.partialorder %v3276, 0.7853982
        %vm3278 = vcmp.lt.s32.totalorder %v304, 0
        %v3279 = vand.u32 %v304, 2139095040
        %v3280 = vshrl.u32 %v3279, 23
        %v3281 = vsub.s32 %v3280, 127
        %v3282 = vand.u32 2147483647, %v304
        %v3283 = vand.u32 %v3282, 8388607
        %v3284 = vor.u32 %v3283, 8388608
        %v3285 = vsub.s32 0, %v3284
        %v3286 = vadd.s32 %v3281, 1
        %vm3287 = vcmp.gt.s32.totalorder %v3286, 0
        %v3288 = vsel %vm3287, %v3286, 0
        %v3289 = vshrl.u32 %v3288, 5
        %v3290 = vand.u32 %v3288, 31
        %v3291 = vsub.s32 32, %v3290
        %v3292 = vshrl.u32 683565275, %v3291
        %v3293 = vshll.u32 683565275, %v3290
        %v3294 = vshrl.u32 2475754826, %v3291
        %v3295 = vor.u32 %v3293, %v3294
        %v3296 = vshll.u32 2475754826, %v3290
        %v3297 = vshrl.u32 2131351028, %v3291
        %v3298 = vor.u32 %v3296, %v3297
        %v3299 = vshll.u32 2131351028, %v3290
        %v3300 = vshrl.u32 2102212464, %v3291
        %v3301 = vor.u32 %v3299, %v3300
        %v3302 = vshll.u32 2102212464, %v3290
        %v3303 = vshrl.u32 920167782, %v3291
        %v3304 = vor.u32 %v3302, %v3303
        %v3305 = vshll.u32 920167782, %v3290
        %v3306 = vshrl.u32 1326507024, %v3291
        %v3307 = vor.u32 %v3305, %v3306
        %vm3308 = vcmp.lt.s32.totalorder %v3289, 1
        %vm3309 = vcmp.lt.s32.totalorder %v3289, 2
        %vm3310 = vcmp.lt.s32.totalorder %v3289, 3
        %vm3311 = vcmp.lt.s32.totalorder %v3289, 4
        %v3312 = vsel %vm3308, %v3292, %v3295
        %v3313 = vsel %vm3311, %v3301, 2102212464
        %v3314 = vsel %vm3310, %v3298, %v3313
        %v3315 = vsel %vm3309, %v3312, %v3314
        %v3316 = vsel %vm3308, %v3295, %v3298
        %v3317 = vsel %vm3311, %v3304, 920167782
        %v3318 = vsel %vm3310, %v3301, %v3317
        %v3319 = vsel %vm3309, %v3316, %v3318
        %v3320 = vsel %vm3308, %v3298, %v3301
        %v3321 = vsel %vm3311, %v3307, 1326507024
        %v3322 = vsel %vm3310, %v3304, %v3321
        %v3323 = vsel %vm3309, %v3320, %v3322
        %v3324 = vshll.u32 %v3284, 8
        %v3325 = vand.u32 %v3324, 65535
        %v3326 = vshrl.u32 %v3324, 16
        %v3327 = vand.u32 %v3323, 65535
        %v3328 = vshrl.u32 %v3323, 16
        %v3329 = vmul.u32 %v3325, %v3327
        %v3330 = vmul.u32 %v3325, %v3328
        %v3331 = vmul.u32 %v3326, %v3327
        %v3332 = vmul.u32 %v3326, %v3328
        %v3333 = vshll.u32 %v3330, 16
        %v3334 = vshrl.u32 %v3330, 16
        %v3335 = vshll.u32 %v3331, 16
        %v3336 = vshrl.u32 %v3331, 16
        %vm3337 = vc.u32 %v3329, %v3333
        %v3338 = vsel %vm3337, 1, 0
        %v3339 = vadd.s32 %v3329, %v3333
        %v3340 = vadd.s32 %v3332, %v3338
        %vm3341 = vc.u32 %v3339, %v3335
        %v3342 = vsel %vm3341, 1, 0
        %v3343 = vadd.s32 %v3339, %v3335
        %v3344 = vadd.s32 %v3340, %v3342
        %v3345 = vadd.s32 %v3344, %v3334
        %v3346 = vadd.s32 %v3345, %v3336
        %v3347 = vand.u32 %v3324, 65535
        %v3348 = vshrl.u32 %v3324, 16
        %v3349 = vand.u32 %v3319, 65535
        %v3350 = vshrl.u32 %v3319, 16
        %v3351 = vmul.u32 %v3347, %v3349
        %v3352 = vmul.u32 %v3347, %v3350
        %v3353 = vmul.u32 %v3348, %v3349
        %v3354 = vmul.u32 %v3348, %v3350
        %v3355 = vshll.u32 %v3352, 16
        %v3356 = vshrl.u32 %v3352, 16
        %v3357 = vshll.u32 %v3353, 16
        %v3358 = vshrl.u32 %v3353, 16
        %vm3359 = vc.u32 %v3351, %v3355
        %v3360 = vsel %vm3359, 1, 0
        %v3361 = vadd.s32 %v3351, %v3355
        %v3362 = vadd.s32 %v3354, %v3360
        %vm3363 = vc.u32 %v3361, %v3357
        %v3364 = vsel %vm3363, 1, 0
        %v3365 = vadd.s32 %v3361, %v3357
        %v3366 = vadd.s32 %v3362, %v3364
        %v3367 = vadd.s32 %v3366, %v3356
        %v3368 = vadd.s32 %v3367, %v3358
        %v3369 = vmul.u32 %v3324, %v3315
        %v3370 = vadd.s32 %v3346, %v3365
        %vm3371 = vc.u32 %v3346, %v3365
        %v3372 = vadd.s32 %v3368, 1
        %v3373 = vsel %vm3371, %v3372, %v3368
        %v3374 = vadd.s32 %v3369, %v3373
        %v3375 = vadd.s32 %v3374, 536870912
        %v3376 = vshrl.u32 %v3375, 30
        %v3377 = vshll.u32 %v3376, 30
        %v3378 = vsub.s32 %v3374, %v3377
        %vm3379 = vcmp.lt.s32.totalorder %v3378, 0
        %v3380 = vsub.s32 0, %v3378
        %v3381 = vsel %vm3379, %v3380, %v3378
        %v3382 = vclz %v3381
        %v3383 = vsub.s32 %v3382, 2
        %vm3384 = vcmp.gt.s32.totalorder 0, %v3383
        %v3385 = vsel %vm3384, 0, %v3383
        %v3386 = vsub.s32 32, %v3385
        %v3387 = vshll.u32 %v3378, %v3385
        %v3388 = vshrl.u32 %v3370, %v3386
        %v3389 = vor.u32 %v3387, %v3388
        %v3390 = vsub.s32 4294967266, %v3385
        %v3391 = vadd.s32 %v3390, 127
        %v3392 = vshll.u32 %v3391, 23
        %v3393 = vor.u32 4788187, %v3392
        %v3394 = vand.u32 2147483647, %v3393
        %v3396 = vcvt.s32.f32 %v3389
        %v3397 = vmul.f32 %v3396, %v3394
        %v3398 = vxor.u32 %v3397, 2147483648
        %v3399 = vsel %vm3278, %v3398, %v3397
        %v3400 = vsub.s32 4, %v3376
        %v3401 = vsel %vm3278, %v3400, %v3376
        %v3402 = vsel %vm3277, %v304, %v3399
        %v3403 = vsel %vm3277, 0, %v3401
        %v3404 = vmul.f32 %v3402, %v3402
        %v3405 = vmul.f32 %v3404, -0.001358992
        %v3406 = vadd.f32 %v3405, 0.041655596
        %v3407 = vmul.f32 %v3404, %v3406
        %v3408 = vadd.f32 %v3407, -0.4999988
        %v3409 = vmul.f32 %v3404, %v3408
        %v3410 = vadd.f32 1.0, %v3409
        %v3411 = vmul.f32 %v3402, %v3402
        %v3412 = vmul.f32 %v3411, -0.00019511016
        %v3413 = vadd.f32 %v3412, 0.008332121
        %v3414 = vmul.f32 %v3411, %v3413
        %v3415 = vadd.f32 %v3414, -0.16666654
        %v3416 = vmul.f32 %v3411, %v3415
        %v3417 = vadd.f32 %v3416, 1.0
        %v3418 = vmul.f32 %v3417, %v3402
        %vm3419 = vweird.f32 %v304
        %v3420 = vand.u32 %v3403, 3
        %vm3421 = vcmp.lt.s32.totalorder %v3420, 2
        %vm3422 = vcmp.eq.s32.totalorder %v3420, 0
        %v3423 = vxor.u32 %v3418, 2147483648
        %v3424 = vsel %vm3422, %v3410, %v3423
        %vm3425 = vcmp.eq.s32.totalorder %v3420, 2
        %v3426 = vxor.u32 %v3410, 2147483648
        %v3427 = vsel %vm3425, %v3426, %v3418
        %v3428 = vsel %vm3421, %v3424, %v3427
        %v3429 = vsel %vm3419, nan, %v3428
        %v3430 = vand.u32 2147483647, %v316
        %vm3431 = vcmp.le.f32.partialorder %v3430, 0.7853982
        %vm3432 = vcmp.lt.s32.totalorder %v316, 0
        %v3433 = vand.u32 %v316, 2139095040
        %v3434 = vshrl.u32 %v3433, 23
        %v3435 = vsub.s32 %v3434, 127
        %v3436 = vand.u32 2147483647, %v316
        %v3437 = vand.u32 %v3436, 8388607
        %v3438 = vor.u32 %v3437, 8388608
        %v3439 = vsub.s32 0, %v3438
        %v3440 = vadd.s32 %v3435, 1
        %vm3441 = vcmp.gt.s32.totalorder %v3440, 0
        %v3442 = vsel %vm3441, %v3440, 0
        %v3443 = vshrl.u32 %v3442, 5
        %v3444 = vand.u32 %v3442, 31
        %v3445 = vsub.s32 32, %v3444
        %v3446 = vshrl.u32 683565275, %v3445
        %v3447 = vshll.u32 683565275, %v3444
        %v3448 = vshrl.u32 2475754826, %v3445
        %v3449 = vor.u32 %v3447, %v3448
        %v3450 = vshll.u32 2475754826, %v3444
        %v3451 = vshrl.u32 2131351028, %v3445
        %v3452 = vor.u32 %v3450, %v3451
        %v3453 = vshll.u32 2131351028, %v3444
        %v3454 = vshrl.u32 2102212464, %v3445
        %v3455 = vor.u32 %v3453, %v3454
        %v3456 = vshll.u32 2102212464, %v3444
        %v3457 = vshrl.u32 920167782, %v3445
        %v3458 = vor.u32 %v3456, %v3457
        %v3459 = vshll.u32 920167782, %v3444
        %v3460 = vshrl.u32 1326507024, %v3445
        %v3461 = vor.u32 %v3459, %v3460
        %vm3462 = vcmp.lt.s32.totalorder %v3443, 1
        %vm3463 = vcmp.lt.s32.totalorder %v3443, 2
        %vm3464 = vcmp.lt.s32.totalorder %v3443, 3
        %vm3465 = vcmp.lt.s32.totalorder %v3443, 4
        %v3466 = vsel %vm3462, %v3446, %v3449
        %v3467 = vsel %vm3465, %v3455, 2102212464
        %v3468 = vsel %vm3464, %v3452, %v3467
        %v3469 = vsel %vm3463, %v3466, %v3468
        %v3470 = vsel %vm3462, %v3449, %v3452
        %v3471 = vsel %vm3465, %v3458, 920167782
        %v3472 = vsel %vm3464, %v3455, %v3471
        %v3473 = vsel %vm3463, %v3470, %v3472
        %v3474 = vsel %vm3462, %v3452, %v3455
        %v3475 = vsel %vm3465, %v3461, 1326507024
        %v3476 = vsel %vm3464, %v3458, %v3475
        %v3477 = vsel %vm3463, %v3474, %v3476
        %v3478 = vshll.u32 %v3438, 8
        %v3479 = vand.u32 %v3478, 65535
        %v3480 = vshrl.u32 %v3478, 16
        %v3481 = vand.u32 %v3477, 65535
        %v3482 = vshrl.u32 %v3477, 16
        %v3483 = vmul.u32 %v3479, %v3481
        %v3484 = vmul.u32 %v3479, %v3482
        %v3485 = vmul.u32 %v3480, %v3481
        %v3486 = vmul.u32 %v3480, %v3482
        %v3487 = vshll.u32 %v3484, 16
        %v3488 = vshrl.u32 %v3484, 16
        %v3489 = vshll.u32 %v3485, 16
        %v3490 = vshrl.u32 %v3485, 16
        %vm3491 = vc.u32 %v3483, %v3487
        %v3492 = vsel %vm3491, 1, 0
        %v3493 = vadd.s32 %v3483, %v3487
        %v3494 = vadd.s32 %v3486, %v3492
        %vm3495 = vc.u32 %v3493, %v3489
        %v3496 = vsel %vm3495, 1, 0
        %v3497 = vadd.s32 %v3493, %v3489
        %v3498 = vadd.s32 %v3494, %v3496
        %v3499 = vadd.s32 %v3498, %v3488
        %v3500 = vadd.s32 %v3499, %v3490
        %v3501 = vand.u32 %v3478, 65535
        %v3502 = vshrl.u32 %v3478, 16
        %v3503 = vand.u32 %v3473, 65535
        %v3504 = vshrl.u32 %v3473, 16
        %v3505 = vmul.u32 %v3501, %v3503
        %v3506 = vmul.u32 %v3501, %v3504
        %v3507 = vmul.u32 %v3502, %v3503
        %v3508 = vmul.u32 %v3502, %v3504
        %v3509 = vshll.u32 %v3506, 16
        %v3510 = vshrl.u32 %v3506, 16
        %v3511 = vshll.u32 %v3507, 16
        %v3512 = vshrl.u32 %v3507, 16
        %vm3513 = vc.u32 %v3505, %v3509
        %v3514 = vsel %vm3513, 1, 0
        %v3515 = vadd.s32 %v3505, %v3509
        %v3516 = vadd.s32 %v3508, %v3514
        %vm3517 = vc.u32 %v3515, %v3511
        %v3518 = vsel %vm3517, 1, 0
        %v3519 = vadd.s32 %v3515, %v3511
        %v3520 = vadd.s32 %v3516, %v3518
        %v3521 = vadd.s32 %v3520, %v3510
        %v3522 = vadd.s32 %v3521, %v3512
        %v3523 = vmul.u32 %v3478, %v3469
        %v3524 = vadd.s32 %v3500, %v3519
        %vm3525 = vc.u32 %v3500, %v3519
        %v3526 = vadd.s32 %v3522, 1
        %v3527 = vsel %vm3525, %v3526, %v3522
        %v3528 = vadd.s32 %v3523, %v3527
        %v3529 = vadd.s32 %v3528, 536870912
        %v3530 = vshrl.u32 %v3529, 30
        %v3531 = vshll.u32 %v3530, 30
        %v3532 = vsub.s32 %v3528, %v3531
        %vm3533 = vcmp.lt.s32.totalorder %v3532, 0
        %v3534 = vsub.s32 0, %v3532
        %v3535 = vsel %vm3533, %v3534, %v3532
        %v3536 = vclz %v3535
        %v3537 = vsub.s32 %v3536, 2
        %vm3538 = vcmp.gt.s32.totalorder 0, %v3537
        %v3539 = vsel %vm3538, 0, %v3537
        %v3540 = vsub.s32 32, %v3539
        %v3541 = vshll.u32 %v3532, %v3539
        %v3542 = vshrl.u32 %v3524, %v3540
        %v3543 = vor.u32 %v3541, %v3542
        %v3544 = vsub.s32 4294967266, %v3539
        %v3545 = vadd.s32 %v3544, 127
        %v3546 = vshll.u32 %v3545, 23
        %v3547 = vor.u32 4788187, %v3546
        %v3548 = vand.u32 2147483647, %v3547
        %v3550 = vcvt.s32.f32 %v3543
        %v3551 = vmul.f32 %v3550, %v3548
        %v3552 = vxor.u32 %v3551, 2147483648
        %v3553 = vsel %vm3432, %v3552, %v3551
        %v3554 = vsub.s32 4, %v3530
        %v3555 = vsel %vm3432, %v3554, %v3530
        %v3556 = vsel %vm3431, %v316, %v3553
        %v3557 = vsel %vm3431, 0, %v3555
        %v3558 = vmul.f32 %v3556, %v3556
        %v3559 = vmul.f32 %v3558, -0.001358992
        %v3560 = vadd.f32 %v3559, 0.041655596
        %v3561 = vmul.f32 %v3558, %v3560
        %v3562 = vadd.f32 %v3561, -0.4999988
        %v3563 = vmul.f32 %v3558, %v3562
        %v3564 = vadd.f32 1.0, %v3563
        %v3565 = vmul.f32 %v3556, %v3556
        %v3566 = vmul.f32 %v3565, -0.00019511016
        %v3567 = vadd.f32 %v3566, 0.008332121
        %v3568 = vmul.f32 %v3565, %v3567
        %v3569 = vadd.f32 %v3568, -0.16666654
        %v3570 = vmul.f32 %v3565, %v3569
        %v3571 = vadd.f32 %v3570, 1.0
        %v3572 = vmul.f32 %v3571, %v3556
        %vm3573 = vweird.f32 %v316
        %v3574 = vand.u32 %v3557, 3
        %vm3575 = vcmp.lt.s32.totalorder %v3574, 2
        %vm3576 = vcmp.eq.s32.totalorder %v3574, 0
        %v3577 = vxor.u32 %v3572, 2147483648
        %v3578 = vsel %vm3576, %v3564, %v3577
        %vm3579 = vcmp.eq.s32.totalorder %v3574, 2
        %v3580 = vxor.u32 %v3564, 2147483648
        %v3581 = vsel %vm3579, %v3580, %v3572
        %v3582 = vsel %vm3575, %v3578, %v3581
        %v3583 = vsel %vm3573, nan, %v3582
        %v3584 = vand.u32 2147483647, %v317
        %vm3585 = vcmp.le.f32.partialorder %v3584, 0.7853982
        %vm3586 = vcmp.lt.s32.totalorder %v317, 0
        %v3587 = vand.u32 %v317, 2139095040
        %v3588 = vshrl.u32 %v3587, 23
        %v3589 = vsub.s32 %v3588, 127
        %v3590 = vand.u32 2147483647, %v317
        %v3591 = vand.u32 %v3590, 8388607
        %v3592 = vor.u32 %v3591, 8388608
        %v3593 = vsub.s32 0, %v3592
        %v3594 = vadd.s32 %v3589, 1
        %vm3595 = vcmp.gt.s32.totalorder %v3594, 0
        %v3596 = vsel %vm3595, %v3594, 0
        %v3597 = vshrl.u32 %v3596, 5
        %v3598 = vand.u32 %v3596, 31
        %v3599 = vsub.s32 32, %v3598
        %v3600 = vshrl.u32 683565275, %v3599
        %v3601 = vshll.u32 683565275, %v3598
        %v3602 = vshrl.u32 2475754826, %v3599
        %v3603 = vor.u32 %v3601, %v3602
        %v3604 = vshll.u32 2475754826, %v3598
        %v3605 = vshrl.u32 2131351028, %v3599
        %v3606 = vor.u32 %v3604, %v3605
        %v3607 = vshll.u32 2131351028, %v3598
        %v3608 = vshrl.u32 2102212464, %v3599
        %v3609 = vor.u32 %v3607, %v3608
        %v3610 = vshll.u32 2102212464, %v3598
        %v3611 = vshrl.u32 920167782, %v3599
        %v3612 = vor.u32 %v3610, %v3611
        %v3613 = vshll.u32 920167782, %v3598
        %v3614 = vshrl.u32 1326507024, %v3599
        %v3615 = vor.u32 %v3613, %v3614
        %vm3616 = vcmp.lt.s32.totalorder %v3597, 1
        %vm3617 = vcmp.lt.s32.totalorder %v3597, 2
        %vm3618 = vcmp.lt.s32.totalorder %v3597, 3
        %vm3619 = vcmp.lt.s32.totalorder %v3597, 4
        %v3620 = vsel %vm3616, %v3600, %v3603
        %v3621 = vsel %vm3619, %v3609, 2102212464
        %v3622 = vsel %vm3618, %v3606, %v3621
        %v3623 = vsel %vm3617, %v3620, %v3622
        %v3624 = vsel %vm3616, %v3603, %v3606
        %v3625 = vsel %vm3619, %v3612, 920167782
        %v3626 = vsel %vm3618, %v3609, %v3625
        %v3627 = vsel %vm3617, %v3624, %v3626
        %v3628 = vsel %vm3616, %v3606, %v3609
        %v3629 = vsel %vm3619, %v3615, 1326507024
        %v3630 = vsel %vm3618, %v3612, %v3629
        %v3631 = vsel %vm3617, %v3628, %v3630
        %v3632 = vshll.u32 %v3592, 8
        %v3633 = vand.u32 %v3632, 65535
        %v3634 = vshrl.u32 %v3632, 16
        %v3635 = vand.u32 %v3631, 65535
        %v3636 = vshrl.u32 %v3631, 16
        %v3637 = vmul.u32 %v3633, %v3635
        %v3638 = vmul.u32 %v3633, %v3636
        %v3639 = vmul.u32 %v3634, %v3635
        %v3640 = vmul.u32 %v3634, %v3636
        %v3641 = vshll.u32 %v3638, 16
        %v3642 = vshrl.u32 %v3638, 16
        %v3643 = vshll.u32 %v3639, 16
        %v3644 = vshrl.u32 %v3639, 16
        %vm3645 = vc.u32 %v3637, %v3641
        %v3646 = vsel %vm3645, 1, 0
        %v3647 = vadd.s32 %v3637, %v3641
        %v3648 = vadd.s32 %v3640, %v3646
        %vm3649 = vc.u32 %v3647, %v3643
        %v3650 = vsel %vm3649, 1, 0
        %v3651 = vadd.s32 %v3647, %v3643
        %v3652 = vadd.s32 %v3648, %v3650
        %v3653 = vadd.s32 %v3652, %v3642
        %v3654 = vadd.s32 %v3653, %v3644
        %v3655 = vand.u32 %v3632, 65535
        %v3656 = vshrl.u32 %v3632, 16
        %v3657 = vand.u32 %v3627, 65535
        %v3658 = vshrl.u32 %v3627, 16
        %v3659 = vmul.u32 %v3655, %v3657
        %v3660 = vmul.u32 %v3655, %v3658
        %v3661 = vmul.u32 %v3656, %v3657
        %v3662 = vmul.u32 %v3656, %v3658
        %v3663 = vshll.u32 %v3660, 16
        %v3664 = vshrl.u32 %v3660, 16
        %v3665 = vshll.u32 %v3661, 16
        %v3666 = vshrl.u32 %v3661, 16
        %vm3667 = vc.u32 %v3659, %v3663
        %v3668 = vsel %vm3667, 1, 0
        %v3669 = vadd.s32 %v3659, %v3663
        %v3670 = vadd.s32 %v3662, %v3668
        %vm3671 = vc.u32 %v3669, %v3665
        %v3672 = vsel %vm3671, 1, 0
        %v3673 = vadd.s32 %v3669, %v3665
        %v3674 = vadd.s32 %v3670, %v3672
        %v3675 = vadd.s32 %v3674, %v3664
        %v3676 = vadd.s32 %v3675, %v3666
        %v3677 = vmul.u32 %v3632, %v3623
        %v3678 = vadd.s32 %v3654, %v3673
        %vm3679 = vc.u32 %v3654, %v3673
        %v3680 = vadd.s32 %v3676, 1
        %v3681 = vsel %vm3679, %v3680, %v3676
        %v3682 = vadd.s32 %v3677, %v3681
        %v3683 = vadd.s32 %v3682, 536870912
        %v3684 = vshrl.u32 %v3683, 30
        %v3685 = vshll.u32 %v3684, 30
        %v3686 = vsub.s32 %v3682, %v3685
        %vm3687 = vcmp.lt.s32.totalorder %v3686, 0
        %v3688 = vsub.s32 0, %v3686
        %v3689 = vsel %vm3687, %v3688, %v3686
        %v3690 = vclz %v3689
        %v3691 = vsub.s32 %v3690, 2
        %vm3692 = vcmp.gt.s32.totalorder 0, %v3691
        %v3693 = vsel %vm3692, 0, %v3691
        %v3694 = vsub.s32 32, %v3693
        %v3695 = vshll.u32 %v3686, %v3693
        %v3696 = vshrl.u32 %v3678, %v3694
        %v3697 = vor.u32 %v3695, %v3696
        %v3698 = vsub.s32 4294967266, %v3693
        %v3699 = vadd.s32 %v3698, 127
        %v3700 = vshll.u32 %v3699, 23
        %v3701 = vor.u32 4788187, %v3700
        %v3702 = vand.u32 2147483647, %v3701
        %v3704 = vcvt.s32.f32 %v3697
        %v3705 = vmul.f32 %v3704, %v3702
        %v3706 = vxor.u32 %v3705, 2147483648
        %v3707 = vsel %vm3586, %v3706, %v3705
        %v3708 = vsub.s32 4, %v3684
        %v3709 = vsel %vm3586, %v3708, %v3684
        %v3710 = vsel %vm3585, %v317, %v3707
        %v3711 = vsel %vm3585, 0, %v3709
        %v3712 = vmul.f32 %v3710, %v3710
        %v3713 = vmul.f32 %v3712, -0.001358992
        %v3714 = vadd.f32 %v3713, 0.041655596
        %v3715 = vmul.f32 %v3712, %v3714
        %v3716 = vadd.f32 %v3715, -0.4999988
        %v3717 = vmul.f32 %v3712, %v3716
        %v3718 = vadd.f32 1.0, %v3717
        %v3719 = vmul.f32 %v3710, %v3710
        %v3720 = vmul.f32 %v3719, -0.00019511016
        %v3721 = vadd.f32 %v3720, 0.008332121
        %v3722 = vmul.f32 %v3719, %v3721
        %v3723 = vadd.f32 %v3722, -0.16666654
        %v3724 = vmul.f32 %v3719, %v3723
        %v3725 = vadd.f32 %v3724, 1.0
        %v3726 = vmul.f32 %v3725, %v3710
        %vm3727 = vweird.f32 %v317
        %v3728 = vand.u32 %v3711, 3
        %vm3729 = vcmp.lt.s32.totalorder %v3728, 2
        %vm3730 = vcmp.eq.s32.totalorder %v3728, 0
        %v3731 = vxor.u32 %v3726, 2147483648
        %v3732 = vsel %vm3730, %v3718, %v3731
        %vm3733 = vcmp.eq.s32.totalorder %v3728, 2
        %v3734 = vxor.u32 %v3718, 2147483648
        %v3735 = vsel %vm3733, %v3734, %v3726
        %v3736 = vsel %vm3729, %v3732, %v3735
        %v3737 = vsel %vm3727, nan, %v3736
        %v3738 = vand.u32 2147483647, %v318
        %vm3739 = vcmp.le.f32.partialorder %v3738, 0.7853982
        %vm3740 = vcmp.lt.s32.totalorder %v318, 0
        %v3741 = vand.u32 %v318, 2139095040
        %v3742 = vshrl.u32 %v3741, 23
        %v3743 = vsub.s32 %v3742, 127
        %v3744 = vand.u32 2147483647, %v318
        %v3745 = vand.u32 %v3744, 8388607
        %v3746 = vor.u32 %v3745, 8388608
        %v3747 = vsub.s32 0, %v3746
        %v3748 = vadd.s32 %v3743, 1
        %vm3749 = vcmp.gt.s32.totalorder %v3748, 0
        %v3750 = vsel %vm3749, %v3748, 0
        %v3751 = vshrl.u32 %v3750, 5
        %v3752 = vand.u32 %v3750, 31
        %v3753 = vsub.s32 32, %v3752
        %v3754 = vshrl.u32 683565275, %v3753
        %v3755 = vshll.u32 683565275, %v3752
        %v3756 = vshrl.u32 2475754826, %v3753
        %v3757 = vor.u32 %v3755, %v3756
        %v3758 = vshll.u32 2475754826, %v3752
        %v3759 = vshrl.u32 2131351028, %v3753
        %v3760 = vor.u32 %v3758, %v3759
        %v3761 = vshll.u32 2131351028, %v3752
        %v3762 = vshrl.u32 2102212464, %v3753
        %v3763 = vor.u32 %v3761, %v3762
        %v3764 = vshll.u32 2102212464, %v3752
        %v3765 = vshrl.u32 920167782, %v3753
        %v3766 = vor.u32 %v3764, %v3765
        %v3767 = vshll.u32 920167782, %v3752
        %v3768 = vshrl.u32 1326507024, %v3753
        %v3769 = vor.u32 %v3767, %v3768
        %vm3770 = vcmp.lt.s32.totalorder %v3751, 1
        %vm3771 = vcmp.lt.s32.totalorder %v3751, 2
        %vm3772 = vcmp.lt.s32.totalorder %v3751, 3
        %vm3773 = vcmp.lt.s32.totalorder %v3751, 4
        %v3774 = vsel %vm3770, %v3754, %v3757
        %v3775 = vsel %vm3773, %v3763, 2102212464
        %v3776 = vsel %vm3772, %v3760, %v3775
        %v3777 = vsel %vm3771, %v3774, %v3776
        %v3778 = vsel %vm3770, %v3757, %v3760
        %v3779 = vsel %vm3773, %v3766, 920167782
        %v3780 = vsel %vm3772, %v3763, %v3779
        %v3781 = vsel %vm3771, %v3778, %v3780
        %v3782 = vsel %vm3770, %v3760, %v3763
        %v3783 = vsel %vm3773, %v3769, 1326507024
        %v3784 = vsel %vm3772, %v3766, %v3783
        %v3785 = vsel %vm3771, %v3782, %v3784
        %v3786 = vshll.u32 %v3746, 8
        %v3787 = vand.u32 %v3786, 65535
        %v3788 = vshrl.u32 %v3786, 16
        %v3789 = vand.u32 %v3785, 65535
        %v3790 = vshrl.u32 %v3785, 16
        %v3791 = vmul.u32 %v3787, %v3789
        %v3792 = vmul.u32 %v3787, %v3790
        %v3793 = vmul.u32 %v3788, %v3789
        %v3794 = vmul.u32 %v3788, %v3790
        %v3795 = vshll.u32 %v3792, 16
        %v3796 = vshrl.u32 %v3792, 16
        %v3797 = vshll.u32 %v3793, 16
        %v3798 = vshrl.u32 %v3793, 16
        %vm3799 = vc.u32 %v3791, %v3795
        %v3800 = vsel %vm3799, 1, 0
        %v3801 = vadd.s32 %v3791, %v3795
        %v3802 = vadd.s32 %v3794, %v3800
        %vm3803 = vc.u32 %v3801, %v3797
        %v3804 = vsel %vm3803, 1, 0
        %v3805 = vadd.s32 %v3801, %v3797
        %v3806 = vadd.s32 %v3802, %v3804
        %v3807 = vadd.s32 %v3806, %v3796
        %v3808 = vadd.s32 %v3807, %v3798
        %v3809 = vand.u32 %v3786, 65535
        %v3810 = vshrl.u32 %v3786, 16
        %v3811 = vand.u32 %v3781, 65535
        %v3812 = vshrl.u32 %v3781, 16
        %v3813 = vmul.u32 %v3809, %v3811
        %v3814 = vmul.u32 %v3809, %v3812
        %v3815 = vmul.u32 %v3810, %v3811
        %v3816 = vmul.u32 %v3810, %v3812
        %v3817 = vshll.u32 %v3814, 16
        %v3818 = vshrl.u32 %v3814, 16
        %v3819 = vshll.u32 %v3815, 16
        %v3820 = vshrl.u32 %v3815, 16
        %vm3821 = vc.u32 %v3813, %v3817
        %v3822 = vsel %vm3821, 1, 0
        %v3823 = vadd.s32 %v3813, %v3817
        %v3824 = vadd.s32 %v3816, %v3822
        %vm3825 = vc.u32 %v3823, %v3819
        %v3826 = vsel %vm3825, 1, 0
        %v3827 = vadd.s32 %v3823, %v3819
        %v3828 = vadd.s32 %v3824, %v3826
        %v3829 = vadd.s32 %v3828, %v3818
        %v3830 = vadd.s32 %v3829, %v3820
        %v3831 = vmul.u32 %v3786, %v3777
        %v3832 = vadd.s32 %v3808, %v3827
        %vm3833 = vc.u32 %v3808, %v3827
        %v3834 = vadd.s32 %v3830, 1
        %v3835 = vsel %vm3833, %v3834, %v3830
        %v3836 = vadd.s32 %v3831, %v3835
        %v3837 = vadd.s32 %v3836, 536870912
        %v3838 = vshrl.u32 %v3837, 30
        %v3839 = vshll.u32 %v3838, 30
        %v3840 = vsub.s32 %v3836, %v3839
        %vm3841 = vcmp.lt.s32.totalorder %v3840, 0
        %v3842 = vsub.s32 0, %v3840
        %v3843 = vsel %vm3841, %v3842, %v3840
        %v3844 = vclz %v3843
        %v3845 = vsub.s32 %v3844, 2
        %vm3846 = vcmp.gt.s32.totalorder 0, %v3845
        %v3847 = vsel %vm3846, 0, %v3845
        %v3848 = vsub.s32 32, %v3847
        %v3849 = vshll.u32 %v3840, %v3847
        %v3850 = vshrl.u32 %v3832, %v3848
        %v3851 = vor.u32 %v3849, %v3850
        %v3852 = vsub.s32 4294967266, %v3847
        %v3853 = vadd.s32 %v3852, 127
        %v3854 = vshll.u32 %v3853, 23
        %v3855 = vor.u32 4788187, %v3854
        %v3856 = vand.u32 2147483647, %v3855
        %v3858 = vcvt.s32.f32 %v3851
        %v3859 = vmul.f32 %v3858, %v3856
        %v3860 = vxor.u32 %v3859, 2147483648
        %v3861 = vsel %vm3740, %v3860, %v3859
        %v3862 = vsub.s32 4, %v3838
        %v3863 = vsel %vm3740, %v3862, %v3838
        %v3864 = vsel %vm3739, %v318, %v3861
        %v3865 = vsel %vm3739, 0, %v3863
        %v3866 = vmul.f32 %v3864, %v3864
        %v3867 = vmul.f32 %v3866, -0.001358992
        %v3868 = vadd.f32 %v3867, 0.041655596
        %v3869 = vmul.f32 %v3866, %v3868
        %v3870 = vadd.f32 %v3869, -0.4999988
        %v3871 = vmul.f32 %v3866, %v3870
        %v3872 = vadd.f32 1.0, %v3871
        %v3873 = vmul.f32 %v3864, %v3864
        %v3874 = vmul.f32 %v3873, -0.00019511016
        %v3875 = vadd.f32 %v3874, 0.008332121
        %v3876 = vmul.f32 %v3873, %v3875
        %v3877 = vadd.f32 %v3876, -0.16666654
        %v3878 = vmul.f32 %v3873, %v3877
        %v3879 = vadd.f32 %v3878, 1.0
        %v3880 = vmul.f32 %v3879, %v3864
        %vm3881 = vweird.f32 %v318
        %v3882 = vand.u32 %v3865, 3
        %vm3883 = vcmp.lt.s32.totalorder %v3882, 2
        %vm3884 = vcmp.eq.s32.totalorder %v3882, 0
        %v3885 = vxor.u32 %v3880, 2147483648
        %v3886 = vsel %vm3884, %v3872, %v3885
        %vm3887 = vcmp.eq.s32.totalorder %v3882, 2
        %v3888 = vxor.u32 %v3872, 2147483648
        %v3889 = vsel %vm3887, %v3888, %v3880
        %v3890 = vsel %vm3883, %v3886, %v3889
        %v3891 = vsel %vm3881, nan, %v3890
        %v3892 = vand.u32 2147483647, %v319
        %vm3893 = vcmp.le.f32.partialorder %v3892, 0.7853982
        %vm3894 = vcmp.lt.s32.totalorder %v319, 0
        %v3895 = vand.u32 %v319, 2139095040
        %v3896 = vshrl.u32 %v3895, 23
        %v3897 = vsub.s32 %v3896, 127
        %v3898 = vand.u32 2147483647, %v319
        %v3899 = vand.u32 %v3898, 8388607
        %v3900 = vor.u32 %v3899, 8388608
        %v3901 = vsub.s32 0, %v3900
        %v3902 = vadd.s32 %v3897, 1
        %vm3903 = vcmp.gt.s32.totalorder %v3902, 0
        %v3904 = vsel %vm3903, %v3902, 0
        %v3905 = vshrl.u32 %v3904, 5
        %v3906 = vand.u32 %v3904, 31
        %v3907 = vsub.s32 32, %v3906
        %v3908 = vshrl.u32 683565275, %v3907
        %v3909 = vshll.u32 683565275, %v3906
        %v3910 = vshrl.u32 2475754826, %v3907
        %v3911 = vor.u32 %v3909, %v3910
        %v3912 = vshll.u32 2475754826, %v3906
        %v3913 = vshrl.u32 2131351028, %v3907
        %v3914 = vor.u32 %v3912, %v3913
        %v3915 = vshll.u32 2131351028, %v3906
        %v3916 = vshrl.u32 2102212464, %v3907
        %v3917 = vor.u32 %v3915, %v3916
        %v3918 = vshll.u32 2102212464, %v3906
        %v3919 = vshrl.u32 920167782, %v3907
        %v3920 = vor.u32 %v3918, %v3919
        %v3921 = vshll.u32 920167782, %v3906
        %v3922 = vshrl.u32 1326507024, %v3907
        %v3923 = vor.u32 %v3921, %v3922
        %vm3924 = vcmp.lt.s32.totalorder %v3905, 1
        %vm3925 = vcmp.lt.s32.totalorder %v3905, 2
        %vm3926 = vcmp.lt.s32.totalorder %v3905, 3
        %vm3927 = vcmp.lt.s32.totalorder %v3905, 4
        %v3928 = vsel %vm3924, %v3908, %v3911
        %v3929 = vsel %vm3927, %v3917, 2102212464
        %v3930 = vsel %vm3926, %v3914, %v3929
        %v3931 = vsel %vm3925, %v3928, %v3930
        %v3932 = vsel %vm3924, %v3911, %v3914
        %v3933 = vsel %vm3927, %v3920, 920167782
        %v3934 = vsel %vm3926, %v3917, %v3933
        %v3935 = vsel %vm3925, %v3932, %v3934
        %v3936 = vsel %vm3924, %v3914, %v3917
        %v3937 = vsel %vm3927, %v3923, 1326507024
        %v3938 = vsel %vm3926, %v3920, %v3937
        %v3939 = vsel %vm3925, %v3936, %v3938
        %v3940 = vshll.u32 %v3900, 8
        %v3941 = vand.u32 %v3940, 65535
        %v3942 = vshrl.u32 %v3940, 16
        %v3943 = vand.u32 %v3939, 65535
        %v3944 = vshrl.u32 %v3939, 16
        %v3945 = vmul.u32 %v3941, %v3943
        %v3946 = vmul.u32 %v3941, %v3944
        %v3947 = vmul.u32 %v3942, %v3943
        %v3948 = vmul.u32 %v3942, %v3944
        %v3949 = vshll.u32 %v3946, 16
        %v3950 = vshrl.u32 %v3946, 16
        %v3951 = vshll.u32 %v3947, 16
        %v3952 = vshrl.u32 %v3947, 16
        %vm3953 = vc.u32 %v3945, %v3949
        %v3954 = vsel %vm3953, 1, 0
        %v3955 = vadd.s32 %v3945, %v3949
        %v3956 = vadd.s32 %v3948, %v3954
        %vm3957 = vc.u32 %v3955, %v3951
        %v3958 = vsel %vm3957, 1, 0
        %v3959 = vadd.s32 %v3955, %v3951
        %v3960 = vadd.s32 %v3956, %v3958
        %v3961 = vadd.s32 %v3960, %v3950
        %v3962 = vadd.s32 %v3961, %v3952
        %v3963 = vand.u32 %v3940, 65535
        %v3964 = vshrl.u32 %v3940, 16
        %v3965 = vand.u32 %v3935, 65535
        %v3966 = vshrl.u32 %v3935, 16
        %v3967 = vmul.u32 %v3963, %v3965
        %v3968 = vmul.u32 %v3963, %v3966
        %v3969 = vmul.u32 %v3964, %v3965
        %v3970 = vmul.u32 %v3964, %v3966
        %v3971 = vshll.u32 %v3968, 16
        %v3972 = vshrl.u32 %v3968, 16
        %v3973 = vshll.u32 %v3969, 16
        %v3974 = vshrl.u32 %v3969, 16
        %vm3975 = vc.u32 %v3967, %v3971
        %v3976 = vsel %vm3975, 1, 0
        %v3977 = vadd.s32 %v3967, %v3971
        %v3978 = vadd.s32 %v3970, %v3976
        %vm3979 = vc.u32 %v3977, %v3973
        %v3980 = vsel %vm3979, 1, 0
        %v3981 = vadd.s32 %v3977, %v3973
        %v3982 = vadd.s32 %v3978, %v3980
        %v3983 = vadd.s32 %v3982, %v3972
        %v3984 = vadd.s32 %v3983, %v3974
        %v3985 = vmul.u32 %v3940, %v3931
        %v3986 = vadd.s32 %v3962, %v3981
        %vm3987 = vc.u32 %v3962, %v3981
        %v3988 = vadd.s32 %v3984, 1
        %v3989 = vsel %vm3987, %v3988, %v3984
        %v3990 = vadd.s32 %v3985, %v3989
        %v3991 = vadd.s32 %v3990, 536870912
        %v3992 = vshrl.u32 %v3991, 30
        %v3993 = vshll.u32 %v3992, 30
        %v3994 = vsub.s32 %v3990, %v3993
        %vm3995 = vcmp.lt.s32.totalorder %v3994, 0
        %v3996 = vsub.s32 0, %v3994
        %v3997 = vsel %vm3995, %v3996, %v3994
        %v3998 = vclz %v3997
        %v3999 = vsub.s32 %v3998, 2
        %vm4000 = vcmp.gt.s32.totalorder 0, %v3999
        %v4001 = vsel %vm4000, 0, %v3999
        %v4002 = vsub.s32 32, %v4001
        %v4003 = vshll.u32 %v3994, %v4001
        %v4004 = vshrl.u32 %v3986, %v4002
        %v4005 = vor.u32 %v4003, %v4004
        %v4006 = vsub.s32 4294967266, %v4001
        %v4007 = vadd.s32 %v4006, 127
        %v4008 = vshll.u32 %v4007, 23
        %v4009 = vor.u32 4788187, %v4008
        %v4010 = vand.u32 2147483647, %v4009
        %v4012 = vcvt.s32.f32 %v4005
        %v4013 = vmul.f32 %v4012, %v4010
        %v4014 = vxor.u32 %v4013, 2147483648
        %v4015 = vsel %vm3894, %v4014, %v4013
        %v4016 = vsub.s32 4, %v3992
        %v4017 = vsel %vm3894, %v4016, %v3992
        %v4018 = vsel %vm3893, %v319, %v4015
        %v4019 = vsel %vm3893, 0, %v4017
        %v4020 = vmul.f32 %v4018, %v4018
        %v4021 = vmul.f32 %v4020, -0.001358992
        %v4022 = vadd.f32 %v4021, 0.041655596
        %v4023 = vmul.f32 %v4020, %v4022
        %v4024 = vadd.f32 %v4023, -0.4999988
        %v4025 = vmul.f32 %v4020, %v4024
        %v4026 = vadd.f32 1.0, %v4025
        %v4027 = vmul.f32 %v4018, %v4018
        %v4028 = vmul.f32 %v4027, -0.00019511016
        %v4029 = vadd.f32 %v4028, 0.008332121
        %v4030 = vmul.f32 %v4027, %v4029
        %v4031 = vadd.f32 %v4030, -0.16666654
        %v4032 = vmul.f32 %v4027, %v4031
        %v4033 = vadd.f32 %v4032, 1.0
        %v4034 = vmul.f32 %v4033, %v4018
        %vm4035 = vweird.f32 %v319
        %v4036 = vand.u32 %v4019, 3
        %vm4037 = vcmp.lt.s32.totalorder %v4036, 2
        %vm4038 = vcmp.eq.s32.totalorder %v4036, 0
        %v4039 = vxor.u32 %v4034, 2147483648
        %v4040 = vsel %vm4038, %v4026, %v4039
        %vm4041 = vcmp.eq.s32.totalorder %v4036, 2
        %v4042 = vxor.u32 %v4026, 2147483648
        %v4043 = vsel %vm4041, %v4042, %v4034
        %v4044 = vsel %vm4037, %v4040, %v4043
        %v4045 = vsel %vm4035, nan, %v4044
        %v4046 = vand.u32 2147483647, %v326
        %vm4047 = vcmp.le.f32.partialorder %v4046, 0.7853982
        %vm4048 = vcmp.lt.s32.totalorder %v326, 0
        %v4049 = vand.u32 %v326, 2139095040
        %v4050 = vshrl.u32 %v4049, 23
        %v4051 = vsub.s32 %v4050, 127
        %v4052 = vand.u32 2147483647, %v326
        %v4053 = vand.u32 %v4052, 8388607
        %v4054 = vor.u32 %v4053, 8388608
        %v4055 = vsub.s32 0, %v4054
        %v4056 = vadd.s32 %v4051, 1
        %vm4057 = vcmp.gt.s32.totalorder %v4056, 0
        %v4058 = vsel %vm4057, %v4056, 0
        %v4059 = vshrl.u32 %v4058, 5
        %v4060 = vand.u32 %v4058, 31
        %v4061 = vsub.s32 32, %v4060
        %v4062 = vshrl.u32 683565275, %v4061
        %v4063 = vshll.u32 683565275, %v4060
        %v4064 = vshrl.u32 2475754826, %v4061
        %v4065 = vor.u32 %v4063, %v4064
        %v4066 = vshll.u32 2475754826, %v4060
        %v4067 = vshrl.u32 2131351028, %v4061
        %v4068 = vor.u32 %v4066, %v4067
        %v4069 = vshll.u32 2131351028, %v4060
        %v4070 = vshrl.u32 2102212464, %v4061
        %v4071 = vor.u32 %v4069, %v4070
        %v4072 = vshll.u32 2102212464, %v4060
        %v4073 = vshrl.u32 920167782, %v4061
        %v4074 = vor.u32 %v4072, %v4073
        %v4075 = vshll.u32 920167782, %v4060
        %v4076 = vshrl.u32 1326507024, %v4061
        %v4077 = vor.u32 %v4075, %v4076
        %vm4078 = vcmp.lt.s32.totalorder %v4059, 1
        %vm4079 = vcmp.lt.s32.totalorder %v4059, 2
        %vm4080 = vcmp.lt.s32.totalorder %v4059, 3
        %vm4081 = vcmp.lt.s32.totalorder %v4059, 4
        %v4082 = vsel %vm4078, %v4062, %v4065
        %v4083 = vsel %vm4081, %v4071, 2102212464
        %v4084 = vsel %vm4080, %v4068, %v4083
        %v4085 = vsel %vm4079, %v4082, %v4084
        %v4086 = vsel %vm4078, %v4065, %v4068
        %v4087 = vsel %vm4081, %v4074, 920167782
        %v4088 = vsel %vm4080, %v4071, %v4087
        %v4089 = vsel %vm4079, %v4086, %v4088
        %v4090 = vsel %vm4078, %v4068, %v4071
        %v4091 = vsel %vm4081, %v4077, 1326507024
        %v4092 = vsel %vm4080, %v4074, %v4091
        %v4093 = vsel %vm4079, %v4090, %v4092
        %v4094 = vshll.u32 %v4054, 8
        %v4095 = vand.u32 %v4094, 65535
        %v4096 = vshrl.u32 %v4094, 16
        %v4097 = vand.u32 %v4093, 65535
        %v4098 = vshrl.u32 %v4093, 16
        %v4099 = vmul.u32 %v4095, %v4097
        %v4100 = vmul.u32 %v4095, %v4098
        %v4101 = vmul.u32 %v4096, %v4097
        %v4102 = vmul.u32 %v4096, %v4098
        %v4103 = vshll.u32 %v4100, 16
        %v4104 = vshrl.u32 %v4100, 16
        %v4105 = vshll.u32 %v4101, 16
        %v4106 = vshrl.u32 %v4101, 16
        %vm4107 = vc.u32 %v4099, %v4103
        %v4108 = vsel %vm4107, 1, 0
        %v4109 = vadd.s32 %v4099, %v4103
        %v4110 = vadd.s32 %v4102, %v4108
        %vm4111 = vc.u32 %v4109, %v4105
        %v4112 = vsel %vm4111, 1, 0
        %v4113 = vadd.s32 %v4109, %v4105
        %v4114 = vadd.s32 %v4110, %v4112
        %v4115 = vadd.s32 %v4114, %v4104
        %v4116 = vadd.s32 %v4115, %v4106
        %v4117 = vand.u32 %v4094, 65535
        %v4118 = vshrl.u32 %v4094, 16
        %v4119 = vand.u32 %v4089, 65535
        %v4120 = vshrl.u32 %v4089, 16
        %v4121 = vmul.u32 %v4117, %v4119
        %v4122 = vmul.u32 %v4117, %v4120
        %v4123 = vmul.u32 %v4118, %v4119
        %v4124 = vmul.u32 %v4118, %v4120
        %v4125 = vshll.u32 %v4122, 16
        %v4126 = vshrl.u32 %v4122, 16
        %v4127 = vshll.u32 %v4123, 16
        %v4128 = vshrl.u32 %v4123, 16
        %vm4129 = vc.u32 %v4121, %v4125
        %v4130 = vsel %vm4129, 1, 0
        %v4131 = vadd.s32 %v4121, %v4125
        %v4132 = vadd.s32 %v4124, %v4130
        %vm4133 = vc.u32 %v4131, %v4127
        %v4134 = vsel %vm4133, 1, 0
        %v4135 = vadd.s32 %v4131, %v4127
        %v4136 = vadd.s32 %v4132, %v4134
        %v4137 = vadd.s32 %v4136, %v4126
        %v4138 = vadd.s32 %v4137, %v4128
        %v4139 = vmul.u32 %v4094, %v4085
        %v4140 = vadd.s32 %v4116, %v4135
        %vm4141 = vc.u32 %v4116, %v4135
        %v4142 = vadd.s32 %v4138, 1
        %v4143 = vsel %vm4141, %v4142, %v4138
        %v4144 = vadd.s32 %v4139, %v4143
        %v4145 = vadd.s32 %v4144, 536870912
        %v4146 = vshrl.u32 %v4145, 30
        %v4147 = vshll.u32 %v4146, 30
        %v4148 = vsub.s32 %v4144, %v4147
        %vm4149 = vcmp.lt.s32.totalorder %v4148, 0
        %v4150 = vsub.s32 0, %v4148
        %v4151 = vsel %vm4149, %v4150, %v4148
        %v4152 = vclz %v4151
        %v4153 = vsub.s32 %v4152, 2
        %vm4154 = vcmp.gt.s32.totalorder 0, %v4153
        %v4155 = vsel %vm4154, 0, %v4153
        %v4156 = vsub.s32 32, %v4155
        %v4157 = vshll.u32 %v4148, %v4155
        %v4158 = vshrl.u32 %v4140, %v4156
        %v4159 = vor.u32 %v4157, %v4158
        %v4160 = vsub.s32 4294967266, %v4155
        %v4161 = vadd.s32 %v4160, 127
        %v4162 = vshll.u32 %v4161, 23
        %v4163 = vor.u32 4788187, %v4162
        %v4164 = vand.u32 2147483647, %v4163
        %v4166 = vcvt.s32.f32 %v4159
        %v4167 = vmul.f32 %v4166, %v4164
        %v4168 = vxor.u32 %v4167, 2147483648
        %v4169 = vsel %vm4048, %v4168, %v4167
        %v4170 = vsub.s32 4, %v4146
        %v4171 = vsel %vm4048, %v4170, %v4146
        %v4172 = vsel %vm4047, %v326, %v4169
        %v4173 = vsel %vm4047, 0, %v4171
        %v4174 = vmul.f32 %v4172, %v4172
        %v4175 = vmul.f32 %v4174, -0.001358992
        %v4176 = vadd.f32 %v4175, 0.041655596
        %v4177 = vmul.f32 %v4174, %v4176
        %v4178 = vadd.f32 %v4177, -0.4999988
        %v4179 = vmul.f32 %v4174, %v4178
        %v4180 = vadd.f32 1.0, %v4179
        %v4181 = vmul.f32 %v4172, %v4172
        %v4182 = vmul.f32 %v4181, -0.00019511016
        %v4183 = vadd.f32 %v4182, 0.008332121
        %v4184 = vmul.f32 %v4181, %v4183
        %v4185 = vadd.f32 %v4184, -0.16666654
        %v4186 = vmul.f32 %v4181, %v4185
        %v4187 = vadd.f32 %v4186, 1.0
        %v4188 = vmul.f32 %v4187, %v4172
        %vm4189 = vweird.f32 %v326
        %v4190 = vand.u32 %v4173, 3
        %vm4191 = vcmp.lt.s32.totalorder %v4190, 2
        %vm4192 = vcmp.eq.s32.totalorder %v4190, 0
        %v4193 = vxor.u32 %v4188, 2147483648
        %v4194 = vsel %vm4192, %v4180, %v4193
        %vm4195 = vcmp.eq.s32.totalorder %v4190, 2
        %v4196 = vxor.u32 %v4180, 2147483648
        %v4197 = vsel %vm4195, %v4196, %v4188
        %v4198 = vsel %vm4191, %v4194, %v4197
        %v4199 = vsel %vm4189, nan, %v4198
        %v4200 = vand.u32 2147483647, %v327
        %vm4201 = vcmp.le.f32.partialorder %v4200, 0.7853982
        %vm4202 = vcmp.lt.s32.totalorder %v327, 0
        %v4203 = vand.u32 %v327, 2139095040
        %v4204 = vshrl.u32 %v4203, 23
        %v4205 = vsub.s32 %v4204, 127
        %v4206 = vand.u32 2147483647, %v327
        %v4207 = vand.u32 %v4206, 8388607
        %v4208 = vor.u32 %v4207, 8388608
        %v4209 = vsub.s32 0, %v4208
        %v4210 = vadd.s32 %v4205, 1
        %vm4211 = vcmp.gt.s32.totalorder %v4210, 0
        %v4212 = vsel %vm4211, %v4210, 0
        %v4213 = vshrl.u32 %v4212, 5
        %v4214 = vand.u32 %v4212, 31
        %v4215 = vsub.s32 32, %v4214
        %v4216 = vshrl.u32 683565275, %v4215
        %v4217 = vshll.u32 683565275, %v4214
        %v4218 = vshrl.u32 2475754826, %v4215
        %v4219 = vor.u32 %v4217, %v4218
        %v4220 = vshll.u32 2475754826, %v4214
        %v4221 = vshrl.u32 2131351028, %v4215
        %v4222 = vor.u32 %v4220, %v4221
        %v4223 = vshll.u32 2131351028, %v4214
        %v4224 = vshrl.u32 2102212464, %v4215
        %v4225 = vor.u32 %v4223, %v4224
        %v4226 = vshll.u32 2102212464, %v4214
        %v4227 = vshrl.u32 920167782, %v4215
        %v4228 = vor.u32 %v4226, %v4227
        %v4229 = vshll.u32 920167782, %v4214
        %v4230 = vshrl.u32 1326507024, %v4215
        %v4231 = vor.u32 %v4229, %v4230
        %vm4232 = vcmp.lt.s32.totalorder %v4213, 1
        %vm4233 = vcmp.lt.s32.totalorder %v4213, 2
        %vm4234 = vcmp.lt.s32.totalorder %v4213, 3
        %vm4235 = vcmp.lt.s32.totalorder %v4213, 4
        %v4236 = vsel %vm4232, %v4216, %v4219
        %v4237 = vsel %vm4235, %v4225, 2102212464
        %v4238 = vsel %vm4234, %v4222, %v4237
        %v4239 = vsel %vm4233, %v4236, %v4238
        %v4240 = vsel %vm4232, %v4219, %v4222
        %v4241 = vsel %vm4235, %v4228, 920167782
        %v4242 = vsel %vm4234, %v4225, %v4241
        %v4243 = vsel %vm4233, %v4240, %v4242
        %v4244 = vsel %vm4232, %v4222, %v4225
        %v4245 = vsel %vm4235, %v4231, 1326507024
        %v4246 = vsel %vm4234, %v4228, %v4245
        %v4247 = vsel %vm4233, %v4244, %v4246
        %v4248 = vshll.u32 %v4208, 8
        %v4249 = vand.u32 %v4248, 65535
        %v4250 = vshrl.u32 %v4248, 16
        %v4251 = vand.u32 %v4247, 65535
        %v4252 = vshrl.u32 %v4247, 16
        %v4253 = vmul.u32 %v4249, %v4251
        %v4254 = vmul.u32 %v4249, %v4252
        %v4255 = vmul.u32 %v4250, %v4251
        %v4256 = vmul.u32 %v4250, %v4252
        %v4257 = vshll.u32 %v4254, 16
        %v4258 = vshrl.u32 %v4254, 16
        %v4259 = vshll.u32 %v4255, 16
        %v4260 = vshrl.u32 %v4255, 16
        %vm4261 = vc.u32 %v4253, %v4257
        %v4262 = vsel %vm4261, 1, 0
        %v4263 = vadd.s32 %v4253, %v4257
        %v4264 = vadd.s32 %v4256, %v4262
        %vm4265 = vc.u32 %v4263, %v4259
        %v4266 = vsel %vm4265, 1, 0
        %v4267 = vadd.s32 %v4263, %v4259
        %v4268 = vadd.s32 %v4264, %v4266
        %v4269 = vadd.s32 %v4268, %v4258
        %v4270 = vadd.s32 %v4269, %v4260
        %v4271 = vand.u32 %v4248, 65535
        %v4272 = vshrl.u32 %v4248, 16
        %v4273 = vand.u32 %v4243, 65535
        %v4274 = vshrl.u32 %v4243, 16
        %v4275 = vmul.u32 %v4271, %v4273
        %v4276 = vmul.u32 %v4271, %v4274
        %v4277 = vmul.u32 %v4272, %v4273
        %v4278 = vmul.u32 %v4272, %v4274
        %v4279 = vshll.u32 %v4276, 16
        %v4280 = vshrl.u32 %v4276, 16
        %v4281 = vshll.u32 %v4277, 16
        %v4282 = vshrl.u32 %v4277, 16
        %vm4283 = vc.u32 %v4275, %v4279
        %v4284 = vsel %vm4283, 1, 0
        %v4285 = vadd.s32 %v4275, %v4279
        %v4286 = vadd.s32 %v4278, %v4284
        %vm4287 = vc.u32 %v4285, %v4281
        %v4288 = vsel %vm4287, 1, 0
        %v4289 = vadd.s32 %v4285, %v4281
        %v4290 = vadd.s32 %v4286, %v4288
        %v4291 = vadd.s32 %v4290, %v4280
        %v4292 = vadd.s32 %v4291, %v4282
        %v4293 = vmul.u32 %v4248, %v4239
        %v4294 = vadd.s32 %v4270, %v4289
        %vm4295 = vc.u32 %v4270, %v4289
        %v4296 = vadd.s32 %v4292, 1
        %v4297 = vsel %vm4295, %v4296, %v4292
        %v4298 = vadd.s32 %v4293, %v4297
        %v4299 = vadd.s32 %v4298, 536870912
        %v4300 = vshrl.u32 %v4299, 30
        %v4301 = vshll.u32 %v4300, 30
        %v4302 = vsub.s32 %v4298, %v4301
        %vm4303 = vcmp.lt.s32.totalorder %v4302, 0
        %v4304 = vsub.s32 0, %v4302
        %v4305 = vsel %vm4303, %v4304, %v4302
        %v4306 = vclz %v4305
        %v4307 = vsub.s32 %v4306, 2
        %vm4308 = vcmp.gt.s32.totalorder 0, %v4307
        %v4309 = vsel %vm4308, 0, %v4307
        %v4310 = vsub.s32 32, %v4309
        %v4311 = vshll.u32 %v4302, %v4309
        %v4312 = vshrl.u32 %v4294, %v4310
        %v4313 = vor.u32 %v4311, %v4312
        %v4314 = vsub.s32 4294967266, %v4309
        %v4315 = vadd.s32 %v4314, 127
        %v4316 = vshll.u32 %v4315, 23
        %v4317 = vor.u32 4788187, %v4316
        %v4318 = vand.u32 2147483647, %v4317
        %v4320 = vcvt.s32.f32 %v4313
        %v4321 = vmul.f32 %v4320, %v4318
        %v4322 = vxor.u32 %v4321, 2147483648
        %v4323 = vsel %vm4202, %v4322, %v4321
        %v4324 = vsub.s32 4, %v4300
        %v4325 = vsel %vm4202, %v4324, %v4300
        %v4326 = vsel %vm4201, %v327, %v4323
        %v4327 = vsel %vm4201, 0, %v4325
        %v4328 = vmul.f32 %v4326, %v4326
        %v4329 = vmul.f32 %v4328, -0.001358992
        %v4330 = vadd.f32 %v4329, 0.041655596
        %v4331 = vmul.f32 %v4328, %v4330
        %v4332 = vadd.f32 %v4331, -0.4999988
        %v4333 = vmul.f32 %v4328, %v4332
        %v4334 = vadd.f32 1.0, %v4333
        %v4335 = vmul.f32 %v4326, %v4326
        %v4336 = vmul.f32 %v4335, -0.00019511016
        %v4337 = vadd.f32 %v4336, 0.008332121
        %v4338 = vmul.f32 %v4335, %v4337
        %v4339 = vadd.f32 %v4338, -0.16666654
        %v4340 = vmul.f32 %v4335, %v4339
        %v4341 = vadd.f32 %v4340, 1.0
        %v4342 = vmul.f32 %v4341, %v4326
        %vm4343 = vweird.f32 %v327
        %v4344 = vand.u32 %v4327, 3
        %vm4345 = vcmp.lt.s32.totalorder %v4344, 2
        %vm4346 = vcmp.eq.s32.totalorder %v4344, 0
        %v4347 = vxor.u32 %v4342, 2147483648
        %v4348 = vsel %vm4346, %v4334, %v4347
        %vm4349 = vcmp.eq.s32.totalorder %v4344, 2
        %v4350 = vxor.u32 %v4334, 2147483648
        %v4351 = vsel %vm4349, %v4350, %v4342
        %v4352 = vsel %vm4345, %v4348, %v4351
        %v4353 = vsel %vm4343, nan, %v4352
        %v4354 = vand.u32 2147483647, %v328
        %vm4355 = vcmp.le.f32.partialorder %v4354, 0.7853982
        %vm4356 = vcmp.lt.s32.totalorder %v328, 0
        %v4357 = vand.u32 %v328, 2139095040
        %v4358 = vshrl.u32 %v4357, 23
        %v4359 = vsub.s32 %v4358, 127
        %v4360 = vand.u32 2147483647, %v328
        %v4361 = vand.u32 %v4360, 8388607
        %v4362 = vor.u32 %v4361, 8388608
        %v4363 = vsub.s32 0, %v4362
        %v4364 = vadd.s32 %v4359, 1
        %vm4365 = vcmp.gt.s32.totalorder %v4364, 0
        %v4366 = vsel %vm4365, %v4364, 0
        %v4367 = vshrl.u32 %v4366, 5
        %v4368 = vand.u32 %v4366, 31
        %v4369 = vsub.s32 32, %v4368
        %v4370 = vshrl.u32 683565275, %v4369
        %v4371 = vshll.u32 683565275, %v4368
        %v4372 = vshrl.u32 2475754826, %v4369
        %v4373 = vor.u32 %v4371, %v4372
        %v4374 = vshll.u32 2475754826, %v4368
        %v4375 = vshrl.u32 2131351028, %v4369
        %v4376 = vor.u32 %v4374, %v4375
        %v4377 = vshll.u32 2131351028, %v4368
        %v4378 = vshrl.u32 2102212464, %v4369
        %v4379 = vor.u32 %v4377, %v4378
        %v4380 = vshll.u32 2102212464, %v4368
        %v4381 = vshrl.u32 920167782, %v4369
        %v4382 = vor.u32 %v4380, %v4381
        %v4383 = vshll.u32 920167782, %v4368
        %v4384 = vshrl.u32 1326507024, %v4369
        %v4385 = vor.u32 %v4383, %v4384
        %vm4386 = vcmp.lt.s32.totalorder %v4367, 1
        %vm4387 = vcmp.lt.s32.totalorder %v4367, 2
        %vm4388 = vcmp.lt.s32.totalorder %v4367, 3
        %vm4389 = vcmp.lt.s32.totalorder %v4367, 4
        %v4390 = vsel %vm4386, %v4370, %v4373
        %v4391 = vsel %vm4389, %v4379, 2102212464
        %v4392 = vsel %vm4388, %v4376, %v4391
        %v4393 = vsel %vm4387, %v4390, %v4392
        %v4394 = vsel %vm4386, %v4373, %v4376
        %v4395 = vsel %vm4389, %v4382, 920167782
        %v4396 = vsel %vm4388, %v4379, %v4395
        %v4397 = vsel %vm4387, %v4394, %v4396
        %v4398 = vsel %vm4386, %v4376, %v4379
        %v4399 = vsel %vm4389, %v4385, 1326507024
        %v4400 = vsel %vm4388, %v4382, %v4399
        %v4401 = vsel %vm4387, %v4398, %v4400
        %v4402 = vshll.u32 %v4362, 8
        %v4403 = vand.u32 %v4402, 65535
        %v4404 = vshrl.u32 %v4402, 16
        %v4405 = vand.u32 %v4401, 65535
        %v4406 = vshrl.u32 %v4401, 16
        %v4407 = vmul.u32 %v4403, %v4405
        %v4408 = vmul.u32 %v4403, %v4406
        %v4409 = vmul.u32 %v4404, %v4405
        %v4410 = vmul.u32 %v4404, %v4406
        %v4411 = vshll.u32 %v4408, 16
        %v4412 = vshrl.u32 %v4408, 16
        %v4413 = vshll.u32 %v4409, 16
        %v4414 = vshrl.u32 %v4409, 16
        %vm4415 = vc.u32 %v4407, %v4411
        %v4416 = vsel %vm4415, 1, 0
        %v4417 = vadd.s32 %v4407, %v4411
        %v4418 = vadd.s32 %v4410, %v4416
        %vm4419 = vc.u32 %v4417, %v4413
        %v4420 = vsel %vm4419, 1, 0
        %v4421 = vadd.s32 %v4417, %v4413
        %v4422 = vadd.s32 %v4418, %v4420
        %v4423 = vadd.s32 %v4422, %v4412
        %v4424 = vadd.s32 %v4423, %v4414
        %v4425 = vand.u32 %v4402, 65535
        %v4426 = vshrl.u32 %v4402, 16
        %v4427 = vand.u32 %v4397, 65535
        %v4428 = vshrl.u32 %v4397, 16
        %v4429 = vmul.u32 %v4425, %v4427
        %v4430 = vmul.u32 %v4425, %v4428
        %v4431 = vmul.u32 %v4426, %v4427
        %v4432 = vmul.u32 %v4426, %v4428
        %v4433 = vshll.u32 %v4430, 16
        %v4434 = vshrl.u32 %v4430, 16
        %v4435 = vshll.u32 %v4431, 16
        %v4436 = vshrl.u32 %v4431, 16
        %vm4437 = vc.u32 %v4429, %v4433
        %v4438 = vsel %vm4437, 1, 0
        %v4439 = vadd.s32 %v4429, %v4433
        %v4440 = vadd.s32 %v4432, %v4438
        %vm4441 = vc.u32 %v4439, %v4435
        %v4442 = vsel %vm4441, 1, 0
        %v4443 = vadd.s32 %v4439, %v4435
        %v4444 = vadd.s32 %v4440, %v4442
        %v4445 = vadd.s32 %v4444, %v4434
        %v4446 = vadd.s32 %v4445, %v4436
        %v4447 = vmul.u32 %v4402, %v4393
        %v4448 = vadd.s32 %v4424, %v4443
        %vm4449 = vc.u32 %v4424, %v4443
        %v4450 = vadd.s32 %v4446, 1
        %v4451 = vsel %vm4449, %v4450, %v4446
        %v4452 = vadd.s32 %v4447, %v4451
        %v4453 = vadd.s32 %v4452, 536870912
        %v4454 = vshrl.u32 %v4453, 30
        %v4455 = vshll.u32 %v4454, 30
        %v4456 = vsub.s32 %v4452, %v4455
        %vm4457 = vcmp.lt.s32.totalorder %v4456, 0
        %v4458 = vsub.s32 0, %v4456
        %v4459 = vsel %vm4457, %v4458, %v4456
        %v4460 = vclz %v4459
        %v4461 = vsub.s32 %v4460, 2
        %vm4462 = vcmp.gt.s32.totalorder 0, %v4461
        %v4463 = vsel %vm4462, 0, %v4461
        %v4464 = vsub.s32 32, %v4463
        %v4465 = vshll.u32 %v4456, %v4463
        %v4466 = vshrl.u32 %v4448, %v4464
        %v4467 = vor.u32 %v4465, %v4466
        %v4468 = vsub.s32 4294967266, %v4463
        %v4469 = vadd.s32 %v4468, 127
        %v4470 = vshll.u32 %v4469, 23
        %v4471 = vor.u32 4788187, %v4470
        %v4472 = vand.u32 2147483647, %v4471
        %v4474 = vcvt.s32.f32 %v4467
        %v4475 = vmul.f32 %v4474, %v4472
        %v4476 = vxor.u32 %v4475, 2147483648
        %v4477 = vsel %vm4356, %v4476, %v4475
        %v4478 = vsub.s32 4, %v4454
        %v4479 = vsel %vm4356, %v4478, %v4454
        %v4480 = vsel %vm4355, %v328, %v4477
        %v4481 = vsel %vm4355, 0, %v4479
        %v4482 = vmul.f32 %v4480, %v4480
        %v4483 = vmul.f32 %v4482, -0.001358992
        %v4484 = vadd.f32 %v4483, 0.041655596
        %v4485 = vmul.f32 %v4482, %v4484
        %v4486 = vadd.f32 %v4485, -0.4999988
        %v4487 = vmul.f32 %v4482, %v4486
        %v4488 = vadd.f32 1.0, %v4487
        %v4489 = vmul.f32 %v4480, %v4480
        %v4490 = vmul.f32 %v4489, -0.00019511016
        %v4491 = vadd.f32 %v4490, 0.008332121
        %v4492 = vmul.f32 %v4489, %v4491
        %v4493 = vadd.f32 %v4492, -0.16666654
        %v4494 = vmul.f32 %v4489, %v4493
        %v4495 = vadd.f32 %v4494, 1.0
        %v4496 = vmul.f32 %v4495, %v4480
        %vm4497 = vweird.f32 %v328
        %v4498 = vand.u32 %v4481, 3
        %vm4499 = vcmp.lt.s32.totalorder %v4498, 2
        %vm4500 = vcmp.eq.s32.totalorder %v4498, 0
        %v4501 = vxor.u32 %v4496, 2147483648
        %v4502 = vsel %vm4500, %v4488, %v4501
        %vm4503 = vcmp.eq.s32.totalorder %v4498, 2
        %v4504 = vxor.u32 %v4488, 2147483648
        %v4505 = vsel %vm4503, %v4504, %v4496
        %v4506 = vsel %vm4499, %v4502, %v4505
        %v4507 = vsel %vm4497, nan, %v4506
        %v4508 = vand.u32 2147483647, %v329
        %vm4509 = vcmp.le.f32.partialorder %v4508, 0.7853982
        %vm4510 = vcmp.lt.s32.totalorder %v329, 0
        %v4511 = vand.u32 %v329, 2139095040
        %v4512 = vshrl.u32 %v4511, 23
        %v4513 = vsub.s32 %v4512, 127
        %v4514 = vand.u32 2147483647, %v329
        %v4515 = vand.u32 %v4514, 8388607
        %v4516 = vor.u32 %v4515, 8388608
        %v4517 = vsub.s32 0, %v4516
        %v4518 = vadd.s32 %v4513, 1
        %vm4519 = vcmp.gt.s32.totalorder %v4518, 0
        %v4520 = vsel %vm4519, %v4518, 0
        %v4521 = vshrl.u32 %v4520, 5
        %v4522 = vand.u32 %v4520, 31
        %v4523 = vsub.s32 32, %v4522
        %v4524 = vshrl.u32 683565275, %v4523
        %v4525 = vshll.u32 683565275, %v4522
        %v4526 = vshrl.u32 2475754826, %v4523
        %v4527 = vor.u32 %v4525, %v4526
        %v4528 = vshll.u32 2475754826, %v4522
        %v4529 = vshrl.u32 2131351028, %v4523
        %v4530 = vor.u32 %v4528, %v4529
        %v4531 = vshll.u32 2131351028, %v4522
        %v4532 = vshrl.u32 2102212464, %v4523
        %v4533 = vor.u32 %v4531, %v4532
        %v4534 = vshll.u32 2102212464, %v4522
        %v4535 = vshrl.u32 920167782, %v4523
        %v4536 = vor.u32 %v4534, %v4535
        %v4537 = vshll.u32 920167782, %v4522
        %v4538 = vshrl.u32 1326507024, %v4523
        %v4539 = vor.u32 %v4537, %v4538
        %vm4540 = vcmp.lt.s32.totalorder %v4521, 1
        %vm4541 = vcmp.lt.s32.totalorder %v4521, 2
        %vm4542 = vcmp.lt.s32.totalorder %v4521, 3
        %vm4543 = vcmp.lt.s32.totalorder %v4521, 4
        %v4544 = vsel %vm4540, %v4524, %v4527
        %v4545 = vsel %vm4543, %v4533, 2102212464
        %v4546 = vsel %vm4542, %v4530, %v4545
        %v4547 = vsel %vm4541, %v4544, %v4546
        %v4548 = vsel %vm4540, %v4527, %v4530
        %v4549 = vsel %vm4543, %v4536, 920167782
        %v4550 = vsel %vm4542, %v4533, %v4549
        %v4551 = vsel %vm4541, %v4548, %v4550
        %v4552 = vsel %vm4540, %v4530, %v4533
        %v4553 = vsel %vm4543, %v4539, 1326507024
        %v4554 = vsel %vm4542, %v4536, %v4553
        %v4555 = vsel %vm4541, %v4552, %v4554
        %v4556 = vshll.u32 %v4516, 8
        %v4557 = vand.u32 %v4556, 65535
        %v4558 = vshrl.u32 %v4556, 16
        %v4559 = vand.u32 %v4555, 65535
        %v4560 = vshrl.u32 %v4555, 16
        %v4561 = vmul.u32 %v4557, %v4559
        %v4562 = vmul.u32 %v4557, %v4560
        %v4563 = vmul.u32 %v4558, %v4559
        %v4564 = vmul.u32 %v4558, %v4560
        %v4565 = vshll.u32 %v4562, 16
        %v4566 = vshrl.u32 %v4562, 16
        %v4567 = vshll.u32 %v4563, 16
        %v4568 = vshrl.u32 %v4563, 16
        %vm4569 = vc.u32 %v4561, %v4565
        %v4570 = vsel %vm4569, 1, 0
        %v4571 = vadd.s32 %v4561, %v4565
        %v4572 = vadd.s32 %v4564, %v4570
        %vm4573 = vc.u32 %v4571, %v4567
        %v4574 = vsel %vm4573, 1, 0
        %v4575 = vadd.s32 %v4571, %v4567
        %v4576 = vadd.s32 %v4572, %v4574
        %v4577 = vadd.s32 %v4576, %v4566
        %v4578 = vadd.s32 %v4577, %v4568
        %v4579 = vand.u32 %v4556, 65535
        %v4580 = vshrl.u32 %v4556, 16
        %v4581 = vand.u32 %v4551, 65535
        %v4582 = vshrl.u32 %v4551, 16
        %v4583 = vmul.u32 %v4579, %v4581
        %v4584 = vmul.u32 %v4579, %v4582
        %v4585 = vmul.u32 %v4580, %v4581
        %v4586 = vmul.u32 %v4580, %v4582
        %v4587 = vshll.u32 %v4584, 16
        %v4588 = vshrl.u32 %v4584, 16
        %v4589 = vshll.u32 %v4585, 16
        %v4590 = vshrl.u32 %v4585, 16
        %vm4591 = vc.u32 %v4583, %v4587
        %v4592 = vsel %vm4591, 1, 0
        %v4593 = vadd.s32 %v4583, %v4587
        %v4594 = vadd.s32 %v4586, %v4592
        %vm4595 = vc.u32 %v4593, %v4589
        %v4596 = vsel %vm4595, 1, 0
        %v4597 = vadd.s32 %v4593, %v4589
        %v4598 = vadd.s32 %v4594, %v4596
        %v4599 = vadd.s32 %v4598, %v4588
        %v4600 = vadd.s32 %v4599, %v4590
        %v4601 = vmul.u32 %v4556, %v4547
        %v4602 = vadd.s32 %v4578, %v4597
        %vm4603 = vc.u32 %v4578, %v4597
        %v4604 = vadd.s32 %v4600, 1
        %v4605 = vsel %vm4603, %v4604, %v4600
        %v4606 = vadd.s32 %v4601, %v4605
        %v4607 = vadd.s32 %v4606, 536870912
        %v4608 = vshrl.u32 %v4607, 30
        %v4609 = vshll.u32 %v4608, 30
        %v4610 = vsub.s32 %v4606, %v4609
        %vm4611 = vcmp.lt.s32.totalorder %v4610, 0
        %v4612 = vsub.s32 0, %v4610
        %v4613 = vsel %vm4611, %v4612, %v4610
        %v4614 = vclz %v4613
        %v4615 = vsub.s32 %v4614, 2
        %vm4616 = vcmp.gt.s32.totalorder 0, %v4615
        %v4617 = vsel %vm4616, 0, %v4615
        %v4618 = vsub.s32 32, %v4617
        %v4619 = vshll.u32 %v4610, %v4617
        %v4620 = vshrl.u32 %v4602, %v4618
        %v4621 = vor.u32 %v4619, %v4620
        %v4622 = vsub.s32 4294967266, %v4617
        %v4623 = vadd.s32 %v4622, 127
        %v4624 = vshll.u32 %v4623, 23
        %v4625 = vor.u32 4788187, %v4624
        %v4626 = vand.u32 2147483647, %v4625
        %v4628 = vcvt.s32.f32 %v4621
        %v4629 = vmul.f32 %v4628, %v4626
        %v4630 = vxor.u32 %v4629, 2147483648
        %v4631 = vsel %vm4510, %v4630, %v4629
        %v4632 = vsub.s32 4, %v4608
        %v4633 = vsel %vm4510, %v4632, %v4608
        %v4634 = vsel %vm4509, %v329, %v4631
        %v4635 = vsel %vm4509, 0, %v4633
        %v4636 = vmul.f32 %v4634, %v4634
        %v4637 = vmul.f32 %v4636, -0.001358992
        %v4638 = vadd.f32 %v4637, 0.041655596
        %v4639 = vmul.f32 %v4636, %v4638
        %v4640 = vadd.f32 %v4639, -0.4999988
        %v4641 = vmul.f32 %v4636, %v4640
        %v4642 = vadd.f32 1.0, %v4641
        %v4643 = vmul.f32 %v4634, %v4634
        %v4644 = vmul.f32 %v4643, -0.00019511016
        %v4645 = vadd.f32 %v4644, 0.008332121
        %v4646 = vmul.f32 %v4643, %v4645
        %v4647 = vadd.f32 %v4646, -0.16666654
        %v4648 = vmul.f32 %v4643, %v4647
        %v4649 = vadd.f32 %v4648, 1.0
        %v4650 = vmul.f32 %v4649, %v4634
        %vm4651 = vweird.f32 %v329
        %v4652 = vand.u32 %v4635, 3
        %vm4653 = vcmp.lt.s32.totalorder %v4652, 2
        %vm4654 = vcmp.eq.s32.totalorder %v4652, 0
        %v4655 = vxor.u32 %v4650, 2147483648
        %v4656 = vsel %vm4654, %v4642, %v4655
        %vm4657 = vcmp.eq.s32.totalorder %v4652, 2
        %v4658 = vxor.u32 %v4642, 2147483648
        %v4659 = vsel %vm4657, %v4658, %v4650
        %v4660 = vsel %vm4653, %v4656, %v4659
        %v4661 = vsel %vm4651, nan, %v4660
        %v4662 = vand.u32 2147483647, %v330
        %vm4663 = vcmp.le.f32.partialorder %v4662, 0.7853982
        %vm4664 = vcmp.lt.s32.totalorder %v330, 0
        %v4665 = vand.u32 %v330, 2139095040
        %v4666 = vshrl.u32 %v4665, 23
        %v4667 = vsub.s32 %v4666, 127
        %v4668 = vand.u32 2147483647, %v330
        %v4669 = vand.u32 %v4668, 8388607
        %v4670 = vor.u32 %v4669, 8388608
        %v4671 = vsub.s32 0, %v4670
        %v4672 = vadd.s32 %v4667, 1
        %vm4673 = vcmp.gt.s32.totalorder %v4672, 0
        %v4674 = vsel %vm4673, %v4672, 0
        %v4675 = vshrl.u32 %v4674, 5
        %v4676 = vand.u32 %v4674, 31
        %v4677 = vsub.s32 32, %v4676
        %v4678 = vshrl.u32 683565275, %v4677
        %v4679 = vshll.u32 683565275, %v4676
        %v4680 = vshrl.u32 2475754826, %v4677
        %v4681 = vor.u32 %v4679, %v4680
        %v4682 = vshll.u32 2475754826, %v4676
        %v4683 = vshrl.u32 2131351028, %v4677
        %v4684 = vor.u32 %v4682, %v4683
        %v4685 = vshll.u32 2131351028, %v4676
        %v4686 = vshrl.u32 2102212464, %v4677
        %v4687 = vor.u32 %v4685, %v4686
        %v4688 = vshll.u32 2102212464, %v4676
        %v4689 = vshrl.u32 920167782, %v4677
        %v4690 = vor.u32 %v4688, %v4689
        %v4691 = vshll.u32 920167782, %v4676
        %v4692 = vshrl.u32 1326507024, %v4677
        %v4693 = vor.u32 %v4691, %v4692
        %vm4694 = vcmp.lt.s32.totalorder %v4675, 1
        %vm4695 = vcmp.lt.s32.totalorder %v4675, 2
        %vm4696 = vcmp.lt.s32.totalorder %v4675, 3
        %vm4697 = vcmp.lt.s32.totalorder %v4675, 4
        %v4698 = vsel %vm4694, %v4678, %v4681
        %v4699 = vsel %vm4697, %v4687, 2102212464
        %v4700 = vsel %vm4696, %v4684, %v4699
        %v4701 = vsel %vm4695, %v4698, %v4700
        %v4702 = vsel %vm4694, %v4681, %v4684
        %v4703 = vsel %vm4697, %v4690, 920167782
        %v4704 = vsel %vm4696, %v4687, %v4703
        %v4705 = vsel %vm4695, %v4702, %v4704
        %v4706 = vsel %vm4694, %v4684, %v4687
        %v4707 = vsel %vm4697, %v4693, 1326507024
        %v4708 = vsel %vm4696, %v4690, %v4707
        %v4709 = vsel %vm4695, %v4706, %v4708
        %v4710 = vshll.u32 %v4670, 8
        %v4711 = vand.u32 %v4710, 65535
        %v4712 = vshrl.u32 %v4710, 16
        %v4713 = vand.u32 %v4709, 65535
        %v4714 = vshrl.u32 %v4709, 16
        %v4715 = vmul.u32 %v4711, %v4713
        %v4716 = vmul.u32 %v4711, %v4714
        %v4717 = vmul.u32 %v4712, %v4713
        %v4718 = vmul.u32 %v4712, %v4714
        %v4719 = vshll.u32 %v4716, 16
        %v4720 = vshrl.u32 %v4716, 16
        %v4721 = vshll.u32 %v4717, 16
        %v4722 = vshrl.u32 %v4717, 16
        %vm4723 = vc.u32 %v4715, %v4719
        %v4724 = vsel %vm4723, 1, 0
        %v4725 = vadd.s32 %v4715, %v4719
        %v4726 = vadd.s32 %v4718, %v4724
        %vm4727 = vc.u32 %v4725, %v4721
        %v4728 = vsel %vm4727, 1, 0
        %v4729 = vadd.s32 %v4725, %v4721
        %v4730 = vadd.s32 %v4726, %v4728
        %v4731 = vadd.s32 %v4730, %v4720
        %v4732 = vadd.s32 %v4731, %v4722
        %v4733 = vand.u32 %v4710, 65535
        %v4734 = vshrl.u32 %v4710, 16
        %v4735 = vand.u32 %v4705, 65535
        %v4736 = vshrl.u32 %v4705, 16
        %v4737 = vmul.u32 %v4733, %v4735
        %v4738 = vmul.u32 %v4733, %v4736
        %v4739 = vmul.u32 %v4734, %v4735
        %v4740 = vmul.u32 %v4734, %v4736
        %v4741 = vshll.u32 %v4738, 16
        %v4742 = vshrl.u32 %v4738, 16
        %v4743 = vshll.u32 %v4739, 16
        %v4744 = vshrl.u32 %v4739, 16
        %vm4745 = vc.u32 %v4737, %v4741
        %v4746 = vsel %vm4745, 1, 0
        %v4747 = vadd.s32 %v4737, %v4741
        %v4748 = vadd.s32 %v4740, %v4746
        %vm4749 = vc.u32 %v4747, %v4743
        %v4750 = vsel %vm4749, 1, 0
        %v4751 = vadd.s32 %v4747, %v4743
        %v4752 = vadd.s32 %v4748, %v4750
        %v4753 = vadd.s32 %v4752, %v4742
        %v4754 = vadd.s32 %v4753, %v4744
        %v4755 = vmul.u32 %v4710, %v4701
        %v4756 = vadd.s32 %v4732, %v4751
        %vm4757 = vc.u32 %v4732, %v4751
        %v4758 = vadd.s32 %v4754, 1
        %v4759 = vsel %vm4757, %v4758, %v4754
        %v4760 = vadd.s32 %v4755, %v4759
        %v4761 = vadd.s32 %v4760, 536870912
        %v4762 = vshrl.u32 %v4761, 30
        %v4763 = vshll.u32 %v4762, 30
        %v4764 = vsub.s32 %v4760, %v4763
        %vm4765 = vcmp.lt.s32.totalorder %v4764, 0
        %v4766 = vsub.s32 0, %v4764
        %v4767 = vsel %vm4765, %v4766, %v4764
        %v4768 = vclz %v4767
        %v4769 = vsub.s32 %v4768, 2
        %vm4770 = vcmp.gt.s32.totalorder 0, %v4769
        %v4771 = vsel %vm4770, 0, %v4769
        %v4772 = vsub.s32 32, %v4771
        %v4773 = vshll.u32 %v4764, %v4771
        %v4774 = vshrl.u32 %v4756, %v4772
        %v4775 = vor.u32 %v4773, %v4774
        %v4776 = vsub.s32 4294967266, %v4771
        %v4777 = vadd.s32 %v4776, 127
        %v4778 = vshll.u32 %v4777, 23
        %v4779 = vor.u32 4788187, %v4778
        %v4780 = vand.u32 2147483647, %v4779
        %v4782 = vcvt.s32.f32 %v4775
        %v4783 = vmul.f32 %v4782, %v4780
        %v4784 = vxor.u32 %v4783, 2147483648
        %v4785 = vsel %vm4664, %v4784, %v4783
        %v4786 = vsub.s32 4, %v4762
        %v4787 = vsel %vm4664, %v4786, %v4762
        %v4788 = vsel %vm4663, %v330, %v4785
        %v4789 = vsel %vm4663, 0, %v4787
        %v4790 = vmul.f32 %v4788, %v4788
        %v4791 = vmul.f32 %v4790, -0.001358992
        %v4792 = vadd.f32 %v4791, 0.041655596
        %v4793 = vmul.f32 %v4790, %v4792
        %v4794 = vadd.f32 %v4793, -0.4999988
        %v4795 = vmul.f32 %v4790, %v4794
        %v4796 = vadd.f32 1.0, %v4795
        %v4797 = vmul.f32 %v4788, %v4788
        %v4798 = vmul.f32 %v4797, -0.00019511016
        %v4799 = vadd.f32 %v4798, 0.008332121
        %v4800 = vmul.f32 %v4797, %v4799
        %v4801 = vadd.f32 %v4800, -0.16666654
        %v4802 = vmul.f32 %v4797, %v4801
        %v4803 = vadd.f32 %v4802, 1.0
        %v4804 = vmul.f32 %v4803, %v4788
        %vm4805 = vweird.f32 %v330
        %v4806 = vand.u32 %v4789, 3
        %vm4807 = vcmp.lt.s32.totalorder %v4806, 2
        %vm4808 = vcmp.eq.s32.totalorder %v4806, 0
        %v4809 = vxor.u32 %v4804, 2147483648
        %v4810 = vsel %vm4808, %v4796, %v4809
        %vm4811 = vcmp.eq.s32.totalorder %v4806, 2
        %v4812 = vxor.u32 %v4796, 2147483648
        %v4813 = vsel %vm4811, %v4812, %v4804
        %v4814 = vsel %vm4807, %v4810, %v4813
        %v4815 = vsel %vm4805, nan, %v4814
        %v4816 = vand.u32 2147483647, %v331
        %vm4817 = vcmp.le.f32.partialorder %v4816, 0.7853982
        %vm4818 = vcmp.lt.s32.totalorder %v331, 0
        %v4819 = vand.u32 %v331, 2139095040
        %v4820 = vshrl.u32 %v4819, 23
        %v4821 = vsub.s32 %v4820, 127
        %v4822 = vand.u32 2147483647, %v331
        %v4823 = vand.u32 %v4822, 8388607
        %v4824 = vor.u32 %v4823, 8388608
        %v4825 = vsub.s32 0, %v4824
        %v4826 = vadd.s32 %v4821, 1
        %vm4827 = vcmp.gt.s32.totalorder %v4826, 0
        %v4828 = vsel %vm4827, %v4826, 0
        %v4829 = vshrl.u32 %v4828, 5
        %v4830 = vand.u32 %v4828, 31
        %v4831 = vsub.s32 32, %v4830
        %v4832 = vshrl.u32 683565275, %v4831
        %v4833 = vshll.u32 683565275, %v4830
        %v4834 = vshrl.u32 2475754826, %v4831
        %v4835 = vor.u32 %v4833, %v4834
        %v4836 = vshll.u32 2475754826, %v4830
        %v4837 = vshrl.u32 2131351028, %v4831
        %v4838 = vor.u32 %v4836, %v4837
        %v4839 = vshll.u32 2131351028, %v4830
        %v4840 = vshrl.u32 2102212464, %v4831
        %v4841 = vor.u32 %v4839, %v4840
        %v4842 = vshll.u32 2102212464, %v4830
        %v4843 = vshrl.u32 920167782, %v4831
        %v4844 = vor.u32 %v4842, %v4843
        %v4845 = vshll.u32 920167782, %v4830
        %v4846 = vshrl.u32 1326507024, %v4831
        %v4847 = vor.u32 %v4845, %v4846
        %vm4848 = vcmp.lt.s32.totalorder %v4829, 1
        %vm4849 = vcmp.lt.s32.totalorder %v4829, 2
        %vm4850 = vcmp.lt.s32.totalorder %v4829, 3
        %vm4851 = vcmp.lt.s32.totalorder %v4829, 4
        %v4852 = vsel %vm4848, %v4832, %v4835
        %v4853 = vsel %vm4851, %v4841, 2102212464
        %v4854 = vsel %vm4850, %v4838, %v4853
        %v4855 = vsel %vm4849, %v4852, %v4854
        %v4856 = vsel %vm4848, %v4835, %v4838
        %v4857 = vsel %vm4851, %v4844, 920167782
        %v4858 = vsel %vm4850, %v4841, %v4857
        %v4859 = vsel %vm4849, %v4856, %v4858
        %v4860 = vsel %vm4848, %v4838, %v4841
        %v4861 = vsel %vm4851, %v4847, 1326507024
        %v4862 = vsel %vm4850, %v4844, %v4861
        %v4863 = vsel %vm4849, %v4860, %v4862
        %v4864 = vshll.u32 %v4824, 8
        %v4865 = vand.u32 %v4864, 65535
        %v4866 = vshrl.u32 %v4864, 16
        %v4867 = vand.u32 %v4863, 65535
        %v4868 = vshrl.u32 %v4863, 16
        %v4869 = vmul.u32 %v4865, %v4867
        %v4870 = vmul.u32 %v4865, %v4868
        %v4871 = vmul.u32 %v4866, %v4867
        %v4872 = vmul.u32 %v4866, %v4868
        %v4873 = vshll.u32 %v4870, 16
        %v4874 = vshrl.u32 %v4870, 16
        %v4875 = vshll.u32 %v4871, 16
        %v4876 = vshrl.u32 %v4871, 16
        %vm4877 = vc.u32 %v4869, %v4873
        %v4878 = vsel %vm4877, 1, 0
        %v4879 = vadd.s32 %v4869, %v4873
        %v4880 = vadd.s32 %v4872, %v4878
        %vm4881 = vc.u32 %v4879, %v4875
        %v4882 = vsel %vm4881, 1, 0
        %v4883 = vadd.s32 %v4879, %v4875
        %v4884 = vadd.s32 %v4880, %v4882
        %v4885 = vadd.s32 %v4884, %v4874
        %v4886 = vadd.s32 %v4885, %v4876
        %v4887 = vand.u32 %v4864, 65535
        %v4888 = vshrl.u32 %v4864, 16
        %v4889 = vand.u32 %v4859, 65535
        %v4890 = vshrl.u32 %v4859, 16
        %v4891 = vmul.u32 %v4887, %v4889
        %v4892 = vmul.u32 %v4887, %v4890
        %v4893 = vmul.u32 %v4888, %v4889
        %v4894 = vmul.u32 %v4888, %v4890
        %v4895 = vshll.u32 %v4892, 16
        %v4896 = vshrl.u32 %v4892, 16
        %v4897 = vshll.u32 %v4893, 16
        %v4898 = vshrl.u32 %v4893, 16
        %vm4899 = vc.u32 %v4891, %v4895
        %v4900 = vsel %vm4899, 1, 0
        %v4901 = vadd.s32 %v4891, %v4895
        %v4902 = vadd.s32 %v4894, %v4900
        %vm4903 = vc.u32 %v4901, %v4897
        %v4904 = vsel %vm4903, 1, 0
        %v4905 = vadd.s32 %v4901, %v4897
        %v4906 = vadd.s32 %v4902, %v4904
        %v4907 = vadd.s32 %v4906, %v4896
        %v4908 = vadd.s32 %v4907, %v4898
        %v4909 = vmul.u32 %v4864, %v4855
        %v4910 = vadd.s32 %v4886, %v4905
        %vm4911 = vc.u32 %v4886, %v4905
        %v4912 = vadd.s32 %v4908, 1
        %v4913 = vsel %vm4911, %v4912, %v4908
        %v4914 = vadd.s32 %v4909, %v4913
        %v4915 = vadd.s32 %v4914, 536870912
        %v4916 = vshrl.u32 %v4915, 30
        %v4917 = vshll.u32 %v4916, 30
        %v4918 = vsub.s32 %v4914, %v4917
        %vm4919 = vcmp.lt.s32.totalorder %v4918, 0
        %v4920 = vsub.s32 0, %v4918
        %v4921 = vsel %vm4919, %v4920, %v4918
        %v4922 = vclz %v4921
        %v4923 = vsub.s32 %v4922, 2
        %vm4924 = vcmp.gt.s32.totalorder 0, %v4923
        %v4925 = vsel %vm4924, 0, %v4923
        %v4926 = vsub.s32 32, %v4925
        %v4927 = vshll.u32 %v4918, %v4925
        %v4928 = vshrl.u32 %v4910, %v4926
        %v4929 = vor.u32 %v4927, %v4928
        %v4930 = vsub.s32 4294967266, %v4925
        %v4931 = vadd.s32 %v4930, 127
        %v4932 = vshll.u32 %v4931, 23
        %v4933 = vor.u32 4788187, %v4932
        %v4934 = vand.u32 2147483647, %v4933
        %v4936 = vcvt.s32.f32 %v4929
        %v4937 = vmul.f32 %v4936, %v4934
        %v4938 = vxor.u32 %v4937, 2147483648
        %v4939 = vsel %vm4818, %v4938, %v4937
        %v4940 = vsub.s32 4, %v4916
        %v4941 = vsel %vm4818, %v4940, %v4916
        %v4942 = vsel %vm4817, %v331, %v4939
        %v4943 = vsel %vm4817, 0, %v4941
        %v4944 = vmul.f32 %v4942, %v4942
        %v4945 = vmul.f32 %v4944, -0.001358992
        %v4946 = vadd.f32 %v4945, 0.041655596
        %v4947 = vmul.f32 %v4944, %v4946
        %v4948 = vadd.f32 %v4947, -0.4999988
        %v4949 = vmul.f32 %v4944, %v4948
        %v4950 = vadd.f32 1.0, %v4949
        %v4951 = vmul.f32 %v4942, %v4942
        %v4952 = vmul.f32 %v4951, -0.00019511016
        %v4953 = vadd.f32 %v4952, 0.008332121
        %v4954 = vmul.f32 %v4951, %v4953
        %v4955 = vadd.f32 %v4954, -0.16666654
        %v4956 = vmul.f32 %v4951, %v4955
        %v4957 = vadd.f32 %v4956, 1.0
        %v4958 = vmul.f32 %v4957, %v4942
        %vm4959 = vweird.f32 %v331
        %v4960 = vand.u32 %v4943, 3
        %vm4961 = vcmp.lt.s32.totalorder %v4960, 2
        %vm4962 = vcmp.eq.s32.totalorder %v4960, 0
        %v4963 = vxor.u32 %v4958, 2147483648
        %v4964 = vsel %vm4962, %v4950, %v4963
        %vm4965 = vcmp.eq.s32.totalorder %v4960, 2
        %v4966 = vxor.u32 %v4950, 2147483648
        %v4967 = vsel %vm4965, %v4966, %v4958
        %v4968 = vsel %vm4961, %v4964, %v4967
        %v4969 = vsel %vm4959, nan, %v4968
        %v4970 = vand.u32 2147483647, %v332
        %vm4971 = vcmp.le.f32.partialorder %v4970, 0.7853982
        %vm4972 = vcmp.lt.s32.totalorder %v332, 0
        %v4973 = vand.u32 %v332, 2139095040
        %v4974 = vshrl.u32 %v4973, 23
        %v4975 = vsub.s32 %v4974, 127
        %v4976 = vand.u32 2147483647, %v332
        %v4977 = vand.u32 %v4976, 8388607
        %v4978 = vor.u32 %v4977, 8388608
        %v4979 = vsub.s32 0, %v4978
        %v4980 = vadd.s32 %v4975, 1
        %vm4981 = vcmp.gt.s32.totalorder %v4980, 0
        %v4982 = vsel %vm4981, %v4980, 0
        %v4983 = vshrl.u32 %v4982, 5
        %v4984 = vand.u32 %v4982, 31
        %v4985 = vsub.s32 32, %v4984
        %v4986 = vshrl.u32 683565275, %v4985
        %v4987 = vshll.u32 683565275, %v4984
        %v4988 = vshrl.u32 2475754826, %v4985
        %v4989 = vor.u32 %v4987, %v4988
        %v4990 = vshll.u32 2475754826, %v4984
        %v4991 = vshrl.u32 2131351028, %v4985
        %v4992 = vor.u32 %v4990, %v4991
        %v4993 = vshll.u32 2131351028, %v4984
        %v4994 = vshrl.u32 2102212464, %v4985
        %v4995 = vor.u32 %v4993, %v4994
        %v4996 = vshll.u32 2102212464, %v4984
        %v4997 = vshrl.u32 920167782, %v4985
        %v4998 = vor.u32 %v4996, %v4997
        %v4999 = vshll.u32 920167782, %v4984
        %v5000 = vshrl.u32 1326507024, %v4985
        %v5001 = vor.u32 %v4999, %v5000
        %vm5002 = vcmp.lt.s32.totalorder %v4983, 1
        %vm5003 = vcmp.lt.s32.totalorder %v4983, 2
        %vm5004 = vcmp.lt.s32.totalorder %v4983, 3
        %vm5005 = vcmp.lt.s32.totalorder %v4983, 4
        %v5006 = vsel %vm5002, %v4986, %v4989
        %v5007 = vsel %vm5005, %v4995, 2102212464
        %v5008 = vsel %vm5004, %v4992, %v5007
        %v5009 = vsel %vm5003, %v5006, %v5008
        %v5010 = vsel %vm5002, %v4989, %v4992
        %v5011 = vsel %vm5005, %v4998, 920167782
        %v5012 = vsel %vm5004, %v4995, %v5011
        %v5013 = vsel %vm5003, %v5010, %v5012
        %v5014 = vsel %vm5002, %v4992, %v4995
        %v5015 = vsel %vm5005, %v5001, 1326507024
        %v5016 = vsel %vm5004, %v4998, %v5015
        %v5017 = vsel %vm5003, %v5014, %v5016
        %v5018 = vshll.u32 %v4978, 8
        %v5019 = vand.u32 %v5018, 65535
        %v5020 = vshrl.u32 %v5018, 16
        %v5021 = vand.u32 %v5017, 65535
        %v5022 = vshrl.u32 %v5017, 16
        %v5023 = vmul.u32 %v5019, %v5021
        %v5024 = vmul.u32 %v5019, %v5022
        %v5025 = vmul.u32 %v5020, %v5021
        %v5026 = vmul.u32 %v5020, %v5022
        %v5027 = vshll.u32 %v5024, 16
        %v5028 = vshrl.u32 %v5024, 16
        %v5029 = vshll.u32 %v5025, 16
        %v5030 = vshrl.u32 %v5025, 16
        %vm5031 = vc.u32 %v5023, %v5027
        %v5032 = vsel %vm5031, 1, 0
        %v5033 = vadd.s32 %v5023, %v5027
        %v5034 = vadd.s32 %v5026, %v5032
        %vm5035 = vc.u32 %v5033, %v5029
        %v5036 = vsel %vm5035, 1, 0
        %v5037 = vadd.s32 %v5033, %v5029
        %v5038 = vadd.s32 %v5034, %v5036
        %v5039 = vadd.s32 %v5038, %v5028
        %v5040 = vadd.s32 %v5039, %v5030
        %v5041 = vand.u32 %v5018, 65535
        %v5042 = vshrl.u32 %v5018, 16
        %v5043 = vand.u32 %v5013, 65535
        %v5044 = vshrl.u32 %v5013, 16
        %v5045 = vmul.u32 %v5041, %v5043
        %v5046 = vmul.u32 %v5041, %v5044
        %v5047 = vmul.u32 %v5042, %v5043
        %v5048 = vmul.u32 %v5042, %v5044
        %v5049 = vshll.u32 %v5046, 16
        %v5050 = vshrl.u32 %v5046, 16
        %v5051 = vshll.u32 %v5047, 16
        %v5052 = vshrl.u32 %v5047, 16
        %vm5053 = vc.u32 %v5045, %v5049
        %v5054 = vsel %vm5053, 1, 0
        %v5055 = vadd.s32 %v5045, %v5049
        %v5056 = vadd.s32 %v5048, %v5054
        %vm5057 = vc.u32 %v5055, %v5051
        %v5058 = vsel %vm5057, 1, 0
        %v5059 = vadd.s32 %v5055, %v5051
        %v5060 = vadd.s32 %v5056, %v5058
        %v5061 = vadd.s32 %v5060, %v5050
        %v5062 = vadd.s32 %v5061, %v5052
        %v5063 = vmul.u32 %v5018, %v5009
        %v5064 = vadd.s32 %v5040, %v5059
        %vm5065 = vc.u32 %v5040, %v5059
        %v5066 = vadd.s32 %v5062, 1
        %v5067 = vsel %vm5065, %v5066, %v5062
        %v5068 = vadd.s32 %v5063, %v5067
        %v5069 = vadd.s32 %v5068, 536870912
        %v5070 = vshrl.u32 %v5069, 30
        %v5071 = vshll.u32 %v5070, 30
        %v5072 = vsub.s32 %v5068, %v5071
        %vm5073 = vcmp.lt.s32.totalorder %v5072, 0
        %v5074 = vsub.s32 0, %v5072
        %v5075 = vsel %vm5073, %v5074, %v5072
        %v5076 = vclz %v5075
        %v5077 = vsub.s32 %v5076, 2
        %vm5078 = vcmp.gt.s32.totalorder 0, %v5077
        %v5079 = vsel %vm5078, 0, %v5077
        %v5080 = vsub.s32 32, %v5079
        %v5081 = vshll.u32 %v5072, %v5079
        %v5082 = vshrl.u32 %v5064, %v5080
        %v5083 = vor.u32 %v5081, %v5082
        %v5084 = vsub.s32 4294967266, %v5079
        %v5085 = vadd.s32 %v5084, 127
        %v5086 = vshll.u32 %v5085, 23
        %v5087 = vor.u32 4788187, %v5086
        %v5088 = vand.u32 2147483647, %v5087
        %v5090 = vcvt.s32.f32 %v5083
        %v5091 = vmul.f32 %v5090, %v5088
        %v5092 = vxor.u32 %v5091, 2147483648
        %v5093 = vsel %vm4972, %v5092, %v5091
        %v5094 = vsub.s32 4, %v5070
        %v5095 = vsel %vm4972, %v5094, %v5070
        %v5096 = vsel %vm4971, %v332, %v5093
        %v5097 = vsel %vm4971, 0, %v5095
        %v5098 = vmul.f32 %v5096, %v5096
        %v5099 = vmul.f32 %v5098, -0.001358992
        %v5100 = vadd.f32 %v5099, 0.041655596
        %v5101 = vmul.f32 %v5098, %v5100
        %v5102 = vadd.f32 %v5101, -0.4999988
        %v5103 = vmul.f32 %v5098, %v5102
        %v5104 = vadd.f32 1.0, %v5103
        %v5105 = vmul.f32 %v5096, %v5096
        %v5106 = vmul.f32 %v5105, -0.00019511016
        %v5107 = vadd.f32 %v5106, 0.008332121
        %v5108 = vmul.f32 %v5105, %v5107
        %v5109 = vadd.f32 %v5108, -0.16666654
        %v5110 = vmul.f32 %v5105, %v5109
        %v5111 = vadd.f32 %v5110, 1.0
        %v5112 = vmul.f32 %v5111, %v5096
        %vm5113 = vweird.f32 %v332
        %v5114 = vand.u32 %v5097, 3
        %vm5115 = vcmp.lt.s32.totalorder %v5114, 2
        %vm5116 = vcmp.eq.s32.totalorder %v5114, 0
        %v5117 = vxor.u32 %v5112, 2147483648
        %v5118 = vsel %vm5116, %v5104, %v5117
        %vm5119 = vcmp.eq.s32.totalorder %v5114, 2
        %v5120 = vxor.u32 %v5104, 2147483648
        %v5121 = vsel %vm5119, %v5120, %v5112
        %v5122 = vsel %vm5115, %v5118, %v5121
        %v5123 = vsel %vm5113, nan, %v5122
        %v5124 = vand.u32 2147483647, %v333
        %vm5125 = vcmp.le.f32.partialorder %v5124, 0.7853982
        %vm5126 = vcmp.lt.s32.totalorder %v333, 0
        %v5127 = vand.u32 %v333, 2139095040
        %v5128 = vshrl.u32 %v5127, 23
        %v5129 = vsub.s32 %v5128, 127
        %v5130 = vand.u32 2147483647, %v333
        %v5131 = vand.u32 %v5130, 8388607
        %v5132 = vor.u32 %v5131, 8388608
        %v5133 = vsub.s32 0, %v5132
        %v5134 = vadd.s32 %v5129, 1
        %vm5135 = vcmp.gt.s32.totalorder %v5134, 0
        %v5136 = vsel %vm5135, %v5134, 0
        %v5137 = vshrl.u32 %v5136, 5
        %v5138 = vand.u32 %v5136, 31
        %v5139 = vsub.s32 32, %v5138
        %v5140 = vshrl.u32 683565275, %v5139
        %v5141 = vshll.u32 683565275, %v5138
        %v5142 = vshrl.u32 2475754826, %v5139
        %v5143 = vor.u32 %v5141, %v5142
        %v5144 = vshll.u32 2475754826, %v5138
        %v5145 = vshrl.u32 2131351028, %v5139
        %v5146 = vor.u32 %v5144, %v5145
        %v5147 = vshll.u32 2131351028, %v5138
        %v5148 = vshrl.u32 2102212464, %v5139
        %v5149 = vor.u32 %v5147, %v5148
        %v5150 = vshll.u32 2102212464, %v5138
        %v5151 = vshrl.u32 920167782, %v5139
        %v5152 = vor.u32 %v5150, %v5151
        %v5153 = vshll.u32 920167782, %v5138
        %v5154 = vshrl.u32 1326507024, %v5139
        %v5155 = vor.u32 %v5153, %v5154
        %vm5156 = vcmp.lt.s32.totalorder %v5137, 1
        %vm5157 = vcmp.lt.s32.totalorder %v5137, 2
        %vm5158 = vcmp.lt.s32.totalorder %v5137, 3
        %vm5159 = vcmp.lt.s32.totalorder %v5137, 4
        %v5160 = vsel %vm5156, %v5140, %v5143
        %v5161 = vsel %vm5159, %v5149, 2102212464
        %v5162 = vsel %vm5158, %v5146, %v5161
        %v5163 = vsel %vm5157, %v5160, %v5162
        %v5164 = vsel %vm5156, %v5143, %v5146
        %v5165 = vsel %vm5159, %v5152, 920167782
        %v5166 = vsel %vm5158, %v5149, %v5165
        %v5167 = vsel %vm5157, %v5164, %v5166
        %v5168 = vsel %vm5156, %v5146, %v5149
        %v5169 = vsel %vm5159, %v5155, 1326507024
        %v5170 = vsel %vm5158, %v5152, %v5169
        %v5171 = vsel %vm5157, %v5168, %v5170
        %v5172 = vshll.u32 %v5132, 8
        %v5173 = vand.u32 %v5172, 65535
        %v5174 = vshrl.u32 %v5172, 16
        %v5175 = vand.u32 %v5171, 65535
        %v5176 = vshrl.u32 %v5171, 16
        %v5177 = vmul.u32 %v5173, %v5175
        %v5178 = vmul.u32 %v5173, %v5176
        %v5179 = vmul.u32 %v5174, %v5175
        %v5180 = vmul.u32 %v5174, %v5176
        %v5181 = vshll.u32 %v5178, 16
        %v5182 = vshrl.u32 %v5178, 16
        %v5183 = vshll.u32 %v5179, 16
        %v5184 = vshrl.u32 %v5179, 16
        %vm5185 = vc.u32 %v5177, %v5181
        %v5186 = vsel %vm5185, 1, 0
        %v5187 = vadd.s32 %v5177, %v5181
        %v5188 = vadd.s32 %v5180, %v5186
        %vm5189 = vc.u32 %v5187, %v5183
        %v5190 = vsel %vm5189, 1, 0
        %v5191 = vadd.s32 %v5187, %v5183
        %v5192 = vadd.s32 %v5188, %v5190
        %v5193 = vadd.s32 %v5192, %v5182
        %v5194 = vadd.s32 %v5193, %v5184
        %v5195 = vand.u32 %v5172, 65535
        %v5196 = vshrl.u32 %v5172, 16
        %v5197 = vand.u32 %v5167, 65535
        %v5198 = vshrl.u32 %v5167, 16
        %v5199 = vmul.u32 %v5195, %v5197
        %v5200 = vmul.u32 %v5195, %v5198
        %v5201 = vmul.u32 %v5196, %v5197
        %v5202 = vmul.u32 %v5196, %v5198
        %v5203 = vshll.u32 %v5200, 16
        %v5204 = vshrl.u32 %v5200, 16
        %v5205 = vshll.u32 %v5201, 16
        %v5206 = vshrl.u32 %v5201, 16
        %vm5207 = vc.u32 %v5199, %v5203
        %v5208 = vsel %vm5207, 1, 0
        %v5209 = vadd.s32 %v5199, %v5203
        %v5210 = vadd.s32 %v5202, %v5208
        %vm5211 = vc.u32 %v5209, %v5205
        %v5212 = vsel %vm5211, 1, 0
        %v5213 = vadd.s32 %v5209, %v5205
        %v5214 = vadd.s32 %v5210, %v5212
        %v5215 = vadd.s32 %v5214, %v5204
        %v5216 = vadd.s32 %v5215, %v5206
        %v5217 = vmul.u32 %v5172, %v5163
        %v5218 = vadd.s32 %v5194, %v5213
        %vm5219 = vc.u32 %v5194, %v5213
        %v5220 = vadd.s32 %v5216, 1
        %v5221 = vsel %vm5219, %v5220, %v5216
        %v5222 = vadd.s32 %v5217, %v5221
        %v5223 = vadd.s32 %v5222, 536870912
        %v5224 = vshrl.u32 %v5223, 30
        %v5225 = vshll.u32 %v5224, 30
        %v5226 = vsub.s32 %v5222, %v5225
        %vm5227 = vcmp.lt.s32.totalorder %v5226, 0
        %v5228 = vsub.s32 0, %v5226
        %v5229 = vsel %vm5227, %v5228, %v5226
        %v5230 = vclz %v5229
        %v5231 = vsub.s32 %v5230, 2
        %vm5232 = vcmp.gt.s32.totalorder 0, %v5231
        %v5233 = vsel %vm5232, 0, %v5231
        %v5234 = vsub.s32 32, %v5233
        %v5235 = vshll.u32 %v5226, %v5233
        %v5236 = vshrl.u32 %v5218, %v5234
        %v5237 = vor.u32 %v5235, %v5236
        %v5238 = vsub.s32 4294967266, %v5233
        %v5239 = vadd.s32 %v5238, 127
        %v5240 = vshll.u32 %v5239, 23
        %v5241 = vor.u32 4788187, %v5240
        %v5242 = vand.u32 2147483647, %v5241
        %v5244 = vcvt.s32.f32 %v5237
        %v5245 = vmul.f32 %v5244, %v5242
        %v5246 = vxor.u32 %v5245, 2147483648
        %v5247 = vsel %vm5126, %v5246, %v5245
        %v5248 = vsub.s32 4, %v5224
        %v5249 = vsel %vm5126, %v5248, %v5224
        %v5250 = vsel %vm5125, %v333, %v5247
        %v5251 = vsel %vm5125, 0, %v5249
        %v5252 = vmul.f32 %v5250, %v5250
        %v5253 = vmul.f32 %v5252, -0.001358992
        %v5254 = vadd.f32 %v5253, 0.041655596
        %v5255 = vmul.f32 %v5252, %v5254
        %v5256 = vadd.f32 %v5255, -0.4999988
        %v5257 = vmul.f32 %v5252, %v5256
        %v5258 = vadd.f32 1.0, %v5257
        %v5259 = vmul.f32 %v5250, %v5250
        %v5260 = vmul.f32 %v5259, -0.00019511016
        %v5261 = vadd.f32 %v5260, 0.008332121
        %v5262 = vmul.f32 %v5259, %v5261
        %v5263 = vadd.f32 %v5262, -0.16666654
        %v5264 = vmul.f32 %v5259, %v5263
        %v5265 = vadd.f32 %v5264, 1.0
        %v5266 = vmul.f32 %v5265, %v5250
        %vm5267 = vweird.f32 %v333
        %v5268 = vand.u32 %v5251, 3
        %vm5269 = vcmp.lt.s32.totalorder %v5268, 2
        %vm5270 = vcmp.eq.s32.totalorder %v5268, 0
        %v5271 = vxor.u32 %v5266, 2147483648
        %v5272 = vsel %vm5270, %v5258, %v5271
        %vm5273 = vcmp.eq.s32.totalorder %v5268, 2
        %v5274 = vxor.u32 %v5258, 2147483648
        %v5275 = vsel %vm5273, %v5274, %v5266
        %v5276 = vsel %vm5269, %v5272, %v5275
        %v5277 = vsel %vm5267, nan, %v5276
        %5280 = vst [vmem:[#allocation1] ss:$2 sm:$0xff] %v114
        %s5281 = scalar_lea.vmem [#allocation1], 16
        %5282 = vst [vmem:[%s5281] ss:$2 sm:$0xff] %v115
        %v5283 = vld.sshfl [vmem:[#allocation1] sm:$0xff pattern:$0x75316420]
        %v5284 = vld.sshfl [vmem:[#allocation1 + $0x8] sm:$0xff pattern:$0x75316420]
        %v5285 = vld.sshfl [vmem:[#allocation1 + $0x10] sm:$0xff pattern:$0x75316420]
        %v5286 = vld.sshfl [vmem:[#allocation1 + $0x18] sm:$0xff pattern:$0x75316420]
        %v5307 = vrot.slane %v488, 5
        %v5308 = vrot.slane %v643, 5
        %v5309 = vrot.slane %v798, 5
        %v5310 = vrot.slane %v953, 5
        %v5311 = vrot.slane %v1108, 5
        %v5312 = vsel %vm295, %v5307, %v5311
        %v5313 = vrot.slane %v1263, 5
        %v5314 = vsel %vm295, %v5308, %v5313
        %v5315 = vrot.slane %v1418, 5
        %v5316 = vsel %vm295, %v5309, %v5315
        %v5317 = vrot.slane %v1573, 5
        %v5318 = vsel %vm295, %v5310, %v5317
        %v5319 = vrot.slane %v1728, 5
        %v5320 = vsel %vm295, %v5311, %v5319
        %v5321 = vrot.slane %v1883, 5
        %v5322 = vsel %vm295, %v5313, %v5321
        %v5323 = vrot.slane %v2038, 5
        %v5324 = vsel %vm295, %v5315, %v5323
        %v5325 = vrot.slane %v2193, 5
        %v5326 = vsel %vm295, %v5317, %v5325
        %v5327 = vrot.slane %v2348, 5
        %v5328 = vsel %vm295, %v5319, %v5327
        %v5329 = vrot.slane %v2503, 5
        %v5330 = vsel %vm295, %v5321, %v5329
        %v5331 = vrot.slane %v2658, 5
        %v5332 = vsel %vm295, %v5323, %v5331
        %v5333 = vrot.slane %v2813, 5
        %v5334 = vsel %vm295, %v5325, %v5333
        %v5371 = vrot.slane %v2967, 7
        %v5372 = vrot.slane %v3121, 7
        %v5373 = vrot.slane %v3275, 7
        %v5374 = vrot.slane %v3429, 7
        %v5375 = vrot.slane %v3583, 7
        %v5376 = vsel %vm305, %v5371, %v5375
        %v5377 = vrot.slane %v3737, 7
        %v5378 = vsel %vm305, %v5372, %v5377
        %v5379 = vrot.slane %v3891, 7
        %v5380 = vsel %vm305, %v5373, %v5379
        %v5381 = vrot.slane %v4045, 7
        %v5382 = vsel %vm305, %v5374, %v5381
        %v5383 = vrot.slane %v4199, 7
        %v5384 = vsel %vm305, %v5375, %v5383
        %v5385 = vrot.slane %v4353, 7
        %v5386 = vsel %vm305, %v5377, %v5385
        %v5387 = vrot.slane %v4507, 7
        %v5388 = vsel %vm305, %v5379, %v5387
        %v5389 = vrot.slane %v4661, 7
        %v5390 = vsel %vm305, %v5381, %v5389
        %v5391 = vrot.slane %v4815, 7
        %v5392 = vsel %vm305, %v5383, %v5391
        %v5393 = vrot.slane %v4969, 7
        %v5394 = vsel %vm305, %v5385, %v5393
        %v5395 = vrot.slane %v5123, 7
        %v5396 = vsel %vm305, %v5387, %v5395
        %v5397 = vrot.slane %v5277, 7
        %v5398 = vsel %vm305, %v5389, %v5397
        %v5415 = vsel %vm295, %v5283, %v5307
        %v5416 = vsel %vm295, %v5284, %v5308
        %v5417 = vsel %vm295, %v5285, %v5309
        %v5418 = vsel %vm295, %v5286, %v5310
        %v5419 = vsel %vm305, %v5327, %v5371
        %v5420 = vsel %vm305, %v5329, %v5372
        %v5421 = vsel %vm305, %v5331, %v5373
        %v5422 = vsel %vm305, %v5333, %v5374
        %5423 = vst [vmem:[%s106] sm:$0xff] %v5415
        %5424 = vst [vmem:[%s106 + $0x8] sm:$0xff] %v5416
        %5425 = vst [vmem:[%s106 + $0x10] sm:$0xff] %v5417
        %5426 = vst [vmem:[%s106 + $0x18] sm:$0xff] %v5418
        %5427 = vst [vmem:[%s106 + $0x20] sm:$0xff] %v5312
        %5428 = vst [vmem:[%s106 + $0x28] sm:$0xff] %v5314
        %5429 = vst [vmem:[%s106 + $0x30] sm:$0xff] %v5316
        %5430 = vst [vmem:[%s106 + $0x38] sm:$0xff] %v5318
        %5431 = vst [vmem:[%s106 + $0x40] sm:$0xff] %v5320
        %5432 = vst [vmem:[%s106 + $0x48] sm:$0xff] %v5322
        %5433 = vst [vmem:[%s106 + $0x50] sm:$0xff] %v5324
        %5434 = vst [vmem:[%s106 + $0x58] sm:$0xff] %v5326
        %5435 = vst [vmem:[%s106 + $0x60] sm:$0xff] %v5328
        %5436 = vst [vmem:[%s106 + $0x68] sm:$0xff] %v5330
        %5437 = vst [vmem:[%s106 + $0x70] sm:$0xff] %v5332
        %5438 = vst [vmem:[%s106 + $0x78] sm:$0xff] %v5334
        %5439 = vst [vmem:[%s106 + $0x80] sm:$0xff] %v5419
        %5440 = vst [vmem:[%s106 + $0x88] sm:$0xff] %v5420
        %5441 = vst [vmem:[%s106 + $0x90] sm:$0xff] %v5421
        %5442 = vst [vmem:[%s106 + $0x98] sm:$0xff] %v5422
        %5443 = vst [vmem:[%s106 + $0xa0] sm:$0xff] %v5376
        %5444 = vst [vmem:[%s106 + $0xa8] sm:$0xff] %v5378
        %5445 = vst [vmem:[%s106 + $0xb0] sm:$0xff] %v5380
        %5446 = vst [vmem:[%s106 + $0xb8] sm:$0xff] %v5382
        %5447 = vst [vmem:[%s106 + $0xc0] sm:$0xff] %v5384
        %5448 = vst [vmem:[%s106 + $0xc8] sm:$0xff] %v5386
        %5449 = vst [vmem:[%s106 + $0xd0] sm:$0xff] %v5388
        %5450 = vst [vmem:[%s106 + $0xd8] sm:$0xff] %v5390
        %5451 = vst [vmem:[%s106 + $0xe0] sm:$0x7f] %v5392
        %5452 = vst [vmem:[%s106 + $0xe8] sm:$0x7f] %v5394
        %5453 = vst [vmem:[%s106 + $0xf0] sm:$0x7f] %v5396
        %5454 = vst [vmem:[%s106 + $0xf8] sm:$0x7f] %v5398
        %s5455 = sand.u32 %s46, 1
        %s5456 = sand.u32 %s46, 1
        %s5457 = smul.addr %s5456, 256
        %s5458 = scalar_lea.vmem [#allocation2], %s5457
        // Predicated region
        $region25: #{pos_encoding_nerf.1} parent=23 // pred_check
          %p5459 = pneg %p56
        $region26: #{pos_encoding_nerf.1} parent=23 // pred_check_branch
          %5461 = sbr.rel (%p5459) target = $region28
        $region27: #{pos_encoding_nerf.1} parent=23 // pred_region
          %s5462 = smul.u32 4, %s12
          %s5463 = smul.addr %s5462, 8
          %s5464 = scalar_lea.vmem %s1, %s5463
          // Predicated region
          $region29: #{pos_encoding_nerf.1} parent=27 // pred_check
            _
          $region30: #{pos_encoding_nerf.1} parent=27 // pred_check_branch
            %5466 = sbr.rel (0) target = $region32
          $region31: #{pos_encoding_nerf.1} parent=27 // pred_region
            // Predicated region
            $region33: #{pos_encoding_nerf.1} parent=31 // pred_check
              _
            $region34: #{pos_encoding_nerf.1} parent=31 // pred_check_branch
              %5468 = sbr.rel (0) target = $region36
            $region35: #{pos_encoding_nerf.1} parent=31 // pred_region
              loop: start=0, step=1, limit=1
              $region37: #{pos_encoding_nerf.1} parent=35 // loop_pre_header
                _
              $region38: #{pos_encoding_nerf.1} parent=35 // loop_header
                %s5470 = sphi 0, %s5474
                %p5471 = scmp.ge.s32.totalorder %s5470, 1
                %s5475 = sphi %s5458, %s5458
                %s5476 = sphi %s5464, %s5464
              $region39: #{pos_encoding_nerf.1} parent=35 // loop_header_branch
                %5473 = sbr.rel (%p5471) target = $region43
              $region40: #{pos_encoding_nerf.1} parent=35 // loop_body
                %v5477 = vld [vmem:[%s5475] sm:$0xff]
                %5478 = vst [vmem:[%s5476] sm:$0xff] %v5477
                %v5479 = vld [vmem:[%s5475 + $0x8] sm:$0xff]
                %5480 = vst [vmem:[%s5476 + $0x8] sm:$0xff] %v5479
                %v5481 = vld [vmem:[%s5475 + $0x10] sm:$0xff]
                %5482 = vst [vmem:[%s5476 + $0x10] sm:$0xff] %v5481
                %v5483 = vld [vmem:[%s5475 + $0x18] sm:$0xff]
                %5484 = vst [vmem:[%s5476 + $0x18] sm:$0xff] %v5483
                %v5485 = vld [vmem:[%s5475 + $0x20] sm:$0xff]
                %5486 = vst [vmem:[%s5476 + $0x80] sm:$0xff] %v5485
                %v5487 = vld [vmem:[%s5475 + $0x28] sm:$0xff]
                %5488 = vst [vmem:[%s5476 + $0x88] sm:$0xff] %v5487
                %v5489 = vld [vmem:[%s5475 + $0x30] sm:$0xff]
                %5490 = vst [vmem:[%s5476 + $0x90] sm:$0xff] %v5489
                %v5491 = vld [vmem:[%s5475 + $0x38] sm:$0xff]
                %5492 = vst [vmem:[%s5476 + $0x98] sm:$0xff] %v5491
                %v5493 = vld [vmem:[%s5475 + $0x40] sm:$0xff]
                %5494 = vst [vmem:[%s5476 + $0x100] sm:$0xff] %v5493
                %v5495 = vld [vmem:[%s5475 + $0x48] sm:$0xff]
                %5496 = vst [vmem:[%s5476 + $0x108] sm:$0xff] %v5495
                %v5497 = vld [vmem:[%s5475 + $0x50] sm:$0xff]
                %5498 = vst [vmem:[%s5476 + $0x110] sm:$0xff] %v5497
                %v5499 = vld [vmem:[%s5475 + $0x58] sm:$0xff]
                %5500 = vst [vmem:[%s5476 + $0x118] sm:$0xff] %v5499
                %v5501 = vld [vmem:[%s5475 + $0x60] sm:$0xff]
                %5502 = vst [vmem:[%s5476 + $0x180] sm:$0xff] %v5501
                %v5503 = vld [vmem:[%s5475 + $0x68] sm:$0xff]
                %5504 = vst [vmem:[%s5476 + $0x188] sm:$0xff] %v5503
                %v5505 = vld [vmem:[%s5475 + $0x70] sm:$0xff]
                %5506 = vst [vmem:[%s5476 + $0x190] sm:$0xff] %v5505
                %v5507 = vld [vmem:[%s5475 + $0x78] sm:$0xff]
                %5508 = vst [vmem:[%s5476 + $0x198] sm:$0xff] %v5507
                %v5509 = vld [vmem:[%s5475 + $0x80] sm:$0xff]
                %5510 = vst [vmem:[%s5476 + $0x200] sm:$0xff] %v5509
                %v5511 = vld [vmem:[%s5475 + $0x88] sm:$0xff]
                %5512 = vst [vmem:[%s5476 + $0x208] sm:$0xff] %v5511
                %v5513 = vld [vmem:[%s5475 + $0x90] sm:$0xff]
                %5514 = vst [vmem:[%s5476 + $0x210] sm:$0xff] %v5513
                %v5515 = vld [vmem:[%s5475 + $0x98] sm:$0xff]
                %5516 = vst [vmem:[%s5476 + $0x218] sm:$0xff] %v5515
                %v5517 = vld [vmem:[%s5475 + $0xa0] sm:$0xff]
                %5518 = vst [vmem:[%s5476 + $0x280] sm:$0xff] %v5517
                %v5519 = vld [vmem:[%s5475 + $0xa8] sm:$0xff]
                %5520 = vst [vmem:[%s5476 + $0x288] sm:$0xff] %v5519
                %v5521 = vld [vmem:[%s5475 + $0xb0] sm:$0xff]
                %5522 = vst [vmem:[%s5476 + $0x290] sm:$0xff] %v5521
                %v5523 = vld [vmem:[%s5475 + $0xb8] sm:$0xff]
                %5524 = vst [vmem:[%s5476 + $0x298] sm:$0xff] %v5523
                %v5525 = vld [vmem:[%s5475 + $0xc0] sm:$0xff]
                %5526 = vst [vmem:[%s5476 + $0x300] sm:$0xff] %v5525
                %v5527 = vld [vmem:[%s5475 + $0xc8] sm:$0xff]
                %5528 = vst [vmem:[%s5476 + $0x308] sm:$0xff] %v5527
                %v5529 = vld [vmem:[%s5475 + $0xd0] sm:$0xff]
                %5530 = vst [vmem:[%s5476 + $0x310] sm:$0xff] %v5529
                %v5531 = vld [vmem:[%s5475 + $0xd8] sm:$0xff]
                %5532 = vst [vmem:[%s5476 + $0x318] sm:$0xff] %v5531
                %v5533 = vld [vmem:[%s5475 + $0xe0] sm:$0xff]
                %5534 = vst [vmem:[%s5476 + $0x380] sm:$0xff] %v5533
                %v5535 = vld [vmem:[%s5475 + $0xe8] sm:$0xff]
                %5536 = vst [vmem:[%s5476 + $0x388] sm:$0xff] %v5535
                %v5537 = vld [vmem:[%s5475 + $0xf0] sm:$0xff]
                %5538 = vst [vmem:[%s5476 + $0x390] sm:$0xff] %v5537
                %v5539 = vld [vmem:[%s5475 + $0xf8] sm:$0xff]
                %5540 = vst [vmem:[%s5476 + $0x398] sm:$0xff] %v5539
              $region41: #{pos_encoding_nerf.1} parent=35 // loop_footer
                %s5474 = sadd.s32 1, %s5470
              $region42: #{pos_encoding_nerf.1} parent=35 // loop_footer_branch
                %5469 = sbr.rel target = $region38
              $region43: #{pos_encoding_nerf.1} parent=35 // loop_exit
                _
            $region36: #{pos_encoding_nerf.1} parent=31 // pred_fallthru
              _
            // Predicated region
            $region44: #{pos_encoding_nerf.1} parent=31 // pred_check
              _
            $region45: #{pos_encoding_nerf.1} parent=31 // pred_check_branch
              %5542 = sbr.rel target = $region47
            $region46: #{pos_encoding_nerf.1} parent=31 // pred_region
              _
            $region47: #{pos_encoding_nerf.1} parent=31 // pred_fallthru
              _
          $region32: #{pos_encoding_nerf.1} parent=27 // pred_fallthru
            _
          %5543 = vnop
        $region28: #{pos_encoding_nerf.1} parent=23 // pred_fallthru
          _
      $region24: #{pos_encoding_nerf.1} parent=5 // pred_fallthru
        _
      %p5544 = scmp.le.s32.totalorder 2, %s7
      // Predicated region
      $region48: #{pos_encoding_nerf.1} parent=5 // pred_check
        %p5545 = pneg %p5544
      $region49: #{pos_encoding_nerf.1} parent=5 // pred_check_branch
        %5547 = sbr.rel (%p5545) target = $region51
      $region50: #{pos_encoding_nerf.1} parent=5 // pred_region
        %s5548 = ssub.s32 %s7, 2
        // Predicated region
        $region52: #{pos_encoding_nerf.1} parent=50 // pred_check
          %p5549 = pneg %p62
        $region53: #{pos_encoding_nerf.1} parent=50 // pred_check_branch
          %5551 = sbr.rel (%p5549) target = $region55
        $region54: #{pos_encoding_nerf.1} parent=50 // pred_region
          %s5552 = sand.u32 %s47, 1
          %s5553 = sand.u32 %s47, 1
          %s5554 = smul.addr %s5553, 256
          %s5555 = scalar_lea.vmem [#allocation2], %s5554
        $region55: #{pos_encoding_nerf.1} parent=50 // pred_fallthru
          _
      $region51: #{pos_encoding_nerf.1} parent=5 // pred_fallthru
        _
    $region6: #{pos_encoding_nerf.1} parent=1 // loop_footer
      %s11 = sadd.s32 1, %s7
    $region7: #{pos_encoding_nerf.1} parent=1 // loop_footer_branch
      %6 = sbr.rel target = $region3
    $region8: #{pos_encoding_nerf.1} parent=1 // loop_exit
      _

</llo_original>
